<compile_context>
chip_gen: v7x
topology: tpu7x:2x2x1
jax: 0.10.0
libtpu: 0.0.40
codegen_flags: <defaults>
</compile_context>

<pallas_src>
import functools
import math

import jax
import jax.numpy as jnp
from jax import lax
from jax.experimental import pallas as pl
from jax.experimental.pallas import tpu as pltpu

BN_EPS = 1e-5
NORM_EPS = 1e-12                 # F.normalize default eps
MATMUL_DTYPE = jnp.bfloat16      # MXU operand dtype; accumulation stays f32
PRED_PAD = 128                   # lane-dense padded width for the (B, 2) pred

# SignalEncoder conv config: (kernel, stride, padding) -- static.
CONV_CFG = ((7, 4, 3), (5, 4, 2), (3, 2, 1), (3, 2, 1))


def _nbytes(x):
    return math.prod(x.shape) * x.dtype.itemsize


def _conv_tap_offsets():
    """Per-layer tap row-offsets, measured in conv1-output rows.

    Layer 1 works on space-to-depth rows (previous / current row); later layers
    are evaluated at every conv1-resolution row, so tap k of layer i sits at
    row offset stride_cum_{i-1} * (k - pad)."""
    deltas = [(-1, 0)]
    stride_cum = 1
    for (k, s, p) in CONV_CFG[1:]:
        deltas.append(tuple(stride_cum * (kk - p) for kk in range(k)))
        stride_cum *= s
    return tuple(deltas), stride_cum        # stride_cum == spacing of conv4 rows


def _pick_batch_block(b):
    if b % 8 != 0:
        return b                            # single grid step (demo-sized batch)
    for cand in (32, 16, 8):
        if b % cand == 0:
            return cand
    return b


# ----------------------------------------------------------------------------
# The one fused kernel
# ----------------------------------------------------------------------------
def _fused_kernel(*refs, conv_deltas, r_rows, final_stride, l_last, half,
                  batch_block):
    n_conv = len(conv_deltas)
    n_in = 2 + 3 * n_conv + 11
    x_ref, pers_ref = refs[0], refs[1]
    conv_refs = refs[2:2 + 3 * n_conv]
    (proj_w_ref, proj_b_ref, p1_w_ref, p1_b_ref, p2_w_ref, p2_b_ref,
     r1_rep_ref, r1_pf_ref, r1_b_ref, r2_w_ref, r2_b_ref) = refs[2 + 3 * n_conv:n_in]
    reps_ref, pred_ref = refs[n_in], refs[n_in + 1]
    feat_scratch = refs[n_in + 2]

    cdt = MATMUL_DTYPE
    m = x_ref.shape[0]                                   # batch_block * r_rows
    row = lax.broadcasted_iota(jnp.int32, (m, 1), 0)
    pos = row % r_rows                                   # position within batch elem

    # ---- SignalEncoder: 4x (Conv1d -> folded BN -> ReLU), ONE matmul each ----
    x = x_ref[...]                                       # f32 (m, s1*Cin)
    for li in range(n_conv):
        w_ref = conv_refs[3 * li]
        scale = conv_refs[3 * li + 1][...]
        shift = conv_refs[3 * li + 2][...]
        taps = []
        for d in conv_deltas[li]:
            if d == 0:
                taps.append(x)
            else:
                t = pltpu.roll(x, shift=(-d) % m, axis=0)        # t[r] = x[r + d]
                valid = (pos >= -d) if d < 0 else (pos < r_rows - d)
                taps.append(jnp.where(valid, t, 0.0))            # zero pad / batch edge
        xcat = taps[0] if len(taps) == 1 else jnp.concatenate(taps, axis=-1)
        y = jnp.dot(xcat.astype(cdt), w_ref[...],
                    preferred_element_type=jnp.float32)          # single MXU matmul
        x = jnp.maximum(y * scale + shift, 0.0)                  # BN + ReLU (f32)

    # ---- fused AdaptiveAvgPool1d(1): aligned per-batch sublane reductions ----
    y4 = jnp.where((pos % final_stride) == 0, x, 0.0)            # keep real conv4 rows
    for bidx in range(batch_block):
        seg = y4[bidx * r_rows:(bidx + 1) * r_rows, :]           # aligned static slice
        feat_scratch[pl.ds(bidx, 1), :] = jnp.sum(seg, axis=0, keepdims=True)
    feat = feat_scratch[...] * (1.0 / l_last)                    # (batch_block, C4)

    # ---- dual projection + per-branch L2 normalize (lane-masked, no slices) --
    rep = jnp.dot(feat.astype(cdt), proj_w_ref[...],
                  preferred_element_type=jnp.float32) + proj_b_ref[...]
    lane = lax.broadcasted_iota(jnp.int32, (1, rep.shape[-1]), 1)
    first = lane < half
    sq = rep * rep
    s_s = jnp.sum(jnp.where(first, sq, 0.0), axis=-1, keepdims=True)
    s_d = jnp.sum(jnp.where(first, 0.0, sq), axis=-1, keepdims=True)
    inv_s = lax.rsqrt(jnp.maximum(s_s, NORM_EPS * NORM_EPS))
    inv_d = lax.rsqrt(jnp.maximum(s_d, NORM_EPS * NORM_EPS))
    reps = rep * jnp.where(first, inv_s, inv_d)
    reps_ref[...] = reps

    # ---- PersonalInfoEncoder MLP (never leaves vregs) ------------------------
    pf = jnp.dot(pers_ref[...].astype(cdt), p1_w_ref[...],
                 preferred_element_type=jnp.float32) + p1_b_ref[...]
    pf = jnp.maximum(pf, 0.0)
    pf = jnp.dot(pf.astype(cdt), p2_w_ref[...],
                 preferred_element_type=jnp.float32) + p2_b_ref[...]
    pf = jnp.maximum(pf, 0.0)

    # ---- both regression branches (torch.cat -> split block matmuls) ---------
    h = (jnp.dot(reps.astype(cdt), r1_rep_ref[...], preferred_element_type=jnp.float32)
         + jnp.dot(pf.astype(cdt), r1_pf_ref[...], preferred_element_type=jnp.float32)
         + r1_b_ref[...])
    h = jnp.maximum(h, 0.0)
    # Final layer padded to a lane-dense (B, PRED_PAD) slab; cols 0/1 hold
    # sbp_pred / dbp_pred, the wrapper slices them out.
    pred_ref[...] = (jnp.dot(h.astype(cdt), r2_w_ref[...],
                             preferred_element_type=jnp.float32) + r2_b_ref[...])


# ----------------------------------------------------------------------------
# Host-side parameter packing (BN fold, per-layer tap-stacked conv weights,
# block-diag regression heads, bf16 weight casts) -- done once, outside jit.
# ----------------------------------------------------------------------------
def pack_params(params):
    cdt = MATMUL_DTYPE
    packed = {"convs": []}

    for li, (p, (k, s, pad)) in enumerate(zip(params["convs"], CONV_CFG)):
        w = p["w"]                                       # (Cout, Cin, K) torch layout
        c_out, c_in, _ = w.shape
        if li == 0:
            # space-to-depth conv1: taps grouped into [previous row | current row]
            assert pad <= s and k <= pad + s, \
                "conv1 space-to-depth lowering needs pad<=stride and K<=pad+stride"
            w_prev = jnp.zeros((s * c_in, c_out), jnp.float32)
            w_cur = jnp.zeros((s * c_in, c_out), jnp.float32)
            for kk in range(k):
                wk = w[:, :, kk].T                       # (Cin, Cout)
                t0 = s - pad + kk
                if 0 <= t0 < s:
                    w_prev = w_prev.at[t0 * c_in:(t0 + 1) * c_in, :].set(wk)
                else:
                    t1 = kk - pad
                    w_cur = w_cur.at[t1 * c_in:(t1 + 1) * c_in, :].set(wk)
            w_packed = jnp.concatenate([w_prev, w_cur], axis=0)     # (2*s*Cin, Cout)
        else:
            # later convs: taps stacked along rows in k order -> (K*Cin, Cout)
            w_packed = jnp.concatenate([w[:, :, kk].T for kk in range(k)], axis=0)
        scale = p["gamma"] / jnp.sqrt(p["var"] + BN_EPS)            # BN folded (inference)
        shift = p["beta"] + scale * (p["b"] - p["mean"])
        packed["convs"].append({
            "w": w_packed.astype(cdt),
            "scale": scale.reshape(1, c_out).astype(jnp.float32),
            "shift": shift.reshape(1, c_out).astype(jnp.float32),
        })

    half = params["sbp_proj_w"].shape[1]
    hid = params["sbp_reg1_w"].shape[1]

    packed["proj_w"] = jnp.concatenate(
        [params["sbp_proj_w"], params["dbp_proj_w"]], axis=1).astype(cdt)   # (feat, 2*half)
    packed["proj_b"] = jnp.concatenate(
        [params["sbp_proj_b"], params["dbp_proj_b"]]).reshape(1, -1).astype(jnp.float32)

    packed["p1_w"] = params["pers1_w"].astype(cdt)
    packed["p1_b"] = params["pers1_b"].reshape(1, -1).astype(jnp.float32)
    packed["p2_w"] = params["pers2_w"].astype(cdt)
    packed["p2_b"] = params["pers2_b"].reshape(1, -1).astype(jnp.float32)

    # Regression fc1: block-diagonal over [sbp | dbp] for the rep part, stacked
    # for the shared personal-feature part (replaces the torch.cat).
    r1_rep = jnp.zeros((2 * half, 2 * hid), jnp.float32)
    r1_rep = r1_rep.at[:half, :hid].set(params["sbp_reg1_w"][:half, :])
    r1_rep = r1_rep.at[half:, hid:].set(params["dbp_reg1_w"][:half, :])
    packed["r1_rep_w"] = r1_rep.astype(cdt)
    packed["r1_pf_w"] = jnp.concatenate(
        [params["sbp_reg1_w"][half:, :], params["dbp_reg1_w"][half:, :]], axis=1).astype(cdt)
    packed["r1_b"] = jnp.concatenate(
        [params["sbp_reg1_b"], params["dbp_reg1_b"]]).reshape(1, -1).astype(jnp.float32)

    # Regression fc2 for both branches, padded to a lane-dense PRED_PAD slab.
    r2_w = jnp.zeros((2 * hid, PRED_PAD), jnp.float32)
    r2_w = r2_w.at[:hid, 0].set(params["sbp_reg2_w"][:, 0])
    r2_w = r2_w.at[hid:, 1].set(params["dbp_reg2_w"][:, 0])
    packed["r2_w"] = r2_w.astype(cdt)
    r2_b = jnp.zeros((PRED_PAD,), jnp.float32)
    r2_b = r2_b.at[0].set(params["sbp_reg2_b"][0]).at[1].set(params["dbp_reg2_b"][0])
    packed["r2_b"] = r2_b.reshape(1, -1)
    return packed


# ----------------------------------------------------------------------------
# Forward pass (matches BranchContrastiveBPModel.forward) -- ONE pallas_call
# ----------------------------------------------------------------------------
def branch_contrastive_bp_forward(packed, signal, personal_info):
    b, c_in, l = signal.shape
    _, s1, _ = CONV_CFG[0]

    # Static config checks for the fused lowering (PyTorch length formula must
    # coincide with L // stride at every layer).
    l_i = l
    for (k, s, p) in CONV_CFG:
        assert l_i % s == 0 and (l_i + 2 * p - k) // s + 1 == l_i // s, \
            "signal length incompatible with the fused conv lowering"
        l_i //= s
    l_last = l_i
    r_rows = l // s1
    assert r_rows % 8 == 0, "conv1 output length per sample must be a multiple of 8"

    conv_deltas, final_stride = _conv_tap_offsets()

    # The only host-side layout ops: NCL -> NLC transpose + free s2d reshape.
    x = jnp.transpose(signal, (0, 2, 1)).reshape(b * r_rows, s1 * c_in)

    bb = _pick_batch_block(b)
    assert b % bb == 0
    grid = (b // bb,)

    rep_dim = packed["proj_w"].shape[1]
    half = rep_dim // 2
    c_feat = packed["convs"][-1]["w"].shape[1]
    dp = personal_info.shape[1]

    inputs = [x, personal_info]
    in_specs = [pl.BlockSpec((bb * r_rows, s1 * c_in), lambda i: (i, 0)),
                pl.BlockSpec((bb, dp), lambda i: (i, 0))]
    for cp in packed["convs"]:
        for name in ("w", "scale", "shift"):
            arr = cp[name]
            inputs.append(arr)
            in_specs.append(pl.BlockSpec(arr.shape, lambda i: (0, 0)))
    for name in ("proj_w", "proj_b", "p1_w", "p1_b", "p2_w", "p2_b",
                 "r1_rep_w", "r1_pf_w", "r1_b", "r2_w", "r2_b"):
        arr = packed[name]
        inputs.append(arr)
        in_specs.append(pl.BlockSpec(arr.shape, lambda i: (0, 0)))

    m_total = b * r_rows
    conv_flops = sum(2 * m_total * cp["w"].shape[0] * cp["w"].shape[1]
                     for cp in packed["convs"])
    head_flops = 2 * b * sum(packed[n].shape[0] * packed[n].shape[1]
                             for n in ("proj_w", "p1_w", "p2_w",
                                       "r1_rep_w", "r1_pf_w", "r2_w"))
    cost = pl.CostEstimate(
        flops=conv_flops + head_flops, transcendentals=2 * b,
        bytes_accessed=sum(_nbytes(a) for a in inputs)
        + b * (rep_dim + PRED_PAD) * 4)

    reps, pred_pad = pl.pallas_call(
        functools.partial(_fused_kernel, conv_deltas=conv_deltas, r_rows=r_rows,
                          final_stride=final_stride, l_last=l_last, half=half,
                          batch_block=bb),
        grid=grid,
        out_shape=(jax.ShapeDtypeStruct((b, rep_dim), jnp.float32),
                   jax.ShapeDtypeStruct((b, PRED_PAD), jnp.float32)),
        in_specs=in_specs,
        out_specs=(pl.BlockSpec((bb, rep_dim), lambda i: (i, 0)),
                   pl.BlockSpec((bb, PRED_PAD), lambda i: (i, 0))),
        scratch_shapes=[pltpu.VMEM((bb, c_feat), jnp.float32)],
        compiler_params=pltpu.CompilerParams(
            dimension_semantics=("parallel",)),
        cost_estimate=cost,
    )(*inputs)

    sbp_rep_norm = reps[:, :half]
    dbp_rep_norm = reps[:, half:]
    pred = pred_pad[:, :2]                                # [sbp_pred, dbp_pred]
    return (sbp_rep_norm, dbp_rep_norm), pred


# ----------------------------------------------------------------------------
# Parameter init (deterministic, synthetic)
# ----------------------------------------------------------------------------
def init_params(key, signal_in_channels, personal_input_dim=4,
                base_channels=32, rep_dim=128):
    def nrm(k, shape, scale=0.05):
        return scale * jax.random.normal(k, shape, dtype=jnp.float32)

    keys = iter(jax.random.split(key, 64))
    params = {}

    conv_shapes = [
        (signal_in_channels, base_channels, 7),
        (base_channels, base_channels * 2, 5),
        (base_channels * 2, base_channels * 4, 3),
        (base_channels * 4, base_channels * 8, 3),
    ]
    convs = []
    for c_in, c_out, k in conv_shapes:
        convs.append({
            "w": nrm(next(keys), (c_out, c_in, k)),
            "b": nrm(next(keys), (c_out,)),
            "gamma": 1.0 + nrm(next(keys), (c_out,)),
            "beta": nrm(next(keys), (c_out,)),
            "mean": nrm(next(keys), (c_out,)),
            "var": 1.0 + jnp.abs(nrm(next(keys), (c_out,))),
        })
    params["convs"] = convs

    feat_dim = base_channels * 8
    half = rep_dim // 2
    params["sbp_proj_w"] = nrm(next(keys), (feat_dim, half))
    params["sbp_proj_b"] = nrm(next(keys), (half,))
    params["dbp_proj_w"] = nrm(next(keys), (feat_dim, half))
    params["dbp_proj_b"] = nrm(next(keys), (half,))

    params["pers1_w"] = nrm(next(keys), (personal_input_dim, 32))
    params["pers1_b"] = nrm(next(keys), (32,))
    params["pers2_w"] = nrm(next(keys), (32, 32))
    params["pers2_b"] = nrm(next(keys), (32,))

    for br in ("sbp", "dbp"):
        params[f"{br}_reg1_w"] = nrm(next(keys), (half + 32, 64))
        params[f"{br}_reg1_b"] = nrm(next(keys), (64,))
        params[f"{br}_reg2_w"] = nrm(next(keys), (64, 1))
        params[f"{br}_reg2_b"] = nrm(next(keys), (1,))
    return params


# ----------------------------------------------------------------------------
if __name__ == "__main__":
    B = 2
    SIGNAL_CHANNELS = 2
    SIGNAL_LEN = 256        # conv lengths 64, 16, 8, 4 -> fused avg-pool -> feat
    PERSONAL_DIM = 4

    root = jax.random.PRNGKey(0)
    k_sig, k_per, k_par = jax.random.split(root, 3)

    signal = jax.random.normal(k_sig, (B, SIGNAL_CHANNELS, SIGNAL_LEN),
                               dtype=jnp.float32)
    personal_info = jax.random.normal(k_per, (B, PERSONAL_DIM), dtype=jnp.float32)

    params = init_params(k_par, SIGNAL_CHANNELS, PERSONAL_DIM)
    packed = pack_params(params)          # host-side repack + bf16 weight casts

    fwd = jax.jit(branch_contrastive_bp_forward)
    (sbp_rep_norm, dbp_rep_norm), pred = fwd(packed, signal, personal_info)
    jax.block_until_ready((sbp_rep_norm, dbp_rep_norm, pred))

    assert sbp_rep_norm.shape == (B, 64)
    assert dbp_rep_norm.shape == (B, 64)
    assert pred.shape == (B, 2)
    print("KERNEL_OK")
</pallas_src>

<mosaic_0001>
module attributes {stable_mosaic.version = 11 : i64} {
  func.func @_fused_kernel(%arg0: i32, %arg1: memref<128x8xf32, #tpu.memory_space<vmem>>, %arg2: memref<2x4xf32, #tpu.memory_space<vmem>>, %arg3: memref<16x32xbf16, #tpu.memory_space<vmem>>, %arg4: memref<1x32xf32, #tpu.memory_space<vmem>>, %arg5: memref<1x32xf32, #tpu.memory_space<vmem>>, %arg6: memref<160x64xbf16, #tpu.memory_space<vmem>>, %arg7: memref<1x64xf32, #tpu.memory_space<vmem>>, %arg8: memref<1x64xf32, #tpu.memory_space<vmem>>, %arg9: memref<192x128xbf16, #tpu.memory_space<vmem>>, %arg10: memref<1x128xf32, #tpu.memory_space<vmem>>, %arg11: memref<1x128xf32, #tpu.memory_space<vmem>>, %arg12: memref<384x256xbf16, #tpu.memory_space<vmem>>, %arg13: memref<1x256xf32, #tpu.memory_space<vmem>>, %arg14: memref<1x256xf32, #tpu.memory_space<vmem>>, %arg15: memref<256x128xbf16, #tpu.memory_space<vmem>>, %arg16: memref<1x128xf32, #tpu.memory_space<vmem>>, %arg17: memref<4x32xbf16, #tpu.memory_space<vmem>>, %arg18: memref<1x32xf32, #tpu.memory_space<vmem>>, %arg19: memref<32x32xbf16, #tpu.memory_space<vmem>>, %arg20: memref<1x32xf32, #tpu.memory_space<vmem>>, %arg21: memref<128x128xbf16, #tpu.memory_space<vmem>>, %arg22: memref<32x128xbf16, #tpu.memory_space<vmem>>, %arg23: memref<1x128xf32, #tpu.memory_space<vmem>>, %arg24: memref<128x128xbf16, #tpu.memory_space<vmem>>, %arg25: memref<1x128xf32, #tpu.memory_space<vmem>>, %arg26: memref<2x128xf32, #tpu.memory_space<vmem>>, %arg27: memref<2x128xf32, #tpu.memory_space<vmem>>, %arg28: memref<2x256xf32, #tpu.memory_space<vmem>>) attributes {dimension_semantics = [#tpu.dimension_semantics<parallel>], iteration_bounds = array<i64: 1>, scalar_prefetch = 0 : i64, scratch_operands = 1 : i64, tpu.core_type = #tpu.core_type<tc>, window_params = [{transform_indices = @transform_0, window_bounds = array<i64: 128, 8>}, {transform_indices = @transform_1, window_bounds = array<i64: 2, 4>}, {pipeline_mode = #tpu.pipeline_mode<synchronous>, transform_indices = @transform_2, window_bounds = array<i64: 16, 32>}, {pipeline_mode = #tpu.pipeline_mode<synchronous>, transform_indices = @transform_3, window_bounds = array<i64: 1, 32>}, {pipeline_mode = #tpu.pipeline_mode<synchronous>, transform_indices = @transform_4, window_bounds = array<i64: 1, 32>}, {pipeline_mode = #tpu.pipeline_mode<synchronous>, transform_indices = @transform_5, window_bounds = array<i64: 160, 64>}, {pipeline_mode = #tpu.pipeline_mode<synchronous>, transform_indices = @transform_6, window_bounds = array<i64: 1, 64>}, {pipeline_mode = #tpu.pipeline_mode<synchronous>, transform_indices = @transform_7, window_bounds = array<i64: 1, 64>}, {pipeline_mode = #tpu.pipeline_mode<synchronous>, transform_indices = @transform_8, window_bounds = array<i64: 192, 128>}, {pipeline_mode = #tpu.pipeline_mode<synchronous>, transform_indices = @transform_9, window_bounds = array<i64: 1, 128>}, {pipeline_mode = #tpu.pipeline_mode<synchronous>, transform_indices = @transform_10, window_bounds = array<i64: 1, 128>}, {pipeline_mode = #tpu.pipeline_mode<synchronous>, transform_indices = @transform_11, window_bounds = array<i64: 384, 256>}, {pipeline_mode = #tpu.pipeline_mode<synchronous>, transform_indices = @transform_12, window_bounds = array<i64: 1, 256>}, {pipeline_mode = #tpu.pipeline_mode<synchronous>, transform_indices = @transform_13, window_bounds = array<i64: 1, 256>}, {pipeline_mode = #tpu.pipeline_mode<synchronous>, transform_indices = @transform_14, window_bounds = array<i64: 256, 128>}, {pipeline_mode = #tpu.pipeline_mode<synchronous>, transform_indices = @transform_15, window_bounds = array<i64: 1, 128>}, {pipeline_mode = #tpu.pipeline_mode<synchronous>, transform_indices = @transform_16, window_bounds = array<i64: 4, 32>}, {pipeline_mode = #tpu.pipeline_mode<synchronous>, transform_indices = @transform_17, window_bounds = array<i64: 1, 32>}, {pipeline_mode = #tpu.pipeline_mode<synchronous>, transform_indices = @transform_18, window_bounds = array<i64: 32, 32>}, {pipeline_mode = #tpu.pipeline_mode<synchronous>, transform_indices = @transform_19, window_bounds = array<i64: 1, 32>}, {pipeline_mode = #tpu.pipeline_mode<synchronous>, transform_indices = @transform_20, window_bounds = array<i64: 128, 128>}, {pipeline_mode = #tpu.pipeline_mode<synchronous>, transform_indices = @transform_21, window_bounds = array<i64: 32, 128>}, {pipeline_mode = #tpu.pipeline_mode<synchronous>, transform_indices = @transform_22, window_bounds = array<i64: 1, 128>}, {pipeline_mode = #tpu.pipeline_mode<synchronous>, transform_indices = @transform_23, window_bounds = array<i64: 128, 128>}, {pipeline_mode = #tpu.pipeline_mode<synchronous>, transform_indices = @transform_24, window_bounds = array<i64: 1, 128>}, {transform_indices = @transform_25, window_bounds = array<i64: 2, 128>}, {transform_indices = @transform_26, window_bounds = array<i64: 2, 128>}]} {
    %0 = tpu.iota {dimensions = array<i32: 0>} : vector<128x1xi32>
    %c64_i32 = arith.constant 64 : i32
    %c0_i32 = arith.constant 0 : i32
    %1 = arith.cmpi eq, %c64_i32, %c0_i32 : i32
    %c1_i32 = arith.constant 1 : i32
    %2 = arith.select %1, %c1_i32, %c64_i32 : i32
    %3 = vector.broadcast %2 : i32 to vector<128x1xi32>
    %4 = arith.remsi %0, %3 : vector<128x1xi32>
    %c0_i32_0 = arith.constant 0 : i32
    %5 = vector.broadcast %c0_i32_0 : i32 to vector<128x1xi32>
    %6 = arith.cmpi ne, %4, %5 : vector<128x1xi32>
    %c0_i32_1 = arith.constant 0 : i32
    %7 = vector.broadcast %c0_i32_1 : i32 to vector<128x1xi32>
    %8 = arith.cmpi slt, %4, %7 : vector<128x1xi32>
    %c0_i32_2 = arith.constant 0 : i32
    %9 = arith.cmpi slt, %2, %c0_i32_2 : i32
    %10 = vector.broadcast %9 : i1 to vector<128x1xi1>
    %11 = vector.broadcast %10 : vector<128x1xi1> to vector<128x1xi1>
    %12 = arith.xori %8, %11 : vector<128x1xi1>
    %13 = arith.andi %12, %6 : vector<128x1xi1>
    %14 = vector.broadcast %2 : i32 to vector<128x1xi32>
    %15 = arith.addi %4, %14 : vector<128x1xi32>
    %16 = arith.select %13, %15, %4 : vector<128x1xi1>, vector<128x1xi32>
    %c0 = arith.constant 0 : index
    %c0_3 = arith.constant 0 : index
    %17 = vector.load %arg1[%c0, %c0_3] : memref<128x8xf32, #tpu.memory_space<vmem>>, vector<128x8xf32>
    %c0_4 = arith.constant 0 : index
    %c0_5 = arith.constant 0 : index
    %18 = vector.load %arg4[%c0_4, %c0_5] : memref<1x32xf32, #tpu.memory_space<vmem>>, vector<1x32xf32>
    %c0_6 = arith.constant 0 : index
    %c0_7 = arith.constant 0 : index
    %19 = vector.load %arg5[%c0_6, %c0_7] : memref<1x32xf32, #tpu.memory_space<vmem>>, vector<1x32xf32>
    %c1_i32_8 = arith.constant 1 : i32
    %20 = tpu.dynamic_rotate %17 by %c1_i32_8 dim 0 : vector<128x8xf32>, i32 -> vector<128x8xf32>
    %c1_i32_9 = arith.constant 1 : i32
    %21 = vector.broadcast %c1_i32_9 : i32 to vector<128x1xi32>
    %22 = arith.cmpi sge, %16, %21 : vector<128x1xi32>
    %cst = arith.constant 0.000000e+00 : f32
    %23 = vector.shape_cast %22 : vector<128x1xi1> to vector<128x1xi1>
    %24 = vector.broadcast %23 : vector<128x1xi1> to vector<128x8xi1>
    %25 = vector.broadcast %cst : f32 to vector<128x8xf32>
    %26 = arith.select %24, %20, %25 : vector<128x8xi1>, vector<128x8xf32>
    %27 = tpu.concatenate %26, %17 in 1 : vector<128x8xf32>, vector<128x8xf32> -> vector<128x16xf32>
    %28 = arith.truncf %27 : vector<128x16xf32> to vector<128x16xbf16>
    %c0_10 = arith.constant 0 : index
    %c0_11 = arith.constant 0 : index
    %29 = vector.load %arg3[%c0_10, %c0_11] : memref<16x32xbf16, #tpu.memory_space<vmem>>, vector<16x32xbf16>
    %cst_12 = arith.constant dense<0.000000e+00> : vector<128x32xf32>
    %30 = tpu.matmul %28, %29, %cst_12 {dimension_numbers = #tpu.dot_dimension_numbers<[1], [0], [0], [1], [0, 0, 1, 1], [], []>} : vector<128x16xbf16>, vector<16x32xbf16>, vector<128x32xf32> -> vector<128x32xf32>
    %31 = vector.broadcast %18 : vector<1x32xf32> to vector<128x32xf32>
    %32 = arith.mulf %30, %31 : vector<128x32xf32>
    %33 = vector.broadcast %19 : vector<1x32xf32> to vector<128x32xf32>
    %34 = arith.addf %32, %33 : vector<128x32xf32>
    %cst_13 = arith.constant 0.000000e+00 : f32
    %35 = vector.broadcast %cst_13 : f32 to vector<128x32xf32>
    %36 = arith.maximumf %34, %35 : vector<128x32xf32>
    %c0_14 = arith.constant 0 : index
    %c0_15 = arith.constant 0 : index
    %37 = vector.load %arg7[%c0_14, %c0_15] : memref<1x64xf32, #tpu.memory_space<vmem>>, vector<1x64xf32>
    %c0_16 = arith.constant 0 : index
    %c0_17 = arith.constant 0 : index
    %38 = vector.load %arg8[%c0_16, %c0_17] : memref<1x64xf32, #tpu.memory_space<vmem>>, vector<1x64xf32>
    %c2_i32 = arith.constant 2 : i32
    %39 = tpu.dynamic_rotate %36 by %c2_i32 dim 0 : vector<128x32xf32>, i32 -> vector<128x32xf32>
    %c2_i32_18 = arith.constant 2 : i32
    %40 = vector.broadcast %c2_i32_18 : i32 to vector<128x1xi32>
    %41 = arith.cmpi sge, %16, %40 : vector<128x1xi32>
    %cst_19 = arith.constant 0.000000e+00 : f32
    %42 = vector.shape_cast %41 : vector<128x1xi1> to vector<128x1xi1>
    %43 = vector.broadcast %42 : vector<128x1xi1> to vector<128x32xi1>
    %44 = vector.broadcast %cst_19 : f32 to vector<128x32xf32>
    %45 = arith.select %43, %39, %44 : vector<128x32xi1>, vector<128x32xf32>
    %c1_i32_20 = arith.constant 1 : i32
    %46 = tpu.dynamic_rotate %36 by %c1_i32_20 dim 0 : vector<128x32xf32>, i32 -> vector<128x32xf32>
    %c1_i32_21 = arith.constant 1 : i32
    %47 = vector.broadcast %c1_i32_21 : i32 to vector<128x1xi32>
    %48 = arith.cmpi sge, %16, %47 : vector<128x1xi32>
    %cst_22 = arith.constant 0.000000e+00 : f32
    %49 = vector.shape_cast %48 : vector<128x1xi1> to vector<128x1xi1>
    %50 = vector.broadcast %49 : vector<128x1xi1> to vector<128x32xi1>
    %51 = vector.broadcast %cst_22 : f32 to vector<128x32xf32>
    %52 = arith.select %50, %46, %51 : vector<128x32xi1>, vector<128x32xf32>
    %c127_i32 = arith.constant 127 : i32
    %53 = tpu.dynamic_rotate %36 by %c127_i32 dim 0 : vector<128x32xf32>, i32 -> vector<128x32xf32>
    %c63_i32 = arith.constant 63 : i32
    %54 = vector.broadcast %c63_i32 : i32 to vector<128x1xi32>
    %55 = arith.cmpi slt, %16, %54 : vector<128x1xi32>
    %cst_23 = arith.constant 0.000000e+00 : f32
    %56 = vector.shape_cast %55 : vector<128x1xi1> to vector<128x1xi1>
    %57 = vector.broadcast %56 : vector<128x1xi1> to vector<128x32xi1>
    %58 = vector.broadcast %cst_23 : f32 to vector<128x32xf32>
    %59 = arith.select %57, %53, %58 : vector<128x32xi1>, vector<128x32xf32>
    %c126_i32 = arith.constant 126 : i32
    %60 = tpu.dynamic_rotate %36 by %c126_i32 dim 0 : vector<128x32xf32>, i32 -> vector<128x32xf32>
    %c62_i32 = arith.constant 62 : i32
    %61 = vector.broadcast %c62_i32 : i32 to vector<128x1xi32>
    %62 = arith.cmpi slt, %16, %61 : vector<128x1xi32>
    %cst_24 = arith.constant 0.000000e+00 : f32
    %63 = vector.shape_cast %62 : vector<128x1xi1> to vector<128x1xi1>
    %64 = vector.broadcast %63 : vector<128x1xi1> to vector<128x32xi1>
    %65 = vector.broadcast %cst_24 : f32 to vector<128x32xf32>
    %66 = arith.select %64, %60, %65 : vector<128x32xi1>, vector<128x32xf32>
    %67 = tpu.concatenate %45, %52, %36, %59, %66 in 1 : vector<128x32xf32>, vector<128x32xf32>, vector<128x32xf32>, vector<128x32xf32>, vector<128x32xf32> -> vector<128x160xf32>
    %68 = arith.truncf %67 : vector<128x160xf32> to vector<128x160xbf16>
    %c0_25 = arith.constant 0 : index
    %c0_26 = arith.constant 0 : index
    %69 = vector.load %arg6[%c0_25, %c0_26] : memref<160x64xbf16, #tpu.memory_space<vmem>>, vector<160x64xbf16>
    %cst_27 = arith.constant dense<0.000000e+00> : vector<128x64xf32>
    %70 = tpu.matmul %68, %69, %cst_27 {dimension_numbers = #tpu.dot_dimension_numbers<[1], [0], [0], [1], [0, 0, 1, 1], [], []>} : vector<128x160xbf16>, vector<160x64xbf16>, vector<128x64xf32> -> vector<128x64xf32>
    %71 = vector.broadcast %37 : vector<1x64xf32> to vector<128x64xf32>
    %72 = arith.mulf %70, %71 : vector<128x64xf32>
    %73 = vector.broadcast %38 : vector<1x64xf32> to vector<128x64xf32>
    %74 = arith.addf %72, %73 : vector<128x64xf32>
    %cst_28 = arith.constant 0.000000e+00 : f32
    %75 = vector.broadcast %cst_28 : f32 to vector<128x64xf32>
    %76 = arith.maximumf %74, %75 : vector<128x64xf32>
    %c0_29 = arith.constant 0 : index
    %c0_30 = arith.constant 0 : index
    %77 = vector.load %arg10[%c0_29, %c0_30] : memref<1x128xf32, #tpu.memory_space<vmem>>, vector<1x128xf32>
    %c0_31 = arith.constant 0 : index
    %c0_32 = arith.constant 0 : index
    %78 = vector.load %arg11[%c0_31, %c0_32] : memref<1x128xf32, #tpu.memory_space<vmem>>, vector<1x128xf32>
    %c4_i32 = arith.constant 4 : i32
    %79 = tpu.dynamic_rotate %76 by %c4_i32 dim 0 : vector<128x64xf32>, i32 -> vector<128x64xf32>
    %c4_i32_33 = arith.constant 4 : i32
    %80 = vector.broadcast %c4_i32_33 : i32 to vector<128x1xi32>
    %81 = arith.cmpi sge, %16, %80 : vector<128x1xi32>
    %cst_34 = arith.constant 0.000000e+00 : f32
    %82 = vector.shape_cast %81 : vector<128x1xi1> to vector<128x1xi1>
    %83 = vector.broadcast %82 : vector<128x1xi1> to vector<128x64xi1>
    %84 = vector.broadcast %cst_34 : f32 to vector<128x64xf32>
    %85 = arith.select %83, %79, %84 : vector<128x64xi1>, vector<128x64xf32>
    %c124_i32 = arith.constant 124 : i32
    %86 = tpu.dynamic_rotate %76 by %c124_i32 dim 0 : vector<128x64xf32>, i32 -> vector<128x64xf32>
    %c60_i32 = arith.constant 60 : i32
    %87 = vector.broadcast %c60_i32 : i32 to vector<128x1xi32>
    %88 = arith.cmpi slt, %16, %87 : vector<128x1xi32>
    %cst_35 = arith.constant 0.000000e+00 : f32
    %89 = vector.shape_cast %88 : vector<128x1xi1> to vector<128x1xi1>
    %90 = vector.broadcast %89 : vector<128x1xi1> to vector<128x64xi1>
    %91 = vector.broadcast %cst_35 : f32 to vector<128x64xf32>
    %92 = arith.select %90, %86, %91 : vector<128x64xi1>, vector<128x64xf32>
    %93 = tpu.concatenate %85, %76, %92 in 1 : vector<128x64xf32>, vector<128x64xf32>, vector<128x64xf32> -> vector<128x192xf32>
    %94 = arith.truncf %93 : vector<128x192xf32> to vector<128x192xbf16>
    %c0_36 = arith.constant 0 : index
    %c0_37 = arith.constant 0 : index
    %95 = vector.load %arg9[%c0_36, %c0_37] : memref<192x128xbf16, #tpu.memory_space<vmem>>, vector<192x128xbf16>
    %cst_38 = arith.constant dense<0.000000e+00> : vector<128x128xf32>
    %96 = tpu.matmul %94, %95, %cst_38 {dimension_numbers = #tpu.dot_dimension_numbers<[1], [0], [0], [1], [0, 0, 1, 1], [], []>} : vector<128x192xbf16>, vector<192x128xbf16>, vector<128x128xf32> -> vector<128x128xf32>
    %97 = vector.broadcast %77 : vector<1x128xf32> to vector<128x128xf32>
    %98 = arith.mulf %96, %97 : vector<128x128xf32>
    %99 = vector.broadcast %78 : vector<1x128xf32> to vector<128x128xf32>
    %100 = arith.addf %98, %99 : vector<128x128xf32>
    %cst_39 = arith.constant 0.000000e+00 : f32
    %101 = vector.broadcast %cst_39 : f32 to vector<128x128xf32>
    %102 = arith.maximumf %100, %101 : vector<128x128xf32>
    %c0_40 = arith.constant 0 : index
    %c0_41 = arith.constant 0 : index
    %103 = vector.load %arg13[%c0_40, %c0_41] : memref<1x256xf32, #tpu.memory_space<vmem>>, vector<1x256xf32>
    %c0_42 = arith.constant 0 : index
    %c0_43 = arith.constant 0 : index
    %104 = vector.load %arg14[%c0_42, %c0_43] : memref<1x256xf32, #tpu.memory_space<vmem>>, vector<1x256xf32>
    %c8_i32 = arith.constant 8 : i32
    %105 = tpu.dynamic_rotate %102 by %c8_i32 dim 0 : vector<128x128xf32>, i32 -> vector<128x128xf32>
    %c8_i32_44 = arith.constant 8 : i32
    %106 = vector.broadcast %c8_i32_44 : i32 to vector<128x1xi32>
    %107 = arith.cmpi sge, %16, %106 : vector<128x1xi32>
    %cst_45 = arith.constant 0.000000e+00 : f32
    %108 = vector.shape_cast %107 : vector<128x1xi1> to vector<128x1xi1>
    %109 = vector.broadcast %108 : vector<128x1xi1> to vector<128x128xi1>
    %110 = vector.broadcast %cst_45 : f32 to vector<128x128xf32>
    %111 = arith.select %109, %105, %110 : vector<128x128xi1>, vector<128x128xf32>
    %c120_i32 = arith.constant 120 : i32
    %112 = tpu.dynamic_rotate %102 by %c120_i32 dim 0 : vector<128x128xf32>, i32 -> vector<128x128xf32>
    %c56_i32 = arith.constant 56 : i32
    %113 = vector.broadcast %c56_i32 : i32 to vector<128x1xi32>
    %114 = arith.cmpi slt, %16, %113 : vector<128x1xi32>
    %cst_46 = arith.constant 0.000000e+00 : f32
    %115 = vector.shape_cast %114 : vector<128x1xi1> to vector<128x1xi1>
    %116 = vector.broadcast %115 : vector<128x1xi1> to vector<128x128xi1>
    %117 = vector.broadcast %cst_46 : f32 to vector<128x128xf32>
    %118 = arith.select %116, %112, %117 : vector<128x128xi1>, vector<128x128xf32>
    %119 = tpu.concatenate %111, %102, %118 in 1 : vector<128x128xf32>, vector<128x128xf32>, vector<128x128xf32> -> vector<128x384xf32>
    %120 = arith.truncf %119 : vector<128x384xf32> to vector<128x384xbf16>
    %c0_47 = arith.constant 0 : index
    %c0_48 = arith.constant 0 : index
    %121 = vector.load %arg12[%c0_47, %c0_48] : memref<384x256xbf16, #tpu.memory_space<vmem>>, vector<384x256xbf16>
    %cst_49 = arith.constant dense<0.000000e+00> : vector<128x256xf32>
    %122 = tpu.matmul %120, %121, %cst_49 {dimension_numbers = #tpu.dot_dimension_numbers<[1], [0], [0], [1], [0, 0, 1, 1], [], []>} : vector<128x384xbf16>, vector<384x256xbf16>, vector<128x256xf32> -> vector<128x256xf32>
    %123 = vector.broadcast %103 : vector<1x256xf32> to vector<128x256xf32>
    %124 = arith.mulf %122, %123 : vector<128x256xf32>
    %125 = vector.broadcast %104 : vector<1x256xf32> to vector<128x256xf32>
    %126 = arith.addf %124, %125 : vector<128x256xf32>
    %cst_50 = arith.constant 0.000000e+00 : f32
    %127 = vector.broadcast %cst_50 : f32 to vector<128x256xf32>
    %128 = arith.maximumf %126, %127 : vector<128x256xf32>
    %c16_i32 = arith.constant 16 : i32
    %c0_i32_51 = arith.constant 0 : i32
    %129 = arith.cmpi eq, %c16_i32, %c0_i32_51 : i32
    %c1_i32_52 = arith.constant 1 : i32
    %130 = arith.select %129, %c1_i32_52, %c16_i32 : i32
    %131 = vector.broadcast %130 : i32 to vector<128x1xi32>
    %132 = arith.remsi %16, %131 : vector<128x1xi32>
    %c0_i32_53 = arith.constant 0 : i32
    %133 = vector.broadcast %c0_i32_53 : i32 to vector<128x1xi32>
    %134 = arith.cmpi ne, %132, %133 : vector<128x1xi32>
    %c0_i32_54 = arith.constant 0 : i32
    %135 = vector.broadcast %c0_i32_54 : i32 to vector<128x1xi32>
    %136 = arith.cmpi slt, %132, %135 : vector<128x1xi32>
    %c0_i32_55 = arith.constant 0 : i32
    %137 = arith.cmpi slt, %130, %c0_i32_55 : i32
    %138 = vector.broadcast %137 : i1 to vector<128x1xi1>
    %139 = vector.broadcast %138 : vector<128x1xi1> to vector<128x1xi1>
    %140 = arith.xori %136, %139 : vector<128x1xi1>
    %141 = arith.andi %140, %134 : vector<128x1xi1>
    %142 = vector.broadcast %130 : i32 to vector<128x1xi32>
    %143 = arith.addi %132, %142 : vector<128x1xi32>
    %144 = arith.select %141, %143, %132 : vector<128x1xi1>, vector<128x1xi32>
    %c0_i32_56 = arith.constant 0 : i32
    %145 = vector.broadcast %c0_i32_56 : i32 to vector<128x1xi32>
    %146 = arith.cmpi eq, %144, %145 : vector<128x1xi32>
    %cst_57 = arith.constant 0.000000e+00 : f32
    %147 = vector.shape_cast %146 : vector<128x1xi1> to vector<128x1xi1>
    %148 = vector.broadcast %147 : vector<128x1xi1> to vector<128x256xi1>
    %149 = vector.broadcast %cst_57 : f32 to vector<128x256xf32>
    %150 = arith.select %148, %128, %149 : vector<128x256xi1>, vector<128x256xf32>
    %151 = vector.extract_strided_slice %150 {offsets = [0, 0], sizes = [64, 256], strides = [1, 1]} : vector<128x256xf32> to vector<64x256xf32>
    %cst_58 = arith.constant dense<0.000000e+00> : vector<256xf32>
    %152 = vector.multi_reduction <add>, %151, %cst_58 [0] : vector<64x256xf32> to vector<256xf32>
    %153 = vector.shape_cast %152 : vector<256xf32> to vector<1x256xf32>
    %c0_59 = arith.constant 0 : index
    %c0_60 = arith.constant 0 : index
    %154 = vector.load %arg28[%c0_59, %c0_60] : memref<2x256xf32, #tpu.memory_space<vmem>>, vector<1x256xf32>
    tpu.vector_store %arg28[%c0_59, %c0_60], %153 {strides = array<i32>} : memref<2x256xf32, #tpu.memory_space<vmem>>, vector<1x256xf32>,
    %155 = vector.extract_strided_slice %150 {offsets = [64, 0], sizes = [64, 256], strides = [1, 1]} : vector<128x256xf32> to vector<64x256xf32>
    %cst_61 = arith.constant dense<0.000000e+00> : vector<256xf32>
    %156 = vector.multi_reduction <add>, %155, %cst_61 [0] : vector<64x256xf32> to vector<256xf32>
    %157 = vector.shape_cast %156 : vector<256xf32> to vector<1x256xf32>
    %c1 = arith.constant 1 : index
    %c0_62 = arith.constant 0 : index
    %158 = vector.load %arg28[%c1, %c0_62] : memref<2x256xf32, #tpu.memory_space<vmem>>, vector<1x256xf32>
    tpu.vector_store %arg28[%c1, %c0_62], %157 {strides = array<i32>} : memref<2x256xf32, #tpu.memory_space<vmem>>, vector<1x256xf32>,
    %c0_63 = arith.constant 0 : index
    %c0_64 = arith.constant 0 : index
    %159 = vector.load %arg28[%c0_63, %c0_64] : memref<2x256xf32, #tpu.memory_space<vmem>>, vector<2x256xf32>
    %cst_65 = arith.constant 2.500000e-01 : f32
    %160 = vector.broadcast %cst_65 : f32 to vector<2x256xf32>
    %161 = arith.mulf %159, %160 : vector<2x256xf32>
    %162 = arith.truncf %161 : vector<2x256xf32> to vector<2x256xbf16>
    %c0_66 = arith.constant 0 : index
    %c0_67 = arith.constant 0 : index
    %163 = vector.load %arg15[%c0_66, %c0_67] : memref<256x128xbf16, #tpu.memory_space<vmem>>, vector<256x128xbf16>
    %cst_68 = arith.constant dense<0.000000e+00> : vector<2x128xf32>
    %164 = tpu.matmul %162, %163, %cst_68 {dimension_numbers = #tpu.dot_dimension_numbers<[1], [0], [0], [1], [0, 0, 1, 1], [], []>} : vector<2x256xbf16>, vector<256x128xbf16>, vector<2x128xf32> -> vector<2x128xf32>
    %c0_69 = arith.constant 0 : index
    %c0_70 = arith.constant 0 : index
    %165 = vector.load %arg16[%c0_69, %c0_70] : memref<1x128xf32, #tpu.memory_space<vmem>>, vector<1x128xf32>
    %166 = vector.broadcast %165 : vector<1x128xf32> to vector<2x128xf32>
    %167 = arith.addf %164, %166 : vector<2x128xf32>
    %168 = tpu.iota {dimensions = array<i32: 1>} : vector<1x128xi32>
    %c64_i32_71 = arith.constant 64 : i32
    %169 = vector.broadcast %c64_i32_71 : i32 to vector<1x128xi32>
    %170 = arith.cmpi slt, %168, %169 : vector<1x128xi32>
    %171 = arith.mulf %167, %167 : vector<2x128xf32>
    %cst_72 = arith.constant 0.000000e+00 : f32
    %172 = vector.shape_cast %170 : vector<1x128xi1> to vector<1x128xi1>
    %173 = vector.broadcast %172 : vector<1x128xi1> to vector<2x128xi1>
    %174 = vector.broadcast %cst_72 : f32 to vector<2x128xf32>
    %175 = arith.select %173, %171, %174 : vector<2x128xi1>, vector<2x128xf32>
    %cst_73 = arith.constant dense<0.000000e+00> : vector<2xf32>
    %176 = vector.multi_reduction <add>, %175, %cst_73 [1] : vector<2x128xf32> to vector<2xf32>
    %177 = vector.shape_cast %176 : vector<2xf32> to vector<2x1xf32>
    %cst_74 = arith.constant 0.000000e+00 : f32
    %178 = vector.shape_cast %170 : vector<1x128xi1> to vector<1x128xi1>
    %179 = vector.broadcast %178 : vector<1x128xi1> to vector<2x128xi1>
    %180 = vector.broadcast %cst_74 : f32 to vector<2x128xf32>
    %181 = arith.select %179, %180, %171 : vector<2x128xi1>, vector<2x128xf32>
    %cst_75 = arith.constant dense<0.000000e+00> : vector<2xf32>
    %182 = vector.multi_reduction <add>, %181, %cst_75 [1] : vector<2x128xf32> to vector<2xf32>
    %183 = vector.shape_cast %182 : vector<2xf32> to vector<2x1xf32>
    %cst_76 = arith.constant 1.000000e-24 : f32
    %184 = vector.broadcast %cst_76 : f32 to vector<2x1xf32>
    %185 = arith.maximumf %177, %184 : vector<2x1xf32>
    %186 = math.rsqrt %185 : vector<2x1xf32>
    %cst_77 = arith.constant 1.000000e-24 : f32
    %187 = vector.broadcast %cst_77 : f32 to vector<2x1xf32>
    %188 = arith.maximumf %183, %187 : vector<2x1xf32>
    %189 = math.rsqrt %188 : vector<2x1xf32>
    %190 = vector.shape_cast %170 : vector<1x128xi1> to vector<1x128xi1>
    %191 = vector.broadcast %190 : vector<1x128xi1> to vector<2x128xi1>
    %192 = vector.shape_cast %186 : vector<2x1xf32> to vector<2x1xf32>
    %193 = vector.broadcast %192 : vector<2x1xf32> to vector<2x128xf32>
    %194 = vector.shape_cast %189 : vector<2x1xf32> to vector<2x1xf32>
    %195 = vector.broadcast %194 : vector<2x1xf32> to vector<2x128xf32>
    %196 = arith.select %191, %193, %195 : vector<2x128xi1>, vector<2x128xf32>
    %197 = arith.mulf %167, %196 : vector<2x128xf32>
    %c0_78 = arith.constant 0 : index
    %c0_79 = arith.constant 0 : index
    %198 = vector.load %arg26[%c0_78, %c0_79] : memref<2x128xf32, #tpu.memory_space<vmem>>, vector<2x128xf32>
    tpu.vector_store %arg26[%c0_78, %c0_79], %197 {strides = array<i32>} : memref<2x128xf32, #tpu.memory_space<vmem>>, vector<2x128xf32>,
    %c0_80 = arith.constant 0 : index
    %c0_81 = arith.constant 0 : index
    %199 = vector.load %arg2[%c0_80, %c0_81] : memref<2x4xf32, #tpu.memory_space<vmem>>, vector<2x4xf32>
    %200 = arith.truncf %199 : vector<2x4xf32> to vector<2x4xbf16>
    %c0_82 = arith.constant 0 : index
    %c0_83 = arith.constant 0 : index
    %201 = vector.load %arg17[%c0_82, %c0_83] : memref<4x32xbf16, #tpu.memory_space<vmem>>, vector<4x32xbf16>
    %cst_84 = arith.constant dense<0.000000e+00> : vector<2x32xf32>
    %202 = tpu.matmul %200, %201, %cst_84 {dimension_numbers = #tpu.dot_dimension_numbers<[1], [0], [0], [1], [0, 0, 1, 1], [], []>} : vector<2x4xbf16>, vector<4x32xbf16>, vector<2x32xf32> -> vector<2x32xf32>
    %c0_85 = arith.constant 0 : index
    %c0_86 = arith.constant 0 : index
    %203 = vector.load %arg18[%c0_85, %c0_86] : memref<1x32xf32, #tpu.memory_space<vmem>>, vector<1x32xf32>
    %204 = vector.broadcast %203 : vector<1x32xf32> to vector<2x32xf32>
    %205 = arith.addf %202, %204 : vector<2x32xf32>
    %cst_87 = arith.constant 0.000000e+00 : f32
    %206 = vector.broadcast %cst_87 : f32 to vector<2x32xf32>
    %207 = arith.maximumf %205, %206 : vector<2x32xf32>
    %208 = arith.truncf %207 : vector<2x32xf32> to vector<2x32xbf16>
    %c0_88 = arith.constant 0 : index
    %c0_89 = arith.constant 0 : index
    %209 = vector.load %arg19[%c0_88, %c0_89] : memref<32x32xbf16, #tpu.memory_space<vmem>>, vector<32x32xbf16>
    %cst_90 = arith.constant dense<0.000000e+00> : vector<2x32xf32>
    %210 = tpu.matmul %208, %209, %cst_90 {dimension_numbers = #tpu.dot_dimension_numbers<[1], [0], [0], [1], [0, 0, 1, 1], [], []>} : vector<2x32xbf16>, vector<32x32xbf16>, vector<2x32xf32> -> vector<2x32xf32>
    %c0_91 = arith.constant 0 : index
    %c0_92 = arith.constant 0 : index
    %211 = vector.load %arg20[%c0_91, %c0_92] : memref<1x32xf32, #tpu.memory_space<vmem>>, vector<1x32xf32>
    %212 = vector.broadcast %211 : vector<1x32xf32> to vector<2x32xf32>
    %213 = arith.addf %210, %212 : vector<2x32xf32>
    %cst_93 = arith.constant 0.000000e+00 : f32
    %214 = vector.broadcast %cst_93 : f32 to vector<2x32xf32>
    %215 = arith.maximumf %213, %214 : vector<2x32xf32>
    %216 = arith.truncf %197 : vector<2x128xf32> to vector<2x128xbf16>
    %c0_94 = arith.constant 0 : index
    %c0_95 = arith.constant 0 : index
    %217 = vector.load %arg21[%c0_94, %c0_95] : memref<128x128xbf16, #tpu.memory_space<vmem>>, vector<128x128xbf16>
    %cst_96 = arith.constant dense<0.000000e+00> : vector<2x128xf32>
    %218 = tpu.matmul %216, %217, %cst_96 {dimension_numbers = #tpu.dot_dimension_numbers<[1], [0], [0], [1], [0, 0, 1, 1], [], []>} : vector<2x128xbf16>, vector<128x128xbf16>, vector<2x128xf32> -> vector<2x128xf32>
    %219 = arith.truncf %215 : vector<2x32xf32> to vector<2x32xbf16>
    %c0_97 = arith.constant 0 : index
    %c0_98 = arith.constant 0 : index
    %220 = vector.load %arg22[%c0_97, %c0_98] : memref<32x128xbf16, #tpu.memory_space<vmem>>, vector<32x128xbf16>
    %cst_99 = arith.constant dense<0.000000e+00> : vector<2x128xf32>
    %221 = tpu.matmul %219, %220, %cst_99 {dimension_numbers = #tpu.dot_dimension_numbers<[1], [0], [0], [1], [0, 0, 1, 1], [], []>} : vector<2x32xbf16>, vector<32x128xbf16>, vector<2x128xf32> -> vector<2x128xf32>
    %222 = arith.addf %218, %221 : vector<2x128xf32>
    %c0_100 = arith.constant 0 : index
    %c0_101 = arith.constant 0 : index
    %223 = vector.load %arg23[%c0_100, %c0_101] : memref<1x128xf32, #tpu.memory_space<vmem>>, vector<1x128xf32>
    %224 = vector.broadcast %223 : vector<1x128xf32> to vector<2x128xf32>
    %225 = arith.addf %222, %224 : vector<2x128xf32>
    %cst_102 = arith.constant 0.000000e+00 : f32
    %226 = vector.broadcast %cst_102 : f32 to vector<2x128xf32>
    %227 = arith.maximumf %225, %226 : vector<2x128xf32>
    %228 = arith.truncf %227 : vector<2x128xf32> to vector<2x128xbf16>
    %c0_103 = arith.constant 0 : index
    %c0_104 = arith.constant 0 : index
    %229 = vector.load %arg24[%c0_103, %c0_104] : memref<128x128xbf16, #tpu.memory_space<vmem>>, vector<128x128xbf16>
    %cst_105 = arith.constant dense<0.000000e+00> : vector<2x128xf32>
    %230 = tpu.matmul %228, %229, %cst_105 {dimension_numbers = #tpu.dot_dimension_numbers<[1], [0], [0], [1], [0, 0, 1, 1], [], []>} : vector<2x128xbf16>, vector<128x128xbf16>, vector<2x128xf32> -> vector<2x128xf32>
    %c0_106 = arith.constant 0 : index
    %c0_107 = arith.constant 0 : index
    %231 = vector.load %arg25[%c0_106, %c0_107] : memref<1x128xf32, #tpu.memory_space<vmem>>, vector<1x128xf32>
    %232 = vector.broadcast %231 : vector<1x128xf32> to vector<2x128xf32>
    %233 = arith.addf %230, %232 : vector<2x128xf32>
    %c0_108 = arith.constant 0 : index
    %c0_109 = arith.constant 0 : index
    %234 = vector.load %arg27[%c0_108, %c0_109] : memref<2x128xf32, #tpu.memory_space<vmem>>, vector<2x128xf32>
    tpu.vector_store %arg27[%c0_108, %c0_109], %233 {strides = array<i32>} : memref<2x128xf32, #tpu.memory_space<vmem>>, vector<2x128xf32>,
    return
  }
  func.func @transform_0(%arg0: i32) -> (i32, i32) {
    %c0_i32 = arith.constant 0 : i32
    %c0_i32_0 = arith.constant 0 : i32
    return %arg0, %c0_i32 : i32, i32
  }
  func.func @transform_1(%arg0: i32) -> (i32, i32) {
    %c0_i32 = arith.constant 0 : i32
    %c0_i32_0 = arith.constant 0 : i32
    return %arg0, %c0_i32 : i32, i32
  }
  func.func @transform_2(%arg0: i32) -> (i32, i32) {
    %c0_i32 = arith.constant 0 : i32
    %c0_i32_0 = arith.constant 0 : i32
    %c0_i32_1 = arith.constant 0 : i32
    return %c0_i32, %c0_i32_0 : i32, i32
  }
  func.func @transform_3(%arg0: i32) -> (i32, i32) {
    %c0_i32 = arith.constant 0 : i32
    %c0_i32_0 = arith.constant 0 : i32
    %c0_i32_1 = arith.constant 0 : i32
    return %c0_i32, %c0_i32_0 : i32, i32
  }
  func.func @transform_4(%arg0: i32) -> (i32, i32) {
    %c0_i32 = arith.constant 0 : i32
    %c0_i32_0 = arith.constant 0 : i32
    %c0_i32_1 = arith.constant 0 : i32
    return %c0_i32, %c0_i32_0 : i32, i32
  }
  func.func @transform_5(%arg0: i32) -> (i32, i32) {
    %c0_i32 = arith.constant 0 : i32
    %c0_i32_0 = arith.constant 0 : i32
    %c0_i32_1 = arith.constant 0 : i32
    return %c0_i32, %c0_i32_0 : i32, i32
  }
  func.func @transform_6(%arg0: i32) -> (i32, i32) {
    %c0_i32 = arith.constant 0 : i32
    %c0_i32_0 = arith.constant 0 : i32
    %c0_i32_1 = arith.constant 0 : i32
    return %c0_i32, %c0_i32_0 : i32, i32
  }
  func.func @transform_7(%arg0: i32) -> (i32, i32) {
    %c0_i32 = arith.constant 0 : i32
    %c0_i32_0 = arith.constant 0 : i32
    %c0_i32_1 = arith.constant 0 : i32
    return %c0_i32, %c0_i32_0 : i32, i32
  }
  func.func @transform_8(%arg0: i32) -> (i32, i32) {
    %c0_i32 = arith.constant 0 : i32
    %c0_i32_0 = arith.constant 0 : i32
    %c0_i32_1 = arith.constant 0 : i32
    return %c0_i32, %c0_i32_0 : i32, i32
  }
  func.func @transform_9(%arg0: i32) -> (i32, i32) {
    %c0_i32 = arith.constant 0 : i32
    %c0_i32_0 = arith.constant 0 : i32
    %c0_i32_1 = arith.constant 0 : i32
    return %c0_i32, %c0_i32_0 : i32, i32
  }
  func.func @transform_10(%arg0: i32) -> (i32, i32) {
    %c0_i32 = arith.constant 0 : i32
    %c0_i32_0 = arith.constant 0 : i32
    %c0_i32_1 = arith.constant 0 : i32
    return %c0_i32, %c0_i32_0 : i32, i32
  }
  func.func @transform_11(%arg0: i32) -> (i32, i32) {
    %c0_i32 = arith.constant 0 : i32
    %c0_i32_0 = arith.constant 0 : i32
    %c0_i32_1 = arith.constant 0 : i32
    return %c0_i32, %c0_i32_0 : i32, i32
  }
  func.func @transform_12(%arg0: i32) -> (i32, i32) {
    %c0_i32 = arith.constant 0 : i32
    %c0_i32_0 = arith.constant 0 : i32
    %c0_i32_1 = arith.constant 0 : i32
    return %c0_i32, %c0_i32_0 : i32, i32
  }
  func.func @transform_13(%arg0: i32) -> (i32, i32) {
    %c0_i32 = arith.constant 0 : i32
    %c0_i32_0 = arith.constant 0 : i32
    %c0_i32_1 = arith.constant 0 : i32
    return %c0_i32, %c0_i32_0 : i32, i32
  }
  func.func @transform_14(%arg0: i32) -> (i32, i32) {
    %c0_i32 = arith.constant 0 : i32
    %c0_i32_0 = arith.constant 0 : i32
    %c0_i32_1 = arith.constant 0 : i32
    return %c0_i32, %c0_i32_0 : i32, i32
  }
  func.func @transform_15(%arg0: i32) -> (i32, i32) {
    %c0_i32 = arith.constant 0 : i32
    %c0_i32_0 = arith.constant 0 : i32
    %c0_i32_1 = arith.constant 0 : i32
    return %c0_i32, %c0_i32_0 : i32, i32
  }
  func.func @transform_16(%arg0: i32) -> (i32, i32) {
    %c0_i32 = arith.constant 0 : i32
    %c0_i32_0 = arith.constant 0 : i32
    %c0_i32_1 = arith.constant 0 : i32
    return %c0_i32, %c0_i32_0 : i32, i32
  }
  func.func @transform_17(%arg0: i32) -> (i32, i32) {
    %c0_i32 = arith.constant 0 : i32
    %c0_i32_0 = arith.constant 0 : i32
    %c0_i32_1 = arith.constant 0 : i32
    return %c0_i32, %c0_i32_0 : i32, i32
  }
  func.func @transform_18(%arg0: i32) -> (i32, i32) {
    %c0_i32 = arith.constant 0 : i32
    %c0_i32_0 = arith.constant 0 : i32
    %c0_i32_1 = arith.constant 0 : i32
    return %c0_i32, %c0_i32_0 : i32, i32
  }
  func.func @transform_19(%arg0: i32) -> (i32, i32) {
    %c0_i32 = arith.constant 0 : i32
    %c0_i32_0 = arith.constant 0 : i32
    %c0_i32_1 = arith.constant 0 : i32
    return %c0_i32, %c0_i32_0 : i32, i32
  }
  func.func @transform_20(%arg0: i32) -> (i32, i32) {
    %c0_i32 = arith.constant 0 : i32
    %c0_i32_0 = arith.constant 0 : i32
    %c0_i32_1 = arith.constant 0 : i32
    return %c0_i32, %c0_i32_0 : i32, i32
  }
  func.func @transform_21(%arg0: i32) -> (i32, i32) {
    %c0_i32 = arith.constant 0 : i32
    %c0_i32_0 = arith.constant 0 : i32
    %c0_i32_1 = arith.constant 0 : i32
    return %c0_i32, %c0_i32_0 : i32, i32
  }
  func.func @transform_22(%arg0: i32) -> (i32, i32) {
    %c0_i32 = arith.constant 0 : i32
    %c0_i32_0 = arith.constant 0 : i32
    %c0_i32_1 = arith.constant 0 : i32
    return %c0_i32, %c0_i32_0 : i32, i32
  }
  func.func @transform_23(%arg0: i32) -> (i32, i32) {
    %c0_i32 = arith.constant 0 : i32
    %c0_i32_0 = arith.constant 0 : i32
    %c0_i32_1 = arith.constant 0 : i32
    return %c0_i32, %c0_i32_0 : i32, i32
  }
  func.func @transform_24(%arg0: i32) -> (i32, i32) {
    %c0_i32 = arith.constant 0 : i32
    %c0_i32_0 = arith.constant 0 : i32
    %c0_i32_1 = arith.constant 0 : i32
    return %c0_i32, %c0_i32_0 : i32, i32
  }
  func.func @transform_25(%arg0: i32) -> (i32, i32) {
    %c0_i32 = arith.constant 0 : i32
    %c0_i32_0 = arith.constant 0 : i32
    return %arg0, %c0_i32 : i32, i32
  }
  func.func @transform_26(%arg0: i32) -> (i32, i32) {
    %c0_i32 = arith.constant 0 : i32
    %c0_i32_0 = arith.constant 0 : i32
    return %arg0, %c0_i32 : i32, i32
  }
}

</mosaic_0001>

<llo_original>
// kernel: branch_contrastive_bp_forward.1
$region0: #{branch_contrastive_bp_forward.1}
  #allocation0 [shape = 'u32[]', space=smem, size = 0x4, offset = 0x4, fixed_abs, tag = 'smem constant byte address 0x4 - core index']
  #allocation1 [shape = 'u32[144,128]{1,0:T(1,128)}', space=vmem, size = 0x12000, scoped, tag = 'internal scratch']
  #allocation2 [shape = 'f32[2,256]{1,0:T(2,128)}', space=vmem, size = 0x800, scoped, tag = 'scratch operand']
  %s0 = inlined_call_operand.vmem [shape: f32[128,8], index: 0, kind: input, shape index: {}]
  %s1 = inlined_call_operand.vmem [shape: f32[2,4], index: 1, kind: input, shape index: {}]
  %s2 = inlined_call_operand.vmem [shape: bf16[16,32], index: 2, kind: input, shape index: {}]
  %s3 = inlined_call_operand.vmem [shape: f32[1,32], index: 3, kind: input, shape index: {}]
  %s4 = inlined_call_operand.vmem [shape: f32[1,32], index: 4, kind: input, shape index: {}]
  %s5 = inlined_call_operand.vmem [shape: bf16[160,64], index: 5, kind: input, shape index: {}]
  %s6 = inlined_call_operand.vmem [shape: f32[1,64], index: 6, kind: input, shape index: {}]
  %s7 = inlined_call_operand.vmem [shape: f32[1,64], index: 7, kind: input, shape index: {}]
  %s8 = inlined_call_operand.vmem [shape: bf16[192,128], index: 8, kind: input, shape index: {}]
  %s9 = inlined_call_operand.vmem [shape: f32[1,128], index: 9, kind: input, shape index: {}]
  %s10 = inlined_call_operand.vmem [shape: f32[1,128], index: 10, kind: input, shape index: {}]
  %s11 = inlined_call_operand.vmem [shape: bf16[384,256], index: 11, kind: input, shape index: {}]
  %s12 = inlined_call_operand.vmem [shape: f32[1,256], index: 12, kind: input, shape index: {}]
  %s13 = inlined_call_operand.vmem [shape: f32[1,256], index: 13, kind: input, shape index: {}]
  %s14 = inlined_call_operand.vmem [shape: bf16[256,128], index: 14, kind: input, shape index: {}]
  %s15 = inlined_call_operand.vmem [shape: f32[1,128], index: 15, kind: input, shape index: {}]
  %s16 = inlined_call_operand.vmem [shape: bf16[4,32], index: 16, kind: input, shape index: {}]
  %s17 = inlined_call_operand.vmem [shape: f32[1,32], index: 17, kind: input, shape index: {}]
  %s18 = inlined_call_operand.vmem [shape: bf16[32,32], index: 18, kind: input, shape index: {}]
  %s19 = inlined_call_operand.vmem [shape: f32[1,32], index: 19, kind: input, shape index: {}]
  %s20 = inlined_call_operand.vmem [shape: bf16[128,128], index: 20, kind: input, shape index: {}]
  %s21 = inlined_call_operand.vmem [shape: bf16[32,128], index: 21, kind: input, shape index: {}]
  %s22 = inlined_call_operand.vmem [shape: f32[1,128], index: 22, kind: input, shape index: {}]
  %s23 = inlined_call_operand.vmem [shape: bf16[128,128], index: 23, kind: input, shape index: {}]
  %s24 = inlined_call_operand.vmem [shape: f32[1,128], index: 24, kind: input, shape index: {}]
  %s25 = inlined_call_operand.vmem [shape: f32[2,128], index: 25, kind: output, shape index: {0}]
  %s26 = inlined_call_operand.hbm [shape: f32[2,128], index: 26, kind: output, shape index: {1}]
  %27 = xla_tuple %s25, %s26
  %s28 = sld [smem:[#allocation0]]
  $region118: #{branch_contrastive_bp_forward.1} parent=0
    _
  %s30 = ssub.s32 1, %s28
  %s31 = scalar_select 0, %s30, %s28
  $region1: #{branch_contrastive_bp_forward.1} parent=0
    #allocation3 [shape = 'u8[1024]{0}', space=vmem, size = 0x400, scoped, tag = 'output window, operand 1, single buffered']
    #allocation4 [shape = 's32[1]{0}', space=sflag, size = 0x4, scoped, tag = 'scoped memory for branch_contrastive_bp_forward.1']
    %32 = vsyncpa [#allocation4], 0
    // Predicated region
    $region2: #{branch_contrastive_bp_forward.1} parent=1 // pred_check
      _
    $region3: #{branch_contrastive_bp_forward.1} parent=1 // pred_check_branch
      %34 = sbr.rel (0) target = $region5
    $region4: #{branch_contrastive_bp_forward.1} parent=1 // pred_region
      _
    $region5: #{branch_contrastive_bp_forward.1} parent=1 // pred_fallthru
      _
    // Predicated region
    $region6: #{branch_contrastive_bp_forward.1} parent=1 // pred_check
      _
    $region7: #{branch_contrastive_bp_forward.1} parent=1 // pred_check_branch
      %36 = sbr.rel (0) target = $region9
    $region8: #{branch_contrastive_bp_forward.1} parent=1 // pred_region
      _
    $region9: #{branch_contrastive_bp_forward.1} parent=1 // pred_fallthru
      _
    // Predicated region
    $region10: #{branch_contrastive_bp_forward.1} parent=1 // pred_check
      _
    $region11: #{branch_contrastive_bp_forward.1} parent=1 // pred_check_branch
      %38 = sbr.rel (0) target = $region13
    $region12: #{branch_contrastive_bp_forward.1} parent=1 // pred_region
      _
    $region13: #{branch_contrastive_bp_forward.1} parent=1 // pred_fallthru
      _
    // Predicated region
    $region14: #{branch_contrastive_bp_forward.1} parent=1 // pred_check
      _
    $region15: #{branch_contrastive_bp_forward.1} parent=1 // pred_check_branch
      %40 = sbr.rel (0) target = $region17
    $region16: #{branch_contrastive_bp_forward.1} parent=1 // pred_region
      _
    $region17: #{branch_contrastive_bp_forward.1} parent=1 // pred_fallthru
      _
    // Predicated region
    $region18: #{branch_contrastive_bp_forward.1} parent=1 // pred_check
      _
    $region19: #{branch_contrastive_bp_forward.1} parent=1 // pred_check_branch
      %42 = sbr.rel (0) target = $region21
    $region20: #{branch_contrastive_bp_forward.1} parent=1 // pred_region
      _
    $region21: #{branch_contrastive_bp_forward.1} parent=1 // pred_fallthru
      _
    // Predicated region
    $region22: #{branch_contrastive_bp_forward.1} parent=1 // pred_check
      _
    $region23: #{branch_contrastive_bp_forward.1} parent=1 // pred_check_branch
      %44 = sbr.rel (0) target = $region25
    $region24: #{branch_contrastive_bp_forward.1} parent=1 // pred_region
      _
    $region25: #{branch_contrastive_bp_forward.1} parent=1 // pred_fallthru
      _
    // Predicated region
    $region26: #{branch_contrastive_bp_forward.1} parent=1 // pred_check
      _
    $region27: #{branch_contrastive_bp_forward.1} parent=1 // pred_check_branch
      %46 = sbr.rel (0) target = $region29
    $region28: #{branch_contrastive_bp_forward.1} parent=1 // pred_region
      _
    $region29: #{branch_contrastive_bp_forward.1} parent=1 // pred_fallthru
      _
    // Predicated region
    $region30: #{branch_contrastive_bp_forward.1} parent=1 // pred_check
      _
    $region31: #{branch_contrastive_bp_forward.1} parent=1 // pred_check_branch
      %48 = sbr.rel (0) target = $region33
    $region32: #{branch_contrastive_bp_forward.1} parent=1 // pred_region
      _
    $region33: #{branch_contrastive_bp_forward.1} parent=1 // pred_fallthru
      _
    // Predicated region
    $region34: #{branch_contrastive_bp_forward.1} parent=1 // pred_check
      _
    $region35: #{branch_contrastive_bp_forward.1} parent=1 // pred_check_branch
      %50 = sbr.rel (0) target = $region37
    $region36: #{branch_contrastive_bp_forward.1} parent=1 // pred_region
      _
    $region37: #{branch_contrastive_bp_forward.1} parent=1 // pred_fallthru
      _
    // Predicated region
    $region38: #{branch_contrastive_bp_forward.1} parent=1 // pred_check
      _
    $region39: #{branch_contrastive_bp_forward.1} parent=1 // pred_check_branch
      %52 = sbr.rel (0) target = $region41
    $region40: #{branch_contrastive_bp_forward.1} parent=1 // pred_region
      _
    $region41: #{branch_contrastive_bp_forward.1} parent=1 // pred_fallthru
      _
    // Predicated region
    $region42: #{branch_contrastive_bp_forward.1} parent=1 // pred_check
      _
    $region43: #{branch_contrastive_bp_forward.1} parent=1 // pred_check_branch
      %54 = sbr.rel (0) target = $region45
    $region44: #{branch_contrastive_bp_forward.1} parent=1 // pred_region
      _
    $region45: #{branch_contrastive_bp_forward.1} parent=1 // pred_fallthru
      _
    // Predicated region
    $region46: #{branch_contrastive_bp_forward.1} parent=1 // pred_check
      _
    $region47: #{branch_contrastive_bp_forward.1} parent=1 // pred_check_branch
      %56 = sbr.rel (0) target = $region49
    $region48: #{branch_contrastive_bp_forward.1} parent=1 // pred_region
      _
    $region49: #{branch_contrastive_bp_forward.1} parent=1 // pred_fallthru
      _
    // Predicated region
    $region50: #{branch_contrastive_bp_forward.1} parent=1 // pred_check
      _
    $region51: #{branch_contrastive_bp_forward.1} parent=1 // pred_check_branch
      %58 = sbr.rel (0) target = $region53
    $region52: #{branch_contrastive_bp_forward.1} parent=1 // pred_region
      _
    $region53: #{branch_contrastive_bp_forward.1} parent=1 // pred_fallthru
      _
    // Predicated region
    $region54: #{branch_contrastive_bp_forward.1} parent=1 // pred_check
      _
    $region55: #{branch_contrastive_bp_forward.1} parent=1 // pred_check_branch
      %60 = sbr.rel (0) target = $region57
    $region56: #{branch_contrastive_bp_forward.1} parent=1 // pred_region
      _
    $region57: #{branch_contrastive_bp_forward.1} parent=1 // pred_fallthru
      _
    // Predicated region
    $region58: #{branch_contrastive_bp_forward.1} parent=1 // pred_check
      _
    $region59: #{branch_contrastive_bp_forward.1} parent=1 // pred_check_branch
      %62 = sbr.rel (0) target = $region61
    $region60: #{branch_contrastive_bp_forward.1} parent=1 // pred_region
      _
    $region61: #{branch_contrastive_bp_forward.1} parent=1 // pred_fallthru
      _
    // Predicated region
    $region62: #{branch_contrastive_bp_forward.1} parent=1 // pred_check
      _
    $region63: #{branch_contrastive_bp_forward.1} parent=1 // pred_check_branch
      %64 = sbr.rel (0) target = $region65
    $region64: #{branch_contrastive_bp_forward.1} parent=1 // pred_region
      _
    $region65: #{branch_contrastive_bp_forward.1} parent=1 // pred_fallthru
      _
    // Predicated region
    $region66: #{branch_contrastive_bp_forward.1} parent=1 // pred_check
      _
    $region67: #{branch_contrastive_bp_forward.1} parent=1 // pred_check_branch
      %66 = sbr.rel (0) target = $region69
    $region68: #{branch_contrastive_bp_forward.1} parent=1 // pred_region
      _
    $region69: #{branch_contrastive_bp_forward.1} parent=1 // pred_fallthru
      _
    // Predicated region
    $region70: #{branch_contrastive_bp_forward.1} parent=1 // pred_check
      _
    $region71: #{branch_contrastive_bp_forward.1} parent=1 // pred_check_branch
      %68 = sbr.rel (0) target = $region73
    $region72: #{branch_contrastive_bp_forward.1} parent=1 // pred_region
      _
    $region73: #{branch_contrastive_bp_forward.1} parent=1 // pred_fallthru
      _
    // Predicated region
    $region74: #{branch_contrastive_bp_forward.1} parent=1 // pred_check
      _
    $region75: #{branch_contrastive_bp_forward.1} parent=1 // pred_check_branch
      %70 = sbr.rel (0) target = $region77
    $region76: #{branch_contrastive_bp_forward.1} parent=1 // pred_region
      _
    $region77: #{branch_contrastive_bp_forward.1} parent=1 // pred_fallthru
      _
    // Predicated region
    $region78: #{branch_contrastive_bp_forward.1} parent=1 // pred_check
      _
    $region79: #{branch_contrastive_bp_forward.1} parent=1 // pred_check_branch
      %72 = sbr.rel (0) target = $region81
    $region80: #{branch_contrastive_bp_forward.1} parent=1 // pred_region
      _
    $region81: #{branch_contrastive_bp_forward.1} parent=1 // pred_fallthru
      _
    // Predicated region
    $region82: #{branch_contrastive_bp_forward.1} parent=1 // pred_check
      _
    $region83: #{branch_contrastive_bp_forward.1} parent=1 // pred_check_branch
      %74 = sbr.rel (0) target = $region85
    $region84: #{branch_contrastive_bp_forward.1} parent=1 // pred_region
      _
    $region85: #{branch_contrastive_bp_forward.1} parent=1 // pred_fallthru
      _
    // Predicated region
    $region86: #{branch_contrastive_bp_forward.1} parent=1 // pred_check
      _
    $region87: #{branch_contrastive_bp_forward.1} parent=1 // pred_check_branch
      %76 = sbr.rel (0) target = $region89
    $region88: #{branch_contrastive_bp_forward.1} parent=1 // pred_region
      _
    $region89: #{branch_contrastive_bp_forward.1} parent=1 // pred_fallthru
      _
    // Predicated region
    $region90: #{branch_contrastive_bp_forward.1} parent=1 // pred_check
      _
    $region91: #{branch_contrastive_bp_forward.1} parent=1 // pred_check_branch
      %78 = sbr.rel (0) target = $region93
    $region92: #{branch_contrastive_bp_forward.1} parent=1 // pred_region
      _
    $region93: #{branch_contrastive_bp_forward.1} parent=1 // pred_fallthru
      _
    // Predicated region
    $region94: #{branch_contrastive_bp_forward.1} parent=1 // pred_check
      _
    $region95: #{branch_contrastive_bp_forward.1} parent=1 // pred_check_branch
      %80 = sbr.rel (0) target = $region97
    $region96: #{branch_contrastive_bp_forward.1} parent=1 // pred_region
      _
    $region97: #{branch_contrastive_bp_forward.1} parent=1 // pred_fallthru
      _
    // Predicated region
    $region98: #{branch_contrastive_bp_forward.1} parent=1 // pred_check
      _
    $region99: #{branch_contrastive_bp_forward.1} parent=1 // pred_check_branch
      %82 = sbr.rel (0) target = $region101
    $region100: #{branch_contrastive_bp_forward.1} parent=1 // pred_region
      _
    $region101: #{branch_contrastive_bp_forward.1} parent=1 // pred_fallthru
      _
    %v84 = vlaneseq
    %v85 = vshrl.u32 %v84, 7
    %v86 = vadd.s32 %v85, 8
    %v87 = vadd.s32 %v85, 16
    %v88 = vadd.s32 %v85, 24
    %v89 = vadd.s32 %v85, 32
    %v90 = vadd.s32 %v85, 40
    %v91 = vadd.s32 %v85, 48
    %v92 = vadd.s32 %v85, 56
    %v93 = vadd.s32 %v85, 64
    %v94 = vadd.s32 %v85, 72
    %v95 = vadd.s32 %v85, 80
    %v96 = vadd.s32 %v85, 88
    %v97 = vadd.s32 %v85, 96
    %v98 = vadd.s32 %v85, 104
    %v99 = vadd.s32 %v85, 112
    %v100 = vadd.s32 %v85, 120
    %vm101 = vcmp.lt.s32.totalorder %v85, 0
    %v102 = vsub.s32 0, %v85
    %v103 = vsel %vm101, %v102, %v85
    %v104 = vshrl.u32 %v103, 6
    %v105 = vand.u32 %v103, 63
    %v106 = vsub.s32 0, %v105
    %v107 = vsel %vm101, %v106, %v105
    %vm108 = vcmp.lt.s32.totalorder %v86, 0
    %v109 = vsub.s32 0, %v86
    %v110 = vsel %vm108, %v109, %v86
    %v111 = vshrl.u32 %v110, 6
    %v112 = vand.u32 %v110, 63
    %v113 = vsub.s32 0, %v112
    %v114 = vsel %vm108, %v113, %v112
    %vm115 = vcmp.lt.s32.totalorder %v87, 0
    %v116 = vsub.s32 0, %v87
    %v117 = vsel %vm115, %v116, %v87
    %v118 = vshrl.u32 %v117, 6
    %v119 = vand.u32 %v117, 63
    %v120 = vsub.s32 0, %v119
    %v121 = vsel %vm115, %v120, %v119
    %vm122 = vcmp.lt.s32.totalorder %v88, 0
    %v123 = vsub.s32 0, %v88
    %v124 = vsel %vm122, %v123, %v88
    %v125 = vshrl.u32 %v124, 6
    %v126 = vand.u32 %v124, 63
    %v127 = vsub.s32 0, %v126
    %v128 = vsel %vm122, %v127, %v126
    %vm129 = vcmp.lt.s32.totalorder %v89, 0
    %v130 = vsub.s32 0, %v89
    %v131 = vsel %vm129, %v130, %v89
    %v132 = vshrl.u32 %v131, 6
    %v133 = vand.u32 %v131, 63
    %v134 = vsub.s32 0, %v133
    %v135 = vsel %vm129, %v134, %v133
    %vm136 = vcmp.lt.s32.totalorder %v90, 0
    %v137 = vsub.s32 0, %v90
    %v138 = vsel %vm136, %v137, %v90
    %v139 = vshrl.u32 %v138, 6
    %v140 = vand.u32 %v138, 63
    %v141 = vsub.s32 0, %v140
    %v142 = vsel %vm136, %v141, %v140
    %vm143 = vcmp.lt.s32.totalorder %v91, 0
    %v144 = vsub.s32 0, %v91
    %v145 = vsel %vm143, %v144, %v91
    %v146 = vshrl.u32 %v145, 6
    %v147 = vand.u32 %v145, 63
    %v148 = vsub.s32 0, %v147
    %v149 = vsel %vm143, %v148, %v147
    %vm150 = vcmp.lt.s32.totalorder %v92, 0
    %v151 = vsub.s32 0, %v92
    %v152 = vsel %vm150, %v151, %v92
    %v153 = vshrl.u32 %v152, 6
    %v154 = vand.u32 %v152, 63
    %v155 = vsub.s32 0, %v154
    %v156 = vsel %vm150, %v155, %v154
    %vm157 = vcmp.lt.s32.totalorder %v93, 0
    %v158 = vsub.s32 0, %v93
    %v159 = vsel %vm157, %v158, %v93
    %v160 = vshrl.u32 %v159, 6
    %v161 = vand.u32 %v159, 63
    %v162 = vsub.s32 0, %v161
    %v163 = vsel %vm157, %v162, %v161
    %vm164 = vcmp.lt.s32.totalorder %v94, 0
    %v165 = vsub.s32 0, %v94
    %v166 = vsel %vm164, %v165, %v94
    %v167 = vshrl.u32 %v166, 6
    %v168 = vand.u32 %v166, 63
    %v169 = vsub.s32 0, %v168
    %v170 = vsel %vm164, %v169, %v168
    %vm171 = vcmp.lt.s32.totalorder %v95, 0
    %v172 = vsub.s32 0, %v95
    %v173 = vsel %vm171, %v172, %v95
    %v174 = vshrl.u32 %v173, 6
    %v175 = vand.u32 %v173, 63
    %v176 = vsub.s32 0, %v175
    %v177 = vsel %vm171, %v176, %v175
    %vm178 = vcmp.lt.s32.totalorder %v96, 0
    %v179 = vsub.s32 0, %v96
    %v180 = vsel %vm178, %v179, %v96
    %v181 = vshrl.u32 %v180, 6
    %v182 = vand.u32 %v180, 63
    %v183 = vsub.s32 0, %v182
    %v184 = vsel %vm178, %v183, %v182
    %vm185 = vcmp.lt.s32.totalorder %v97, 0
    %v186 = vsub.s32 0, %v97
    %v187 = vsel %vm185, %v186, %v97
    %v188 = vshrl.u32 %v187, 6
    %v189 = vand.u32 %v187, 63
    %v190 = vsub.s32 0, %v189
    %v191 = vsel %vm185, %v190, %v189
    %vm192 = vcmp.lt.s32.totalorder %v98, 0
    %v193 = vsub.s32 0, %v98
    %v194 = vsel %vm192, %v193, %v98
    %v195 = vshrl.u32 %v194, 6
    %v196 = vand.u32 %v194, 63
    %v197 = vsub.s32 0, %v196
    %v198 = vsel %vm192, %v197, %v196
    %vm199 = vcmp.lt.s32.totalorder %v99, 0
    %v200 = vsub.s32 0, %v99
    %v201 = vsel %vm199, %v200, %v99
    %v202 = vshrl.u32 %v201, 6
    %v203 = vand.u32 %v201, 63
    %v204 = vsub.s32 0, %v203
    %v205 = vsel %vm199, %v204, %v203
    %vm206 = vcmp.lt.s32.totalorder %v100, 0
    %v207 = vsub.s32 0, %v100
    %v208 = vsel %vm206, %v207, %v100
    %v209 = vshrl.u32 %v208, 6
    %v210 = vand.u32 %v208, 63
    %v211 = vsub.s32 0, %v210
    %v212 = vsel %vm206, %v211, %v210
    %vm213 = vcmp.ne.s32.totalorder %v107, 0
    %vm214 = vcmp.ne.s32.totalorder %v114, 0
    %vm215 = vcmp.ne.s32.totalorder %v121, 0
    %vm216 = vcmp.ne.s32.totalorder %v128, 0
    %vm217 = vcmp.ne.s32.totalorder %v135, 0
    %vm218 = vcmp.ne.s32.totalorder %v142, 0
    %vm219 = vcmp.ne.s32.totalorder %v149, 0
    %vm220 = vcmp.ne.s32.totalorder %v156, 0
    %vm221 = vcmp.ne.s32.totalorder %v163, 0
    %vm222 = vcmp.ne.s32.totalorder %v170, 0
    %vm223 = vcmp.ne.s32.totalorder %v177, 0
    %vm224 = vcmp.ne.s32.totalorder %v184, 0
    %vm225 = vcmp.ne.s32.totalorder %v191, 0
    %vm226 = vcmp.ne.s32.totalorder %v198, 0
    %vm227 = vcmp.ne.s32.totalorder %v205, 0
    %vm228 = vcmp.ne.s32.totalorder %v212, 0
    %vm229 = vcmp.lt.s32.totalorder %v107, 0
    %vm230 = vcmp.lt.s32.totalorder %v114, 0
    %vm231 = vcmp.lt.s32.totalorder %v121, 0
    %vm232 = vcmp.lt.s32.totalorder %v128, 0
    %vm233 = vcmp.lt.s32.totalorder %v135, 0
    %vm234 = vcmp.lt.s32.totalorder %v142, 0
    %vm235 = vcmp.lt.s32.totalorder %v149, 0
    %vm236 = vcmp.lt.s32.totalorder %v156, 0
    %vm237 = vcmp.lt.s32.totalorder %v163, 0
    %vm238 = vcmp.lt.s32.totalorder %v170, 0
    %vm239 = vcmp.lt.s32.totalorder %v177, 0
    %vm240 = vcmp.lt.s32.totalorder %v184, 0
    %vm241 = vcmp.lt.s32.totalorder %v191, 0
    %vm242 = vcmp.lt.s32.totalorder %v198, 0
    %vm243 = vcmp.lt.s32.totalorder %v205, 0
    %vm244 = vcmp.lt.s32.totalorder %v212, 0
    %vm245 = vmand %vm229, %vm213
    %vm246 = vmand %vm230, %vm214
    %vm247 = vmand %vm231, %vm215
    %vm248 = vmand %vm232, %vm216
    %vm249 = vmand %vm233, %vm217
    %vm250 = vmand %vm234, %vm218
    %vm251 = vmand %vm235, %vm219
    %vm252 = vmand %vm236, %vm220
    %vm253 = vmand %vm237, %vm221
    %vm254 = vmand %vm238, %vm222
    %vm255 = vmand %vm239, %vm223
    %vm256 = vmand %vm240, %vm224
    %vm257 = vmand %vm241, %vm225
    %vm258 = vmand %vm242, %vm226
    %vm259 = vmand %vm243, %vm227
    %vm260 = vmand %vm244, %vm228
    %v261 = vadd.s32 %v107, 64
    %v262 = vadd.s32 %v114, 64
    %v263 = vadd.s32 %v121, 64
    %v264 = vadd.s32 %v128, 64
    %v265 = vadd.s32 %v135, 64
    %v266 = vadd.s32 %v142, 64
    %v267 = vadd.s32 %v149, 64
    %v268 = vadd.s32 %v156, 64
    %v269 = vadd.s32 %v163, 64
    %v270 = vadd.s32 %v170, 64
    %v271 = vadd.s32 %v177, 64
    %v272 = vadd.s32 %v184, 64
    %v273 = vadd.s32 %v191, 64
    %v274 = vadd.s32 %v198, 64
    %v275 = vadd.s32 %v205, 64
    %v276 = vadd.s32 %v212, 64
    %v277 = vsel %vm245, %v261, %v107
    %v278 = vsel %vm246, %v262, %v114
    %v279 = vsel %vm247, %v263, %v121
    %v280 = vsel %vm248, %v264, %v128
    %v281 = vsel %vm249, %v265, %v135
    %v282 = vsel %vm250, %v266, %v142
    %v283 = vsel %vm251, %v267, %v149
    %v284 = vsel %vm252, %v268, %v156
    %v285 = vsel %vm253, %v269, %v163
    %v286 = vsel %vm254, %v270, %v170
    %v287 = vsel %vm255, %v271, %v177
    %v288 = vsel %vm256, %v272, %v184
    %v289 = vsel %vm257, %v273, %v191
    %v290 = vsel %vm258, %v274, %v198
    %v291 = vsel %vm259, %v275, %v205
    %v292 = vsel %vm260, %v276, %v212
    %v293 = vld [vmem:[%s0] sm:$0xff]
    %v294 = vld [vmem:[%s0 + $0x8] sm:$0xff]
    %v295 = vld [vmem:[%s0 + $0x10] sm:$0xff]
    %v296 = vld [vmem:[%s0 + $0x18] sm:$0xff]
    %v297 = vld [vmem:[%s0 + $0x20] sm:$0xff]
    %v298 = vld [vmem:[%s0 + $0x28] sm:$0xff]
    %v299 = vld [vmem:[%s0 + $0x30] sm:$0xff]
    %v300 = vld [vmem:[%s0 + $0x38] sm:$0xff]
    %v301 = vld [vmem:[%s0 + $0x40] sm:$0xff]
    %v302 = vld [vmem:[%s0 + $0x48] sm:$0xff]
    %v303 = vld [vmem:[%s0 + $0x50] sm:$0xff]
    %v304 = vld [vmem:[%s0 + $0x58] sm:$0xff]
    %v305 = vld [vmem:[%s0 + $0x60] sm:$0xff]
    %v306 = vld [vmem:[%s0 + $0x68] sm:$0xff]
    %v307 = vld [vmem:[%s0 + $0x70] sm:$0xff]
    %v308 = vld [vmem:[%s0 + $0x78] sm:$0xff]
    %v309 = vld [vmem:[%s3] sm:$0x1]
    %v310 = vld [vmem:[%s4] sm:$0x1]
    %v311 = vrot.slane %v293, 7
    %v312 = vrot.slane %v294, 7
    %v313 = vrot.slane %v295, 7
    %v314 = vrot.slane %v296, 7
    %v315 = vrot.slane %v297, 7
    %v316 = vrot.slane %v298, 7
    %v317 = vrot.slane %v299, 7
    %v318 = vrot.slane %v300, 7
    %v319 = vrot.slane %v301, 7
    %v320 = vrot.slane %v302, 7
    %v321 = vrot.slane %v303, 7
    %v322 = vrot.slane %v304, 7
    %v323 = vrot.slane %v305, 7
    %v324 = vrot.slane %v306, 7
    %v325 = vrot.slane %v307, 7
    %v326 = vrot.slane %v308, 7
    %vm327 = vcmp.lt.s32.totalorder %v85, 1
    %v328 = vsel %vm327, %v325, %v326
    %v329 = vsel %vm327, %v324, %v325
    %v330 = vsel %vm327, %v323, %v324
    %v331 = vsel %vm327, %v322, %v323
    %v332 = vsel %vm327, %v321, %v322
    %v333 = vsel %vm327, %v320, %v321
    %v334 = vsel %vm327, %v319, %v320
    %v335 = vsel %vm327, %v318, %v319
    %v336 = vsel %vm327, %v317, %v318
    %v337 = vsel %vm327, %v316, %v317
    %v338 = vsel %vm327, %v315, %v316
    %v339 = vsel %vm327, %v314, %v315
    %v340 = vsel %vm327, %v313, %v314
    %v341 = vsel %vm327, %v312, %v313
    %v342 = vsel %vm327, %v311, %v312
    %v343 = vsel %vm327, %v326, %v311
    %vm344 = vcmp.ge.s32.totalorder %v277, 1
    %vm345 = vcmp.ge.s32.totalorder %v278, 1
    %vm346 = vcmp.ge.s32.totalorder %v279, 1
    %vm347 = vcmp.ge.s32.totalorder %v280, 1
    %vm348 = vcmp.ge.s32.totalorder %v281, 1
    %vm349 = vcmp.ge.s32.totalorder %v282, 1
    %vm350 = vcmp.ge.s32.totalorder %v283, 1
    %vm351 = vcmp.ge.s32.totalorder %v284, 1
    %vm352 = vcmp.ge.s32.totalorder %v285, 1
    %vm353 = vcmp.ge.s32.totalorder %v286, 1
    %vm354 = vcmp.ge.s32.totalorder %v287, 1
    %vm355 = vcmp.ge.s32.totalorder %v288, 1
    %vm356 = vcmp.ge.s32.totalorder %v289, 1
    %vm357 = vcmp.ge.s32.totalorder %v290, 1
    %vm358 = vcmp.ge.s32.totalorder %v291, 1
    %vm359 = vcmp.ge.s32.totalorder %v292, 1
    %v360 = vsel %vm344, 1, 0
    %v361 = vsel %vm345, 1, 0
    %v362 = vsel %vm346, 1, 0
    %v363 = vsel %vm347, 1, 0
    %v364 = vsel %vm348, 1, 0
    %v365 = vsel %vm349, 1, 0
    %v366 = vsel %vm350, 1, 0
    %v367 = vsel %vm351, 1, 0
    %v368 = vsel %vm352, 1, 0
    %v369 = vsel %vm353, 1, 0
    %v370 = vsel %vm354, 1, 0
    %v371 = vsel %vm355, 1, 0
    %v372 = vsel %vm356, 1, 0
    %v373 = vsel %vm357, 1, 0
    %v374 = vsel %vm358, 1, 0
    %v375 = vsel %vm359, 1, 0
    %vm376 = vcmp.eq.s32.totalorder %v360, 1
    %vm377 = vcmp.eq.s32.totalorder %v361, 1
    %vm378 = vcmp.eq.s32.totalorder %v362, 1
    %vm379 = vcmp.eq.s32.totalorder %v363, 1
    %vm380 = vcmp.eq.s32.totalorder %v364, 1
    %vm381 = vcmp.eq.s32.totalorder %v365, 1
    %vm382 = vcmp.eq.s32.totalorder %v366, 1
    %vm383 = vcmp.eq.s32.totalorder %v367, 1
    %vm384 = vcmp.eq.s32.totalorder %v368, 1
    %vm385 = vcmp.eq.s32.totalorder %v369, 1
    %vm386 = vcmp.eq.s32.totalorder %v370, 1
    %vm387 = vcmp.eq.s32.totalorder %v371, 1
    %vm388 = vcmp.eq.s32.totalorder %v372, 1
    %vm389 = vcmp.eq.s32.totalorder %v373, 1
    %vm390 = vcmp.eq.s32.totalorder %v374, 1
    %vm391 = vcmp.eq.s32.totalorder %v375, 1
    %v392 = vsel %vm376, %v343, 0.0
    %v393 = vsel %vm377, %v342, 0.0
    %v394 = vsel %vm378, %v341, 0.0
    %v395 = vsel %vm379, %v340, 0.0
    %v396 = vsel %vm380, %v339, 0.0
    %v397 = vsel %vm381, %v338, 0.0
    %v398 = vsel %vm382, %v337, 0.0
    %v399 = vsel %vm383, %v336, 0.0
    %v400 = vsel %vm384, %v335, 0.0
    %v401 = vsel %vm385, %v334, 0.0
    %v402 = vsel %vm386, %v333, 0.0
    %v403 = vsel %vm387, %v332, 0.0
    %v404 = vsel %vm388, %v331, 0.0
    %v405 = vsel %vm389, %v330, 0.0
    %v406 = vsel %vm390, %v329, 0.0
    %v407 = vsel %vm391, %v328, 0.0
    %424 = vrot.lane.b32.xlu0 %v293, 8
    %v425 = vpop.permute.xlu0 %424
    %426 = vrot.lane.b32.xlu0 %v294, 8
    %v427 = vpop.permute.xlu0 %426
    %428 = vrot.lane.b32.xlu0 %v295, 8
    %v429 = vpop.permute.xlu0 %428
    %430 = vrot.lane.b32.xlu0 %v296, 8
    %v431 = vpop.permute.xlu0 %430
    %432 = vrot.lane.b32.xlu0 %v297, 8
    %v433 = vpop.permute.xlu0 %432
    %434 = vrot.lane.b32.xlu0 %v298, 8
    %v435 = vpop.permute.xlu0 %434
    %436 = vrot.lane.b32.xlu0 %v299, 8
    %v437 = vpop.permute.xlu0 %436
    %438 = vrot.lane.b32.xlu0 %v300, 8
    %v439 = vpop.permute.xlu0 %438
    %440 = vrot.lane.b32.xlu0 %v301, 8
    %v441 = vpop.permute.xlu0 %440
    %442 = vrot.lane.b32.xlu0 %v302, 8
    %v443 = vpop.permute.xlu0 %442
    %444 = vrot.lane.b32.xlu0 %v303, 8
    %v445 = vpop.permute.xlu0 %444
    %446 = vrot.lane.b32.xlu0 %v304, 8
    %v447 = vpop.permute.xlu0 %446
    %448 = vrot.lane.b32.xlu0 %v305, 8
    %v449 = vpop.permute.xlu0 %448
    %450 = vrot.lane.b32.xlu0 %v306, 8
    %v451 = vpop.permute.xlu0 %450
    %452 = vrot.lane.b32.xlu0 %v307, 8
    %v453 = vpop.permute.xlu0 %452
    %454 = vrot.lane.b32.xlu0 %v308, 8
    %v455 = vpop.permute.xlu0 %454
    %vm472 = vcmask 64512
    %v473 = vsel %vm472, %v392, %v425
    %v474 = vsel %vm472, %v393, %v427
    %v475 = vsel %vm472, %v394, %v429
    %v476 = vsel %vm472, %v395, %v431
    %v477 = vsel %vm472, %v396, %v433
    %v478 = vsel %vm472, %v397, %v435
    %v479 = vsel %vm472, %v398, %v437
    %v480 = vsel %vm472, %v399, %v439
    %v481 = vsel %vm472, %v400, %v441
    %v482 = vsel %vm472, %v401, %v443
    %v483 = vsel %vm472, %v402, %v445
    %v484 = vsel %vm472, %v403, %v447
    %v485 = vsel %vm472, %v404, %v449
    %v486 = vsel %vm472, %v405, %v451
    %v487 = vsel %vm472, %v406, %v453
    %v488 = vsel %vm472, %v407, %v455
    %v489 = vpack.c.bf16 %v474, %v473
    %v490 = vpack.c.bf16 %v476, %v475
    %v491 = vpack.c.bf16 %v478, %v477
    %v492 = vpack.c.bf16 %v480, %v479
    %v493 = vpack.c.bf16 %v482, %v481
    %v494 = vpack.c.bf16 %v484, %v483
    %v495 = vpack.c.bf16 %v486, %v485
    %v496 = vpack.c.bf16 %v488, %v487
    %v497 = vld [vmem:[%s2] sm:$0xf]
    %v498 = vld [vmem:[%s2 + $0x4] sm:$0xf]
    %v501 = vunpack.c.l.b16 %v497
    %v502 = vunpack.c.l.b16 %v498
    %v503 = vpack.c.b16 %v502, %v501
    %vm505 = vcmask 130048
    %v507 = vsel %vm505, %v489, 0
    %v510 = vsel %vm505, %v490, 0
    %v513 = vsel %vm505, %v491, 0
    %v516 = vsel %vm505, %v492, 0
    %v519 = vsel %vm505, %v493, 0
    %v522 = vsel %vm505, %v494, 0
    %v525 = vsel %vm505, %v495, 0
    %v528 = vsel %vm505, %v496, 0
    %530 = vmatprep.subr.bf16.mxu0 0
    %531 = vmatpush1.bf16.msra.mxu0 %v503
    %532 = vmatprep.subr.bf16.mxu0 0
    %533 = vmatpush1.bf16.msra.mxu0 0
    %534 = vmatprep.subr.bf16.mxu0 0
    %535 = vmatpush1.bf16.msra.mxu0 0
    %536 = vmatprep.subr.bf16.mxu0 0
    %537 = vmatpush1.bf16.msra.mxu0 0
    %538 = vmatprep.subr.bf16.mxu0 0
    %539 = vmatpush1.bf16.msra.mxu0 0
    %540 = vmatprep.subr.bf16.mxu0 0
    %541 = vmatpush1.bf16.msra.mxu0 0
    %542 = vmatprep.subr.bf16.mxu0 0
    %543 = vmatpush1.bf16.msra.mxu0 0
    %544 = vmatprep.subr.bf16.mxu0 0
    %545 = vmatpush1.bf16.msra.mxu0 0
    %546 = vmatprep.subr.bf16.mxu0 0
    %547 = vmatpush1.bf16.msra.mxu0 0
    %548 = vmatprep.subr.bf16.mxu0 0
    %549 = vmatpush1.bf16.msra.mxu0 0
    %550 = vmatprep.subr.bf16.mxu0 0
    %551 = vmatpush1.bf16.msra.mxu0 0
    %552 = vmatprep.subr.bf16.mxu0 0
    %553 = vmatpush1.bf16.msra.mxu0 0
    %554 = vmatprep.subr.bf16.mxu0 0
    %555 = vmatpush1.bf16.msra.mxu0 0
    %556 = vmatprep.subr.bf16.mxu0 0
    %557 = vmatpush1.bf16.msra.mxu0 0
    %558 = vmatprep.subr.bf16.mxu0 0
    %559 = vmatpush1.bf16.msra.mxu0 0
    %560 = vmatprep.subr.bf16.mxu0 0
    %561 = vmatpush1.bf16.msra.mxu0 0
    %562 = vmatprep.mubr.bf16.mxu0 0
    %563 = vmatmul.mubr.bf16.gmra.mrb[0].mxu0 %v507
    %v564 = vpop.f32.mrb[0].mxu0
    %v565 = vadd.f32 0.0, %v564
    %v566 = vpop.f32.mrb[0].mxu0
    %v567 = vpop.f32.mrb[0].mxu0
    %v568 = vadd.f32 0.0, %v567
    %v569 = vpop.f32.mrb[0].mxu0
    %570 = vmatprep.mubr.bf16.mxu0 0
    %571 = vmatmul.mubr.bf16.gmra.mrb[0].mxu0 %v510
    %v572 = vpop.f32.mrb[0].mxu0
    %v573 = vadd.f32 0.0, %v572
    %v574 = vpop.f32.mrb[0].mxu0
    %v575 = vpop.f32.mrb[0].mxu0
    %v576 = vadd.f32 0.0, %v575
    %v577 = vpop.f32.mrb[0].mxu0
    %578 = vmatprep.mubr.bf16.mxu0 0
    %579 = vmatmul.mubr.bf16.gmra.mrb[0].mxu0 %v513
    %v580 = vpop.f32.mrb[0].mxu0
    %v581 = vadd.f32 0.0, %v580
    %v582 = vpop.f32.mrb[0].mxu0
    %v583 = vpop.f32.mrb[0].mxu0
    %v584 = vadd.f32 0.0, %v583
    %v585 = vpop.f32.mrb[0].mxu0
    %586 = vmatprep.mubr.bf16.mxu0 0
    %587 = vmatmul.mubr.bf16.gmra.mrb[0].mxu0 %v516
    %v588 = vpop.f32.mrb[0].mxu0
    %v589 = vadd.f32 0.0, %v588
    %v590 = vpop.f32.mrb[0].mxu0
    %v591 = vpop.f32.mrb[0].mxu0
    %v592 = vadd.f32 0.0, %v591
    %v593 = vpop.f32.mrb[0].mxu0
    %594 = vmatprep.mubr.bf16.mxu0 0
    %595 = vmatmul.mubr.bf16.gmra.mrb[0].mxu0 %v519
    %v596 = vpop.f32.mrb[0].mxu0
    %v597 = vadd.f32 0.0, %v596
    %v598 = vpop.f32.mrb[0].mxu0
    %v599 = vpop.f32.mrb[0].mxu0
    %v600 = vadd.f32 0.0, %v599
    %v601 = vpop.f32.mrb[0].mxu0
    %602 = vmatprep.mubr.bf16.mxu0 0
    %603 = vmatmul.mubr.bf16.gmra.mrb[0].mxu0 %v522
    %v604 = vpop.f32.mrb[0].mxu0
    %v605 = vadd.f32 0.0, %v604
    %v606 = vpop.f32.mrb[0].mxu0
    %v607 = vpop.f32.mrb[0].mxu0
    %v608 = vadd.f32 0.0, %v607
    %v609 = vpop.f32.mrb[0].mxu0
    %610 = vmatprep.mubr.bf16.mxu0 0
    %611 = vmatmul.mubr.bf16.gmra.mrb[0].mxu0 %v525
    %v612 = vpop.f32.mrb[0].mxu0
    %v613 = vadd.f32 0.0, %v612
    %v614 = vpop.f32.mrb[0].mxu0
    %v615 = vpop.f32.mrb[0].mxu0
    %v616 = vadd.f32 0.0, %v615
    %v617 = vpop.f32.mrb[0].mxu0
    %618 = vmatprep.mubr.bf16.mxu0 0
    %619 = vmatmul.mubr.bf16.gmra.mrb[0].mxu0 %v528
    %v620 = vpop.f32.mrb[0].mxu0
    %v621 = vadd.f32 0.0, %v620
    %v622 = vpop.f32.mrb[0].mxu0
    %v623 = vpop.f32.mrb[0].mxu0
    %v624 = vadd.f32 0.0, %v623
    %v625 = vpop.f32.mrb[0].mxu0
    %626 = vdwg.mxu0
    %v628 = vlaneseq
    %v629 = vshrl.u32 %v628, 7
    %v630 = vsub.s32 0, %v629
    %v631 = vrot.slane %v309, %v630
    %v633 = vmul.f32 %v565, %v631
    %v634 = vmul.f32 %v568, %v631
    %v635 = vmul.f32 %v573, %v631
    %v636 = vmul.f32 %v576, %v631
    %v637 = vmul.f32 %v581, %v631
    %v638 = vmul.f32 %v584, %v631
    %v639 = vmul.f32 %v589, %v631
    %v640 = vmul.f32 %v592, %v631
    %v641 = vmul.f32 %v597, %v631
    %v642 = vmul.f32 %v600, %v631
    %v643 = vmul.f32 %v605, %v631
    %v644 = vmul.f32 %v608, %v631
    %v645 = vmul.f32 %v613, %v631
    %v646 = vmul.f32 %v616, %v631
    %v647 = vmul.f32 %v621, %v631
    %v648 = vmul.f32 %v624, %v631
    %v650 = vlaneseq
    %v651 = vshrl.u32 %v650, 7
    %v652 = vsub.s32 0, %v651
    %v653 = vrot.slane %v310, %v652
    %v655 = vadd.f32 %v633, %v653
    %v656 = vadd.f32 %v634, %v653
    %v657 = vadd.f32 %v635, %v653
    %v658 = vadd.f32 %v636, %v653
    %v659 = vadd.f32 %v637, %v653
    %v660 = vadd.f32 %v638, %v653
    %v661 = vadd.f32 %v639, %v653
    %v662 = vadd.f32 %v640, %v653
    %v663 = vadd.f32 %v641, %v653
    %v664 = vadd.f32 %v642, %v653
    %v665 = vadd.f32 %v643, %v653
    %v666 = vadd.f32 %v644, %v653
    %v667 = vadd.f32 %v645, %v653
    %v668 = vadd.f32 %v646, %v653
    %v669 = vadd.f32 %v647, %v653
    %v670 = vadd.f32 %v648, %v653
    %v671 = vmax.f32 %v655, 0.0
    %v672 = vmax.f32 %v656, 0.0
    %v673 = vmax.f32 %v657, 0.0
    %v674 = vmax.f32 %v658, 0.0
    %v675 = vmax.f32 %v659, 0.0
    %v676 = vmax.f32 %v660, 0.0
    %v677 = vmax.f32 %v661, 0.0
    %v678 = vmax.f32 %v662, 0.0
    %v679 = vmax.f32 %v663, 0.0
    %v680 = vmax.f32 %v664, 0.0
    %v681 = vmax.f32 %v665, 0.0
    %v682 = vmax.f32 %v666, 0.0
    %v683 = vmax.f32 %v667, 0.0
    %v684 = vmax.f32 %v668, 0.0
    %v685 = vmax.f32 %v669, 0.0
    %v686 = vmax.f32 %v670, 0.0
    %v687 = vld [vmem:[%s6] sm:$0x1]
    %v688 = vld [vmem:[%s7] sm:$0x1]
    %v689 = vrot.slane %v671, 6
    %v690 = vrot.slane %v672, 6
    %v691 = vrot.slane %v673, 6
    %v692 = vrot.slane %v674, 6
    %v693 = vrot.slane %v675, 6
    %v694 = vrot.slane %v676, 6
    %v695 = vrot.slane %v677, 6
    %v696 = vrot.slane %v678, 6
    %v697 = vrot.slane %v679, 6
    %v698 = vrot.slane %v680, 6
    %v699 = vrot.slane %v681, 6
    %v700 = vrot.slane %v682, 6
    %v701 = vrot.slane %v683, 6
    %v702 = vrot.slane %v684, 6
    %v703 = vrot.slane %v685, 6
    %v704 = vrot.slane %v686, 6
    %vm705 = vcmp.lt.s32.totalorder %v85, 2
    %v706 = vsel %vm705, %v703, %v704
    %v707 = vsel %vm705, %v702, %v703
    %v708 = vsel %vm705, %v701, %v702
    %v709 = vsel %vm705, %v700, %v701
    %v710 = vsel %vm705, %v699, %v700
    %v711 = vsel %vm705, %v698, %v699
    %v712 = vsel %vm705, %v697, %v698
    %v713 = vsel %vm705, %v696, %v697
    %v714 = vsel %vm705, %v695, %v696
    %v715 = vsel %vm705, %v694, %v695
    %v716 = vsel %vm705, %v693, %v694
    %v717 = vsel %vm705, %v692, %v693
    %v718 = vsel %vm705, %v691, %v692
    %v719 = vsel %vm705, %v690, %v691
    %v720 = vsel %vm705, %v689, %v690
    %v721 = vsel %vm705, %v704, %v689
    %vm722 = vcmp.ge.s32.totalorder %v277, 2
    %vm723 = vcmp.ge.s32.totalorder %v278, 2
    %vm724 = vcmp.ge.s32.totalorder %v279, 2
    %vm725 = vcmp.ge.s32.totalorder %v280, 2
    %vm726 = vcmp.ge.s32.totalorder %v281, 2
    %vm727 = vcmp.ge.s32.totalorder %v282, 2
    %vm728 = vcmp.ge.s32.totalorder %v283, 2
    %vm729 = vcmp.ge.s32.totalorder %v284, 2
    %vm730 = vcmp.ge.s32.totalorder %v285, 2
    %vm731 = vcmp.ge.s32.totalorder %v286, 2
    %vm732 = vcmp.ge.s32.totalorder %v287, 2
    %vm733 = vcmp.ge.s32.totalorder %v288, 2
    %vm734 = vcmp.ge.s32.totalorder %v289, 2
    %vm735 = vcmp.ge.s32.totalorder %v290, 2
    %vm736 = vcmp.ge.s32.totalorder %v291, 2
    %vm737 = vcmp.ge.s32.totalorder %v292, 2
    %v738 = vsel %vm722, 1, 0
    %v739 = vsel %vm723, 1, 0
    %v740 = vsel %vm724, 1, 0
    %v741 = vsel %vm725, 1, 0
    %v742 = vsel %vm726, 1, 0
    %v743 = vsel %vm727, 1, 0
    %v744 = vsel %vm728, 1, 0
    %v745 = vsel %vm729, 1, 0
    %v746 = vsel %vm730, 1, 0
    %v747 = vsel %vm731, 1, 0
    %v748 = vsel %vm732, 1, 0
    %v749 = vsel %vm733, 1, 0
    %v750 = vsel %vm734, 1, 0
    %v751 = vsel %vm735, 1, 0
    %v752 = vsel %vm736, 1, 0
    %v753 = vsel %vm737, 1, 0
    %vm754 = vcmp.eq.s32.totalorder %v738, 1
    %vm755 = vcmp.eq.s32.totalorder %v739, 1
    %vm756 = vcmp.eq.s32.totalorder %v740, 1
    %vm757 = vcmp.eq.s32.totalorder %v741, 1
    %vm758 = vcmp.eq.s32.totalorder %v742, 1
    %vm759 = vcmp.eq.s32.totalorder %v743, 1
    %vm760 = vcmp.eq.s32.totalorder %v744, 1
    %vm761 = vcmp.eq.s32.totalorder %v745, 1
    %vm762 = vcmp.eq.s32.totalorder %v746, 1
    %vm763 = vcmp.eq.s32.totalorder %v747, 1
    %vm764 = vcmp.eq.s32.totalorder %v748, 1
    %vm765 = vcmp.eq.s32.totalorder %v749, 1
    %vm766 = vcmp.eq.s32.totalorder %v750, 1
    %vm767 = vcmp.eq.s32.totalorder %v751, 1
    %vm768 = vcmp.eq.s32.totalorder %v752, 1
    %vm769 = vcmp.eq.s32.totalorder %v753, 1
    %v770 = vsel %vm754, %v721, 0.0
    %v771 = vsel %vm755, %v720, 0.0
    %v772 = vsel %vm756, %v719, 0.0
    %v773 = vsel %vm757, %v718, 0.0
    %v774 = vsel %vm758, %v717, 0.0
    %v775 = vsel %vm759, %v716, 0.0
    %v776 = vsel %vm760, %v715, 0.0
    %v777 = vsel %vm761, %v714, 0.0
    %v778 = vsel %vm762, %v713, 0.0
    %v779 = vsel %vm763, %v712, 0.0
    %v780 = vsel %vm764, %v711, 0.0
    %v781 = vsel %vm765, %v710, 0.0
    %v782 = vsel %vm766, %v709, 0.0
    %v783 = vsel %vm767, %v708, 0.0
    %v784 = vsel %vm768, %v707, 0.0
    %v785 = vsel %vm769, %v706, 0.0
    %v786 = vrot.slane %v671, 7
    %v787 = vrot.slane %v672, 7
    %v788 = vrot.slane %v673, 7
    %v789 = vrot.slane %v674, 7
    %v790 = vrot.slane %v675, 7
    %v791 = vrot.slane %v676, 7
    %v792 = vrot.slane %v677, 7
    %v793 = vrot.slane %v678, 7
    %v794 = vrot.slane %v679, 7
    %v795 = vrot.slane %v680, 7
    %v796 = vrot.slane %v681, 7
    %v797 = vrot.slane %v682, 7
    %v798 = vrot.slane %v683, 7
    %v799 = vrot.slane %v684, 7
    %v800 = vrot.slane %v685, 7
    %v801 = vrot.slane %v686, 7
    %v802 = vsel %vm327, %v800, %v801
    %v803 = vsel %vm327, %v799, %v800
    %v804 = vsel %vm327, %v798, %v799
    %v805 = vsel %vm327, %v797, %v798
    %v806 = vsel %vm327, %v796, %v797
    %v807 = vsel %vm327, %v795, %v796
    %v808 = vsel %vm327, %v794, %v795
    %v809 = vsel %vm327, %v793, %v794
    %v810 = vsel %vm327, %v792, %v793
    %v811 = vsel %vm327, %v791, %v792
    %v812 = vsel %vm327, %v790, %v791
    %v813 = vsel %vm327, %v789, %v790
    %v814 = vsel %vm327, %v788, %v789
    %v815 = vsel %vm327, %v787, %v788
    %v816 = vsel %vm327, %v786, %v787
    %v817 = vsel %vm327, %v801, %v786
    %v818 = vsel %vm376, %v817, 0.0
    %v819 = vsel %vm377, %v816, 0.0
    %v820 = vsel %vm378, %v815, 0.0
    %v821 = vsel %vm379, %v814, 0.0
    %v822 = vsel %vm380, %v813, 0.0
    %v823 = vsel %vm381, %v812, 0.0
    %v824 = vsel %vm382, %v811, 0.0
    %v825 = vsel %vm383, %v810, 0.0
    %v826 = vsel %vm384, %v809, 0.0
    %v827 = vsel %vm385, %v808, 0.0
    %v828 = vsel %vm386, %v807, 0.0
    %v829 = vsel %vm387, %v806, 0.0
    %v830 = vsel %vm388, %v805, 0.0
    %v831 = vsel %vm389, %v804, 0.0
    %v832 = vsel %vm390, %v803, 0.0
    %v833 = vsel %vm391, %v802, 0.0
    %v834 = vrot.slane %v671, 1
    %v835 = vrot.slane %v672, 1
    %v836 = vrot.slane %v673, 1
    %v837 = vrot.slane %v674, 1
    %v838 = vrot.slane %v675, 1
    %v839 = vrot.slane %v676, 1
    %v840 = vrot.slane %v677, 1
    %v841 = vrot.slane %v678, 1
    %v842 = vrot.slane %v679, 1
    %v843 = vrot.slane %v680, 1
    %v844 = vrot.slane %v681, 1
    %v845 = vrot.slane %v682, 1
    %v846 = vrot.slane %v683, 1
    %v847 = vrot.slane %v684, 1
    %v848 = vrot.slane %v685, 1
    %v849 = vrot.slane %v686, 1
    %vm850 = vcmp.lt.s32.totalorder %v85, 7
    %v851 = vsel %vm850, %v848, %v849
    %v852 = vsel %vm850, %v847, %v848
    %v853 = vsel %vm850, %v846, %v847
    %v854 = vsel %vm850, %v845, %v846
    %v855 = vsel %vm850, %v844, %v845
    %v856 = vsel %vm850, %v843, %v844
    %v857 = vsel %vm850, %v842, %v843
    %v858 = vsel %vm850, %v841, %v842
    %v859 = vsel %vm850, %v840, %v841
    %v860 = vsel %vm850, %v839, %v840
    %v861 = vsel %vm850, %v838, %v839
    %v862 = vsel %vm850, %v837, %v838
    %v863 = vsel %vm850, %v836, %v837
    %v864 = vsel %vm850, %v835, %v836
    %v865 = vsel %vm850, %v834, %v835
    %v866 = vsel %vm850, %v849, %v834
    %vm867 = vcmp.lt.s32.totalorder %v277, 63
    %vm868 = vcmp.lt.s32.totalorder %v278, 63
    %vm869 = vcmp.lt.s32.totalorder %v279, 63
    %vm870 = vcmp.lt.s32.totalorder %v280, 63
    %vm871 = vcmp.lt.s32.totalorder %v281, 63
    %vm872 = vcmp.lt.s32.totalorder %v282, 63
    %vm873 = vcmp.lt.s32.totalorder %v283, 63
    %vm874 = vcmp.lt.s32.totalorder %v284, 63
    %vm875 = vcmp.lt.s32.totalorder %v285, 63
    %vm876 = vcmp.lt.s32.totalorder %v286, 63
    %vm877 = vcmp.lt.s32.totalorder %v287, 63
    %vm878 = vcmp.lt.s32.totalorder %v288, 63
    %vm879 = vcmp.lt.s32.totalorder %v289, 63
    %vm880 = vcmp.lt.s32.totalorder %v290, 63
    %vm881 = vcmp.lt.s32.totalorder %v291, 63
    %vm882 = vcmp.lt.s32.totalorder %v292, 63
    %v883 = vsel %vm867, 1, 0
    %v884 = vsel %vm868, 1, 0
    %v885 = vsel %vm869, 1, 0
    %v886 = vsel %vm870, 1, 0
    %v887 = vsel %vm871, 1, 0
    %v888 = vsel %vm872, 1, 0
    %v889 = vsel %vm873, 1, 0
    %v890 = vsel %vm874, 1, 0
    %v891 = vsel %vm875, 1, 0
    %v892 = vsel %vm876, 1, 0
    %v893 = vsel %vm877, 1, 0
    %v894 = vsel %vm878, 1, 0
    %v895 = vsel %vm879, 1, 0
    %v896 = vsel %vm880, 1, 0
    %v897 = vsel %vm881, 1, 0
    %v898 = vsel %vm882, 1, 0
    %vm899 = vcmp.eq.s32.totalorder %v883, 1
    %vm900 = vcmp.eq.s32.totalorder %v884, 1
    %vm901 = vcmp.eq.s32.totalorder %v885, 1
    %vm902 = vcmp.eq.s32.totalorder %v886, 1
    %vm903 = vcmp.eq.s32.totalorder %v887, 1
    %vm904 = vcmp.eq.s32.totalorder %v888, 1
    %vm905 = vcmp.eq.s32.totalorder %v889, 1
    %vm906 = vcmp.eq.s32.totalorder %v890, 1
    %vm907 = vcmp.eq.s32.totalorder %v891, 1
    %vm908 = vcmp.eq.s32.totalorder %v892, 1
    %vm909 = vcmp.eq.s32.totalorder %v893, 1
    %vm910 = vcmp.eq.s32.totalorder %v894, 1
    %vm911 = vcmp.eq.s32.totalorder %v895, 1
    %vm912 = vcmp.eq.s32.totalorder %v896, 1
    %vm913 = vcmp.eq.s32.totalorder %v897, 1
    %vm914 = vcmp.eq.s32.totalorder %v898, 1
    %v915 = vsel %vm899, %v865, 0.0
    %v916 = vsel %vm900, %v864, 0.0
    %v917 = vsel %vm901, %v863, 0.0
    %v918 = vsel %vm902, %v862, 0.0
    %v919 = vsel %vm903, %v861, 0.0
    %v920 = vsel %vm904, %v860, 0.0
    %v921 = vsel %vm905, %v859, 0.0
    %v922 = vsel %vm906, %v858, 0.0
    %v923 = vsel %vm907, %v857, 0.0
    %v924 = vsel %vm908, %v856, 0.0
    %v925 = vsel %vm909, %v855, 0.0
    %v926 = vsel %vm910, %v854, 0.0
    %v927 = vsel %vm911, %v853, 0.0
    %v928 = vsel %vm912, %v852, 0.0
    %v929 = vsel %vm913, %v851, 0.0
    %v930 = vsel %vm914, %v866, 0.0
    %v931 = vrot.slane %v671, 2
    %v932 = vrot.slane %v672, 2
    %v933 = vrot.slane %v673, 2
    %v934 = vrot.slane %v674, 2
    %v935 = vrot.slane %v675, 2
    %v936 = vrot.slane %v676, 2
    %v937 = vrot.slane %v677, 2
    %v938 = vrot.slane %v678, 2
    %v939 = vrot.slane %v679, 2
    %v940 = vrot.slane %v680, 2
    %v941 = vrot.slane %v681, 2
    %v942 = vrot.slane %v682, 2
    %v943 = vrot.slane %v683, 2
    %v944 = vrot.slane %v684, 2
    %v945 = vrot.slane %v685, 2
    %v946 = vrot.slane %v686, 2
    %vm947 = vcmp.lt.s32.totalorder %v85, 6
    %v948 = vsel %vm947, %v945, %v946
    %v949 = vsel %vm947, %v944, %v945
    %v950 = vsel %vm947, %v943, %v944
    %v951 = vsel %vm947, %v942, %v943
    %v952 = vsel %vm947, %v941, %v942
    %v953 = vsel %vm947, %v940, %v941
    %v954 = vsel %vm947, %v939, %v940
    %v955 = vsel %vm947, %v938, %v939
    %v956 = vsel %vm947, %v937, %v938
    %v957 = vsel %vm947, %v936, %v937
    %v958 = vsel %vm947, %v935, %v936
    %v959 = vsel %vm947, %v934, %v935
    %v960 = vsel %vm947, %v933, %v934
    %v961 = vsel %vm947, %v932, %v933
    %v962 = vsel %vm947, %v931, %v932
    %v963 = vsel %vm947, %v946, %v931
    %vm964 = vcmp.lt.s32.totalorder %v277, 62
    %vm965 = vcmp.lt.s32.totalorder %v278, 62
    %vm966 = vcmp.lt.s32.totalorder %v279, 62
    %vm967 = vcmp.lt.s32.totalorder %v280, 62
    %vm968 = vcmp.lt.s32.totalorder %v281, 62
    %vm969 = vcmp.lt.s32.totalorder %v282, 62
    %vm970 = vcmp.lt.s32.totalorder %v283, 62
    %vm971 = vcmp.lt.s32.totalorder %v284, 62
    %vm972 = vcmp.lt.s32.totalorder %v285, 62
    %vm973 = vcmp.lt.s32.totalorder %v286, 62
    %vm974 = vcmp.lt.s32.totalorder %v287, 62
    %vm975 = vcmp.lt.s32.totalorder %v288, 62
    %vm976 = vcmp.lt.s32.totalorder %v289, 62
    %vm977 = vcmp.lt.s32.totalorder %v290, 62
    %vm978 = vcmp.lt.s32.totalorder %v291, 62
    %vm979 = vcmp.lt.s32.totalorder %v292, 62
    %v980 = vsel %vm964, 1, 0
    %v981 = vsel %vm965, 1, 0
    %v982 = vsel %vm966, 1, 0
    %v983 = vsel %vm967, 1, 0
    %v984 = vsel %vm968, 1, 0
    %v985 = vsel %vm969, 1, 0
    %v986 = vsel %vm970, 1, 0
    %v987 = vsel %vm971, 1, 0
    %v988 = vsel %vm972, 1, 0
    %v989 = vsel %vm973, 1, 0
    %v990 = vsel %vm974, 1, 0
    %v991 = vsel %vm975, 1, 0
    %v992 = vsel %vm976, 1, 0
    %v993 = vsel %vm977, 1, 0
    %v994 = vsel %vm978, 1, 0
    %v995 = vsel %vm979, 1, 0
    %vm996 = vcmp.eq.s32.totalorder %v980, 1
    %vm997 = vcmp.eq.s32.totalorder %v981, 1
    %vm998 = vcmp.eq.s32.totalorder %v982, 1
    %vm999 = vcmp.eq.s32.totalorder %v983, 1
    %vm1000 = vcmp.eq.s32.totalorder %v984, 1
    %vm1001 = vcmp.eq.s32.totalorder %v985, 1
    %vm1002 = vcmp.eq.s32.totalorder %v986, 1
    %vm1003 = vcmp.eq.s32.totalorder %v987, 1
    %vm1004 = vcmp.eq.s32.totalorder %v988, 1
    %vm1005 = vcmp.eq.s32.totalorder %v989, 1
    %vm1006 = vcmp.eq.s32.totalorder %v990, 1
    %vm1007 = vcmp.eq.s32.totalorder %v991, 1
    %vm1008 = vcmp.eq.s32.totalorder %v992, 1
    %vm1009 = vcmp.eq.s32.totalorder %v993, 1
    %vm1010 = vcmp.eq.s32.totalorder %v994, 1
    %vm1011 = vcmp.eq.s32.totalorder %v995, 1
    %v1012 = vsel %vm996, %v962, 0.0
    %v1013 = vsel %vm997, %v961, 0.0
    %v1014 = vsel %vm998, %v960, 0.0
    %v1015 = vsel %vm999, %v959, 0.0
    %v1016 = vsel %vm1000, %v958, 0.0
    %v1017 = vsel %vm1001, %v957, 0.0
    %v1018 = vsel %vm1002, %v956, 0.0
    %v1019 = vsel %vm1003, %v955, 0.0
    %v1020 = vsel %vm1004, %v954, 0.0
    %v1021 = vsel %vm1005, %v953, 0.0
    %v1022 = vsel %vm1006, %v952, 0.0
    %v1023 = vsel %vm1007, %v951, 0.0
    %v1024 = vsel %vm1008, %v950, 0.0
    %v1025 = vsel %vm1009, %v949, 0.0
    %v1026 = vsel %vm1010, %v948, 0.0
    %v1027 = vsel %vm1011, %v963, 0.0
    %1044 = vrot.lane.b32.xlu0 %v818, 32
    %v1045 = vpop.permute.xlu0 %1044
    %1046 = vrot.lane.b32.xlu0 %v819, 32
    %v1047 = vpop.permute.xlu0 %1046
    %1048 = vrot.lane.b32.xlu0 %v820, 32
    %v1049 = vpop.permute.xlu0 %1048
    %1050 = vrot.lane.b32.xlu0 %v821, 32
    %v1051 = vpop.permute.xlu0 %1050
    %1052 = vrot.lane.b32.xlu0 %v822, 32
    %v1053 = vpop.permute.xlu0 %1052
    %1054 = vrot.lane.b32.xlu0 %v823, 32
    %v1055 = vpop.permute.xlu0 %1054
    %1056 = vrot.lane.b32.xlu0 %v824, 32
    %v1057 = vpop.permute.xlu0 %1056
    %1058 = vrot.lane.b32.xlu0 %v825, 32
    %v1059 = vpop.permute.xlu0 %1058
    %1060 = vrot.lane.b32.xlu0 %v826, 32
    %v1061 = vpop.permute.xlu0 %1060
    %1062 = vrot.lane.b32.xlu0 %v827, 32
    %v1063 = vpop.permute.xlu0 %1062
    %1064 = vrot.lane.b32.xlu0 %v828, 32
    %v1065 = vpop.permute.xlu0 %1064
    %1066 = vrot.lane.b32.xlu0 %v829, 32
    %v1067 = vpop.permute.xlu0 %1066
    %1068 = vrot.lane.b32.xlu0 %v830, 32
    %v1069 = vpop.permute.xlu0 %1068
    %1070 = vrot.lane.b32.xlu0 %v831, 32
    %v1071 = vpop.permute.xlu0 %1070
    %1072 = vrot.lane.b32.xlu0 %v832, 32
    %v1073 = vpop.permute.xlu0 %1072
    %1074 = vrot.lane.b32.xlu0 %v833, 32
    %v1075 = vpop.permute.xlu0 %1074
    %1108 = vrot.lane.b32.xlu0 %v671, 64
    %v1109 = vpop.permute.xlu0 %1108
    %1110 = vrot.lane.b32.xlu0 %v672, 64
    %v1111 = vpop.permute.xlu0 %1110
    %1112 = vrot.lane.b32.xlu0 %v673, 64
    %v1113 = vpop.permute.xlu0 %1112
    %1114 = vrot.lane.b32.xlu0 %v674, 64
    %v1115 = vpop.permute.xlu0 %1114
    %1116 = vrot.lane.b32.xlu0 %v675, 64
    %v1117 = vpop.permute.xlu0 %1116
    %1118 = vrot.lane.b32.xlu0 %v676, 64
    %v1119 = vpop.permute.xlu0 %1118
    %1120 = vrot.lane.b32.xlu0 %v677, 64
    %v1121 = vpop.permute.xlu0 %1120
    %1122 = vrot.lane.b32.xlu0 %v678, 64
    %v1123 = vpop.permute.xlu0 %1122
    %1124 = vrot.lane.b32.xlu0 %v679, 64
    %v1125 = vpop.permute.xlu0 %1124
    %1126 = vrot.lane.b32.xlu0 %v680, 64
    %v1127 = vpop.permute.xlu0 %1126
    %1128 = vrot.lane.b32.xlu0 %v681, 64
    %v1129 = vpop.permute.xlu0 %1128
    %1130 = vrot.lane.b32.xlu0 %v682, 64
    %v1131 = vpop.permute.xlu0 %1130
    %1132 = vrot.lane.b32.xlu0 %v683, 64
    %v1133 = vpop.permute.xlu0 %1132
    %1134 = vrot.lane.b32.xlu0 %v684, 64
    %v1135 = vpop.permute.xlu0 %1134
    %1136 = vrot.lane.b32.xlu0 %v685, 64
    %v1137 = vpop.permute.xlu0 %1136
    %1138 = vrot.lane.b32.xlu0 %v686, 64
    %v1139 = vpop.permute.xlu0 %1138
    %1172 = vrot.lane.b32.xlu0 %v915, 96
    %v1173 = vpop.permute.xlu0 %1172
    %1174 = vrot.lane.b32.xlu0 %v916, 96
    %v1175 = vpop.permute.xlu0 %1174
    %1176 = vrot.lane.b32.xlu0 %v917, 96
    %v1177 = vpop.permute.xlu0 %1176
    %1178 = vrot.lane.b32.xlu0 %v918, 96
    %v1179 = vpop.permute.xlu0 %1178
    %1180 = vrot.lane.b32.xlu0 %v919, 96
    %v1181 = vpop.permute.xlu0 %1180
    %1182 = vrot.lane.b32.xlu0 %v920, 96
    %v1183 = vpop.permute.xlu0 %1182
    %1184 = vrot.lane.b32.xlu0 %v921, 96
    %v1185 = vpop.permute.xlu0 %1184
    %1186 = vrot.lane.b32.xlu0 %v922, 96
    %v1187 = vpop.permute.xlu0 %1186
    %1188 = vrot.lane.b32.xlu0 %v923, 96
    %v1189 = vpop.permute.xlu0 %1188
    %1190 = vrot.lane.b32.xlu0 %v924, 96
    %v1191 = vpop.permute.xlu0 %1190
    %1192 = vrot.lane.b32.xlu0 %v925, 96
    %v1193 = vpop.permute.xlu0 %1192
    %1194 = vrot.lane.b32.xlu0 %v926, 96
    %v1195 = vpop.permute.xlu0 %1194
    %1196 = vrot.lane.b32.xlu0 %v927, 96
    %v1197 = vpop.permute.xlu0 %1196
    %1198 = vrot.lane.b32.xlu0 %v928, 96
    %v1199 = vpop.permute.xlu0 %1198
    %1200 = vrot.lane.b32.xlu0 %v929, 96
    %v1201 = vpop.permute.xlu0 %1200
    %1202 = vrot.lane.b32.xlu0 %v930, 96
    %v1203 = vpop.permute.xlu0 %1202
    %vm1220 = vcmask 261120
    %v1221 = vsel %vm1220, %v770, %v1045
    %v1222 = vsel %vm1220, %v771, %v1047
    %v1223 = vsel %vm1220, %v772, %v1049
    %v1224 = vsel %vm1220, %v773, %v1051
    %v1225 = vsel %vm1220, %v774, %v1053
    %v1226 = vsel %vm1220, %v775, %v1055
    %v1227 = vsel %vm1220, %v776, %v1057
    %v1228 = vsel %vm1220, %v777, %v1059
    %v1229 = vsel %vm1220, %v778, %v1061
    %v1230 = vsel %vm1220, %v779, %v1063
    %v1231 = vsel %vm1220, %v780, %v1065
    %v1232 = vsel %vm1220, %v781, %v1067
    %v1233 = vsel %vm1220, %v782, %v1069
    %v1234 = vsel %vm1220, %v783, %v1071
    %v1235 = vsel %vm1220, %v784, %v1073
    %v1236 = vsel %vm1220, %v785, %v1075
    %vm1237 = vcmask 523264
    %v1238 = vsel %vm1237, %v1221, %v1109
    %v1239 = vsel %vm1237, %v1222, %v1111
    %v1240 = vsel %vm1237, %v1223, %v1113
    %v1241 = vsel %vm1237, %v1224, %v1115
    %v1242 = vsel %vm1237, %v1225, %v1117
    %v1243 = vsel %vm1237, %v1226, %v1119
    %v1244 = vsel %vm1237, %v1227, %v1121
    %v1245 = vsel %vm1237, %v1228, %v1123
    %v1246 = vsel %vm1237, %v1229, %v1125
    %v1247 = vsel %vm1237, %v1230, %v1127
    %v1248 = vsel %vm1237, %v1231, %v1129
    %v1249 = vsel %vm1237, %v1232, %v1131
    %v1250 = vsel %vm1237, %v1233, %v1133
    %v1251 = vsel %vm1237, %v1234, %v1135
    %v1252 = vsel %vm1237, %v1235, %v1137
    %v1253 = vsel %vm1237, %v1236, %v1139
    %vm1254 = vcmask 785408
    %v1255 = vsel %vm1254, %v1238, %v1173
    %v1256 = vsel %vm1254, %v1239, %v1175
    %v1257 = vsel %vm1254, %v1240, %v1177
    %v1258 = vsel %vm1254, %v1241, %v1179
    %v1259 = vsel %vm1254, %v1242, %v1181
    %v1260 = vsel %vm1254, %v1243, %v1183
    %v1261 = vsel %vm1254, %v1244, %v1185
    %v1262 = vsel %vm1254, %v1245, %v1187
    %v1263 = vsel %vm1254, %v1246, %v1189
    %v1264 = vsel %vm1254, %v1247, %v1191
    %v1265 = vsel %vm1254, %v1248, %v1193
    %v1266 = vsel %vm1254, %v1249, %v1195
    %v1267 = vsel %vm1254, %v1250, %v1197
    %v1268 = vsel %vm1254, %v1251, %v1199
    %v1269 = vsel %vm1254, %v1252, %v1201
    %v1270 = vsel %vm1254, %v1253, %v1203
    %v1271 = vpack.c.bf16 %v1256, %v1255
    %v1272 = vpack.c.bf16 %v1013, %v1012
    %v1273 = vpack.c.bf16 %v1258, %v1257
    %v1274 = vpack.c.bf16 %v1015, %v1014
    %v1275 = vpack.c.bf16 %v1260, %v1259
    %v1276 = vpack.c.bf16 %v1017, %v1016
    %v1277 = vpack.c.bf16 %v1262, %v1261
    %v1278 = vpack.c.bf16 %v1019, %v1018
    %v1279 = vpack.c.bf16 %v1264, %v1263
    %v1280 = vpack.c.bf16 %v1021, %v1020
    %v1281 = vpack.c.bf16 %v1266, %v1265
    %v1282 = vpack.c.bf16 %v1023, %v1022
    %v1283 = vpack.c.bf16 %v1268, %v1267
    %v1284 = vpack.c.bf16 %v1025, %v1024
    %v1285 = vpack.c.bf16 %v1270, %v1269
    %v1286 = vpack.c.bf16 %v1027, %v1026
    %v1287 = vld [vmem:[%s5] sm:$0xf]
    %v1288 = vld [vmem:[%s5 + $0x4] sm:$0xf]
    %v1289 = vld [vmem:[%s5 + $0x8] sm:$0xf]
    %v1290 = vld [vmem:[%s5 + $0xc] sm:$0xf]
    %v1291 = vld [vmem:[%s5 + $0x10] sm:$0xf]
    %v1292 = vld [vmem:[%s5 + $0x14] sm:$0xf]
    %v1293 = vld [vmem:[%s5 + $0x18] sm:$0xf]
    %v1294 = vld [vmem:[%s5 + $0x1c] sm:$0xf]
    %v1295 = vld [vmem:[%s5 + $0x20] sm:$0xf]
    %v1296 = vld [vmem:[%s5 + $0x24] sm:$0xf]
    %v1297 = vld [vmem:[%s5 + $0x28] sm:$0xf]
    %v1298 = vld [vmem:[%s5 + $0x2c] sm:$0xf]
    %v1299 = vld [vmem:[%s5 + $0x30] sm:$0xf]
    %v1300 = vld [vmem:[%s5 + $0x34] sm:$0xf]
    %v1301 = vld [vmem:[%s5 + $0x38] sm:$0xf]
    %v1302 = vld [vmem:[%s5 + $0x3c] sm:$0xf]
    %v1303 = vld [vmem:[%s5 + $0x40] sm:$0xf]
    %v1304 = vld [vmem:[%s5 + $0x44] sm:$0xf]
    %v1305 = vld [vmem:[%s5 + $0x48] sm:$0xf]
    %v1306 = vld [vmem:[%s5 + $0x4c] sm:$0xf]
    %v1327 = vunpack.c.l.b16 %v1287
    %v1328 = vunpack.c.l.b16 %v1288
    %v1329 = vunpack.c.l.b16 %v1289
    %v1330 = vunpack.c.l.b16 %v1290
    %v1331 = vunpack.c.l.b16 %v1291
    %v1332 = vunpack.c.l.b16 %v1292
    %v1333 = vunpack.c.l.b16 %v1293
    %v1334 = vunpack.c.l.b16 %v1294
    %v1335 = vunpack.c.l.b16 %v1295
    %v1336 = vunpack.c.l.b16 %v1296
    %v1337 = vunpack.c.l.b16 %v1297
    %v1338 = vunpack.c.l.b16 %v1298
    %v1339 = vunpack.c.l.b16 %v1299
    %v1340 = vunpack.c.l.b16 %v1300
    %v1341 = vunpack.c.l.b16 %v1301
    %v1342 = vunpack.c.l.b16 %v1302
    %v1343 = vunpack.c.l.b16 %v1303
    %v1344 = vunpack.c.l.b16 %v1304
    %v1345 = vunpack.c.l.b16 %v1305
    %v1346 = vunpack.c.l.b16 %v1306
    %v1347 = vpack.c.b16 %v1328, %v1327
    %v1348 = vpack.c.b16 %v1330, %v1329
    %v1349 = vpack.c.b16 %v1332, %v1331
    %v1350 = vpack.c.b16 %v1334, %v1333
    %v1351 = vpack.c.b16 %v1336, %v1335
    %v1352 = vpack.c.b16 %v1338, %v1337
    %v1353 = vpack.c.b16 %v1340, %v1339
    %v1354 = vpack.c.b16 %v1342, %v1341
    %v1355 = vpack.c.b16 %v1344, %v1343
    %v1356 = vpack.c.b16 %v1346, %v1345
    %v1368 = vsel %vm1220, %v1272, 0
    %v1371 = vsel %vm1220, %v1274, 0
    %v1374 = vsel %vm1220, %v1276, 0
    %v1377 = vsel %vm1220, %v1278, 0
    %v1380 = vsel %vm1220, %v1280, 0
    %v1383 = vsel %vm1220, %v1282, 0
    %v1386 = vsel %vm1220, %v1284, 0
    %v1389 = vsel %vm1220, %v1286, 0
    %1391 = vmatprep.subr.bf16.mxu0 0
    %1392 = vmatpush1.bf16.msra.mxu0 %v1347
    %1393 = vmatprep.subr.bf16.mxu0 0
    %1394 = vmatpush1.bf16.msra.mxu0 %v1348
    %1395 = vmatprep.subr.bf16.mxu0 0
    %1396 = vmatpush1.bf16.msra.mxu0 %v1349
    %1397 = vmatprep.subr.bf16.mxu0 0
    %1398 = vmatpush1.bf16.msra.mxu0 %v1350
    %1399 = vmatprep.subr.bf16.mxu0 0
    %1400 = vmatpush1.bf16.msra.mxu0 %v1351
    %1401 = vmatprep.subr.bf16.mxu0 0
    %1402 = vmatpush1.bf16.msra.mxu0 %v1352
    %1403 = vmatprep.subr.bf16.mxu0 0
    %1404 = vmatpush1.bf16.msra.mxu0 %v1353
    %1405 = vmatprep.subr.bf16.mxu0 0
    %1406 = vmatpush1.bf16.msra.mxu0 %v1354
    %1407 = vmatprep.subr.bf16.mxu0 0
    %1408 = vmatpush1.bf16.msra.mxu0 %v1355
    %1409 = vmatprep.subr.bf16.mxu0 0
    %1410 = vmatpush1.bf16.msra.mxu0 %v1356
    %1411 = vmatprep.subr.bf16.mxu0 0
    %1412 = vmatpush1.bf16.msra.mxu0 0
    %1413 = vmatprep.subr.bf16.mxu0 0
    %1414 = vmatpush1.bf16.msra.mxu0 0
    %1415 = vmatprep.subr.bf16.mxu0 0
    %1416 = vmatpush1.bf16.msra.mxu0 0
    %1417 = vmatprep.subr.bf16.mxu0 0
    %1418 = vmatpush1.bf16.msra.mxu0 0
    %1419 = vmatprep.subr.bf16.mxu0 0
    %1420 = vmatpush1.bf16.msra.mxu0 0
    %1421 = vmatprep.subr.bf16.mxu0 0
    %1422 = vmatpush1.bf16.msra.mxu0 0
    %1423 = vmatprep.mubr.bf16.mxu0 %v1368
    %1424 = vmatmul.mubr.bf16.gmra.mrb[0].mxu0 %v1271
    %v1425 = vpop.f32.mrb[0].mxu0
    %v1426 = vadd.f32 0.0, %v1425
    %v1427 = vpop.f32.mrb[0].mxu0
    %v1428 = vpop.f32.mrb[0].mxu0
    %v1429 = vadd.f32 0.0, %v1428
    %v1430 = vpop.f32.mrb[0].mxu0
    %1431 = vmatprep.mubr.bf16.mxu0 %v1371
    %1432 = vmatmul.mubr.bf16.gmra.mrb[0].mxu0 %v1273
    %v1433 = vpop.f32.mrb[0].mxu0
    %v1434 = vadd.f32 0.0, %v1433
    %v1435 = vpop.f32.mrb[0].mxu0
    %v1436 = vpop.f32.mrb[0].mxu0
    %v1437 = vadd.f32 0.0, %v1436
    %v1438 = vpop.f32.mrb[0].mxu0
    %1439 = vmatprep.mubr.bf16.mxu0 %v1374
    %1440 = vmatmul.mubr.bf16.gmra.mrb[0].mxu0 %v1275
    %v1441 = vpop.f32.mrb[0].mxu0
    %v1442 = vadd.f32 0.0, %v1441
    %v1443 = vpop.f32.mrb[0].mxu0
    %v1444 = vpop.f32.mrb[0].mxu0
    %v1445 = vadd.f32 0.0, %v1444
    %v1446 = vpop.f32.mrb[0].mxu0
    %1447 = vmatprep.mubr.bf16.mxu0 %v1377
    %1448 = vmatmul.mubr.bf16.gmra.mrb[0].mxu0 %v1277
    %v1449 = vpop.f32.mrb[0].mxu0
    %v1450 = vadd.f32 0.0, %v1449
    %v1451 = vpop.f32.mrb[0].mxu0
    %v1452 = vpop.f32.mrb[0].mxu0
    %v1453 = vadd.f32 0.0, %v1452
    %v1454 = vpop.f32.mrb[0].mxu0
    %1455 = vmatprep.mubr.bf16.mxu0 %v1380
    %1456 = vmatmul.mubr.bf16.gmra.mrb[0].mxu0 %v1279
    %v1457 = vpop.f32.mrb[0].mxu0
    %v1458 = vadd.f32 0.0, %v1457
    %v1459 = vpop.f32.mrb[0].mxu0
    %v1460 = vpop.f32.mrb[0].mxu0
    %v1461 = vadd.f32 0.0, %v1460
    %v1462 = vpop.f32.mrb[0].mxu0
    %1463 = vmatprep.mubr.bf16.mxu0 %v1383
    %1464 = vmatmul.mubr.bf16.gmra.mrb[0].mxu0 %v1281
    %v1465 = vpop.f32.mrb[0].mxu0
    %v1466 = vadd.f32 0.0, %v1465
    %v1467 = vpop.f32.mrb[0].mxu0
    %v1468 = vpop.f32.mrb[0].mxu0
    %v1469 = vadd.f32 0.0, %v1468
    %v1470 = vpop.f32.mrb[0].mxu0
    %1471 = vmatprep.mubr.bf16.mxu0 %v1386
    %1472 = vmatmul.mubr.bf16.gmra.mrb[0].mxu0 %v1283
    %v1473 = vpop.f32.mrb[0].mxu0
    %v1474 = vadd.f32 0.0, %v1473
    %v1475 = vpop.f32.mrb[0].mxu0
    %v1476 = vpop.f32.mrb[0].mxu0
    %v1477 = vadd.f32 0.0, %v1476
    %v1478 = vpop.f32.mrb[0].mxu0
    %1479 = vmatprep.mubr.bf16.mxu0 %v1389
    %1480 = vmatmul.mubr.bf16.gmra.mrb[0].mxu0 %v1285
    %v1481 = vpop.f32.mrb[0].mxu0
    %v1482 = vadd.f32 0.0, %v1481
    %v1483 = vpop.f32.mrb[0].mxu0
    %v1484 = vpop.f32.mrb[0].mxu0
    %v1485 = vadd.f32 0.0, %v1484
    %v1486 = vpop.f32.mrb[0].mxu0
    %1487 = vdwg.mxu0
    %v1489 = vlaneseq
    %v1490 = vshrl.u32 %v1489, 7
    %v1491 = vsub.s32 0, %v1490
    %v1492 = vrot.slane %v687, %v1491
    %v1494 = vmul.f32 %v1426, %v1492
    %v1495 = vmul.f32 %v1429, %v1492
    %v1496 = vmul.f32 %v1434, %v1492
    %v1497 = vmul.f32 %v1437, %v1492
    %v1498 = vmul.f32 %v1442, %v1492
    %v1499 = vmul.f32 %v1445, %v1492
    %v1500 = vmul.f32 %v1450, %v1492
    %v1501 = vmul.f32 %v1453, %v1492
    %v1502 = vmul.f32 %v1458, %v1492
    %v1503 = vmul.f32 %v1461, %v1492
    %v1504 = vmul.f32 %v1466, %v1492
    %v1505 = vmul.f32 %v1469, %v1492
    %v1506 = vmul.f32 %v1474, %v1492
    %v1507 = vmul.f32 %v1477, %v1492
    %v1508 = vmul.f32 %v1482, %v1492
    %v1509 = vmul.f32 %v1485, %v1492
    %v1511 = vlaneseq
    %v1512 = vshrl.u32 %v1511, 7
    %v1513 = vsub.s32 0, %v1512
    %v1514 = vrot.slane %v688, %v1513
    %v1516 = vadd.f32 %v1494, %v1514
    %v1517 = vadd.f32 %v1495, %v1514
    %v1518 = vadd.f32 %v1496, %v1514
    %v1519 = vadd.f32 %v1497, %v1514
    %v1520 = vadd.f32 %v1498, %v1514
    %v1521 = vadd.f32 %v1499, %v1514
    %v1522 = vadd.f32 %v1500, %v1514
    %v1523 = vadd.f32 %v1501, %v1514
    %v1524 = vadd.f32 %v1502, %v1514
    %v1525 = vadd.f32 %v1503, %v1514
    %v1526 = vadd.f32 %v1504, %v1514
    %v1527 = vadd.f32 %v1505, %v1514
    %v1528 = vadd.f32 %v1506, %v1514
    %v1529 = vadd.f32 %v1507, %v1514
    %v1530 = vadd.f32 %v1508, %v1514
    %v1531 = vadd.f32 %v1509, %v1514
    %v1532 = vmax.f32 %v1516, 0.0
    %v1533 = vmax.f32 %v1517, 0.0
    %v1534 = vmax.f32 %v1518, 0.0
    %v1535 = vmax.f32 %v1519, 0.0
    %v1536 = vmax.f32 %v1520, 0.0
    %v1537 = vmax.f32 %v1521, 0.0
    %v1538 = vmax.f32 %v1522, 0.0
    %v1539 = vmax.f32 %v1523, 0.0
    %v1540 = vmax.f32 %v1524, 0.0
    %v1541 = vmax.f32 %v1525, 0.0
    %v1542 = vmax.f32 %v1526, 0.0
    %v1543 = vmax.f32 %v1527, 0.0
    %v1544 = vmax.f32 %v1528, 0.0
    %v1545 = vmax.f32 %v1529, 0.0
    %v1546 = vmax.f32 %v1530, 0.0
    %v1547 = vmax.f32 %v1531, 0.0
    %v1548 = vld [vmem:[%s9] sm:$0x1]
    %v1549 = vld [vmem:[%s10] sm:$0x1]
    %v1550 = vrot.slane %v1532, 4
    %v1551 = vrot.slane %v1533, 4
    %v1552 = vrot.slane %v1534, 4
    %v1553 = vrot.slane %v1535, 4
    %v1554 = vrot.slane %v1536, 4
    %v1555 = vrot.slane %v1537, 4
    %v1556 = vrot.slane %v1538, 4
    %v1557 = vrot.slane %v1539, 4
    %v1558 = vrot.slane %v1540, 4
    %v1559 = vrot.slane %v1541, 4
    %v1560 = vrot.slane %v1542, 4
    %v1561 = vrot.slane %v1543, 4
    %v1562 = vrot.slane %v1544, 4
    %v1563 = vrot.slane %v1545, 4
    %v1564 = vrot.slane %v1546, 4
    %v1565 = vrot.slane %v1547, 4
    %vm1566 = vcmp.lt.s32.totalorder %v85, 4
    %v1567 = vsel %vm1566, %v1564, %v1565
    %v1568 = vsel %vm1566, %v1563, %v1564
    %v1569 = vsel %vm1566, %v1562, %v1563
    %v1570 = vsel %vm1566, %v1561, %v1562
    %v1571 = vsel %vm1566, %v1560, %v1561
    %v1572 = vsel %vm1566, %v1559, %v1560
    %v1573 = vsel %vm1566, %v1558, %v1559
    %v1574 = vsel %vm1566, %v1557, %v1558
    %v1575 = vsel %vm1566, %v1556, %v1557
    %v1576 = vsel %vm1566, %v1555, %v1556
    %v1577 = vsel %vm1566, %v1554, %v1555
    %v1578 = vsel %vm1566, %v1553, %v1554
    %v1579 = vsel %vm1566, %v1552, %v1553
    %v1580 = vsel %vm1566, %v1551, %v1552
    %v1581 = vsel %vm1566, %v1550, %v1551
    %v1582 = vsel %vm1566, %v1565, %v1550
    %vm1583 = vcmp.ge.s32.totalorder %v277, 4
    %vm1584 = vcmp.ge.s32.totalorder %v278, 4
    %vm1585 = vcmp.ge.s32.totalorder %v279, 4
    %vm1586 = vcmp.ge.s32.totalorder %v280, 4
    %vm1587 = vcmp.ge.s32.totalorder %v281, 4
    %vm1588 = vcmp.ge.s32.totalorder %v282, 4
    %vm1589 = vcmp.ge.s32.totalorder %v283, 4
    %vm1590 = vcmp.ge.s32.totalorder %v284, 4
    %vm1591 = vcmp.ge.s32.totalorder %v285, 4
    %vm1592 = vcmp.ge.s32.totalorder %v286, 4
    %vm1593 = vcmp.ge.s32.totalorder %v287, 4
    %vm1594 = vcmp.ge.s32.totalorder %v288, 4
    %vm1595 = vcmp.ge.s32.totalorder %v289, 4
    %vm1596 = vcmp.ge.s32.totalorder %v290, 4
    %vm1597 = vcmp.ge.s32.totalorder %v291, 4
    %vm1598 = vcmp.ge.s32.totalorder %v292, 4
    %v1599 = vsel %vm1583, 1, 0
    %v1600 = vsel %vm1584, 1, 0
    %v1601 = vsel %vm1585, 1, 0
    %v1602 = vsel %vm1586, 1, 0
    %v1603 = vsel %vm1587, 1, 0
    %v1604 = vsel %vm1588, 1, 0
    %v1605 = vsel %vm1589, 1, 0
    %v1606 = vsel %vm1590, 1, 0
    %v1607 = vsel %vm1591, 1, 0
    %v1608 = vsel %vm1592, 1, 0
    %v1609 = vsel %vm1593, 1, 0
    %v1610 = vsel %vm1594, 1, 0
    %v1611 = vsel %vm1595, 1, 0
    %v1612 = vsel %vm1596, 1, 0
    %v1613 = vsel %vm1597, 1, 0
    %v1614 = vsel %vm1598, 1, 0
    %vm1615 = vcmp.eq.s32.totalorder %v1599, 1
    %vm1616 = vcmp.eq.s32.totalorder %v1600, 1
    %vm1617 = vcmp.eq.s32.totalorder %v1601, 1
    %vm1618 = vcmp.eq.s32.totalorder %v1602, 1
    %vm1619 = vcmp.eq.s32.totalorder %v1603, 1
    %vm1620 = vcmp.eq.s32.totalorder %v1604, 1
    %vm1621 = vcmp.eq.s32.totalorder %v1605, 1
    %vm1622 = vcmp.eq.s32.totalorder %v1606, 1
    %vm1623 = vcmp.eq.s32.totalorder %v1607, 1
    %vm1624 = vcmp.eq.s32.totalorder %v1608, 1
    %vm1625 = vcmp.eq.s32.totalorder %v1609, 1
    %vm1626 = vcmp.eq.s32.totalorder %v1610, 1
    %vm1627 = vcmp.eq.s32.totalorder %v1611, 1
    %vm1628 = vcmp.eq.s32.totalorder %v1612, 1
    %vm1629 = vcmp.eq.s32.totalorder %v1613, 1
    %vm1630 = vcmp.eq.s32.totalorder %v1614, 1
    %v1631 = vsel %vm1615, %v1582, 0.0
    %v1632 = vsel %vm1616, %v1581, 0.0
    %v1633 = vsel %vm1617, %v1580, 0.0
    %v1634 = vsel %vm1618, %v1579, 0.0
    %v1635 = vsel %vm1619, %v1578, 0.0
    %v1636 = vsel %vm1620, %v1577, 0.0
    %v1637 = vsel %vm1621, %v1576, 0.0
    %v1638 = vsel %vm1622, %v1575, 0.0
    %v1639 = vsel %vm1623, %v1574, 0.0
    %v1640 = vsel %vm1624, %v1573, 0.0
    %v1641 = vsel %vm1625, %v1572, 0.0
    %v1642 = vsel %vm1626, %v1571, 0.0
    %v1643 = vsel %vm1627, %v1570, 0.0
    %v1644 = vsel %vm1628, %v1569, 0.0
    %v1645 = vsel %vm1629, %v1568, 0.0
    %v1646 = vsel %vm1630, %v1567, 0.0
    %vm1647 = vcmp.lt.s32.totalorder %v277, 60
    %vm1648 = vcmp.lt.s32.totalorder %v278, 60
    %vm1649 = vcmp.lt.s32.totalorder %v279, 60
    %vm1650 = vcmp.lt.s32.totalorder %v280, 60
    %vm1651 = vcmp.lt.s32.totalorder %v281, 60
    %vm1652 = vcmp.lt.s32.totalorder %v282, 60
    %vm1653 = vcmp.lt.s32.totalorder %v283, 60
    %vm1654 = vcmp.lt.s32.totalorder %v284, 60
    %vm1655 = vcmp.lt.s32.totalorder %v285, 60
    %vm1656 = vcmp.lt.s32.totalorder %v286, 60
    %vm1657 = vcmp.lt.s32.totalorder %v287, 60
    %vm1658 = vcmp.lt.s32.totalorder %v288, 60
    %vm1659 = vcmp.lt.s32.totalorder %v289, 60
    %vm1660 = vcmp.lt.s32.totalorder %v290, 60
    %vm1661 = vcmp.lt.s32.totalorder %v291, 60
    %vm1662 = vcmp.lt.s32.totalorder %v292, 60
    %v1663 = vsel %vm1647, 1, 0
    %v1664 = vsel %vm1648, 1, 0
    %v1665 = vsel %vm1649, 1, 0
    %v1666 = vsel %vm1650, 1, 0
    %v1667 = vsel %vm1651, 1, 0
    %v1668 = vsel %vm1652, 1, 0
    %v1669 = vsel %vm1653, 1, 0
    %v1670 = vsel %vm1654, 1, 0
    %v1671 = vsel %vm1655, 1, 0
    %v1672 = vsel %vm1656, 1, 0
    %v1673 = vsel %vm1657, 1, 0
    %v1674 = vsel %vm1658, 1, 0
    %v1675 = vsel %vm1659, 1, 0
    %v1676 = vsel %vm1660, 1, 0
    %v1677 = vsel %vm1661, 1, 0
    %v1678 = vsel %vm1662, 1, 0
    %vm1679 = vcmp.eq.s32.totalorder %v1663, 1
    %vm1680 = vcmp.eq.s32.totalorder %v1664, 1
    %vm1681 = vcmp.eq.s32.totalorder %v1665, 1
    %vm1682 = vcmp.eq.s32.totalorder %v1666, 1
    %vm1683 = vcmp.eq.s32.totalorder %v1667, 1
    %vm1684 = vcmp.eq.s32.totalorder %v1668, 1
    %vm1685 = vcmp.eq.s32.totalorder %v1669, 1
    %vm1686 = vcmp.eq.s32.totalorder %v1670, 1
    %vm1687 = vcmp.eq.s32.totalorder %v1671, 1
    %vm1688 = vcmp.eq.s32.totalorder %v1672, 1
    %vm1689 = vcmp.eq.s32.totalorder %v1673, 1
    %vm1690 = vcmp.eq.s32.totalorder %v1674, 1
    %vm1691 = vcmp.eq.s32.totalorder %v1675, 1
    %vm1692 = vcmp.eq.s32.totalorder %v1676, 1
    %vm1693 = vcmp.eq.s32.totalorder %v1677, 1
    %vm1694 = vcmp.eq.s32.totalorder %v1678, 1
    %v1695 = vsel %vm1679, %v1581, 0.0
    %v1696 = vsel %vm1680, %v1580, 0.0
    %v1697 = vsel %vm1681, %v1579, 0.0
    %v1698 = vsel %vm1682, %v1578, 0.0
    %v1699 = vsel %vm1683, %v1577, 0.0
    %v1700 = vsel %vm1684, %v1576, 0.0
    %v1701 = vsel %vm1685, %v1575, 0.0
    %v1702 = vsel %vm1686, %v1574, 0.0
    %v1703 = vsel %vm1687, %v1573, 0.0
    %v1704 = vsel %vm1688, %v1572, 0.0
    %v1705 = vsel %vm1689, %v1571, 0.0
    %v1706 = vsel %vm1690, %v1570, 0.0
    %v1707 = vsel %vm1691, %v1569, 0.0
    %v1708 = vsel %vm1692, %v1568, 0.0
    %v1709 = vsel %vm1693, %v1567, 0.0
    %v1710 = vsel %vm1694, %v1582, 0.0
    %1727 = vrot.lane.b32.xlu0 %v1532, 64
    %v1728 = vpop.permute.xlu0 %1727
    %1729 = vrot.lane.b32.xlu0 %v1533, 64
    %v1730 = vpop.permute.xlu0 %1729
    %1731 = vrot.lane.b32.xlu0 %v1534, 64
    %v1732 = vpop.permute.xlu0 %1731
    %1733 = vrot.lane.b32.xlu0 %v1535, 64
    %v1734 = vpop.permute.xlu0 %1733
    %1735 = vrot.lane.b32.xlu0 %v1536, 64
    %v1736 = vpop.permute.xlu0 %1735
    %1737 = vrot.lane.b32.xlu0 %v1537, 64
    %v1738 = vpop.permute.xlu0 %1737
    %1739 = vrot.lane.b32.xlu0 %v1538, 64
    %v1740 = vpop.permute.xlu0 %1739
    %1741 = vrot.lane.b32.xlu0 %v1539, 64
    %v1742 = vpop.permute.xlu0 %1741
    %1743 = vrot.lane.b32.xlu0 %v1540, 64
    %v1744 = vpop.permute.xlu0 %1743
    %1745 = vrot.lane.b32.xlu0 %v1541, 64
    %v1746 = vpop.permute.xlu0 %1745
    %1747 = vrot.lane.b32.xlu0 %v1542, 64
    %v1748 = vpop.permute.xlu0 %1747
    %1749 = vrot.lane.b32.xlu0 %v1543, 64
    %v1750 = vpop.permute.xlu0 %1749
    %1751 = vrot.lane.b32.xlu0 %v1544, 64
    %v1752 = vpop.permute.xlu0 %1751
    %1753 = vrot.lane.b32.xlu0 %v1545, 64
    %v1754 = vpop.permute.xlu0 %1753
    %1755 = vrot.lane.b32.xlu0 %v1546, 64
    %v1756 = vpop.permute.xlu0 %1755
    %1757 = vrot.lane.b32.xlu0 %v1547, 64
    %v1758 = vpop.permute.xlu0 %1757
    %v1775 = vsel %vm1237, %v1631, %v1728
    %v1776 = vsel %vm1237, %v1632, %v1730
    %v1777 = vsel %vm1237, %v1633, %v1732
    %v1778 = vsel %vm1237, %v1634, %v1734
    %v1779 = vsel %vm1237, %v1635, %v1736
    %v1780 = vsel %vm1237, %v1636, %v1738
    %v1781 = vsel %vm1237, %v1637, %v1740
    %v1782 = vsel %vm1237, %v1638, %v1742
    %v1783 = vsel %vm1237, %v1639, %v1744
    %v1784 = vsel %vm1237, %v1640, %v1746
    %v1785 = vsel %vm1237, %v1641, %v1748
    %v1786 = vsel %vm1237, %v1642, %v1750
    %v1787 = vsel %vm1237, %v1643, %v1752
    %v1788 = vsel %vm1237, %v1644, %v1754
    %v1789 = vsel %vm1237, %v1645, %v1756
    %v1790 = vsel %vm1237, %v1646, %v1758
    %v1791 = vpack.c.bf16 %v1776, %v1775
    %v1792 = vpack.c.bf16 %v1696, %v1695
    %v1793 = vpack.c.bf16 %v1778, %v1777
    %v1794 = vpack.c.bf16 %v1698, %v1697
    %v1795 = vpack.c.bf16 %v1780, %v1779
    %v1796 = vpack.c.bf16 %v1700, %v1699
    %v1797 = vpack.c.bf16 %v1782, %v1781
    %v1798 = vpack.c.bf16 %v1702, %v1701
    %v1799 = vpack.c.bf16 %v1784, %v1783
    %v1800 = vpack.c.bf16 %v1704, %v1703
    %v1801 = vpack.c.bf16 %v1786, %v1785
    %v1802 = vpack.c.bf16 %v1706, %v1705
    %v1803 = vpack.c.bf16 %v1788, %v1787
    %v1804 = vpack.c.bf16 %v1708, %v1707
    %v1805 = vpack.c.bf16 %v1790, %v1789
    %v1806 = vpack.c.bf16 %v1710, %v1709
    %v1807 = vld [vmem:[%s8] sm:$0xf]
    %v1808 = vld [vmem:[%s8 + $0x4] sm:$0xf]
    %v1809 = vld [vmem:[%s8 + $0x8] sm:$0xf]
    %v1810 = vld [vmem:[%s8 + $0xc] sm:$0xf]
    %v1811 = vld [vmem:[%s8 + $0x10] sm:$0xf]
    %v1812 = vld [vmem:[%s8 + $0x14] sm:$0xf]
    %v1813 = vld [vmem:[%s8 + $0x18] sm:$0xf]
    %v1814 = vld [vmem:[%s8 + $0x1c] sm:$0xf]
    %v1815 = vld [vmem:[%s8 + $0x20] sm:$0xf]
    %v1816 = vld [vmem:[%s8 + $0x24] sm:$0xf]
    %v1817 = vld [vmem:[%s8 + $0x28] sm:$0xf]
    %v1818 = vld [vmem:[%s8 + $0x2c] sm:$0xf]
    %v1819 = vld [vmem:[%s8 + $0x30] sm:$0xf]
    %v1820 = vld [vmem:[%s8 + $0x34] sm:$0xf]
    %v1821 = vld [vmem:[%s8 + $0x38] sm:$0xf]
    %v1822 = vld [vmem:[%s8 + $0x3c] sm:$0xf]
    %v1823 = vld [vmem:[%s8 + $0x40] sm:$0xf]
    %v1824 = vld [vmem:[%s8 + $0x44] sm:$0xf]
    %v1825 = vld [vmem:[%s8 + $0x48] sm:$0xf]
    %v1826 = vld [vmem:[%s8 + $0x4c] sm:$0xf]
    %v1827 = vld [vmem:[%s8 + $0x50] sm:$0xf]
    %v1828 = vld [vmem:[%s8 + $0x54] sm:$0xf]
    %v1829 = vld [vmem:[%s8 + $0x58] sm:$0xf]
    %v1830 = vld [vmem:[%s8 + $0x5c] sm:$0xf]
    %v1855 = vunpack.c.l.b16 %v1807
    %v1856 = vunpack.c.l.b16 %v1808
    %v1857 = vunpack.c.l.b16 %v1809
    %v1858 = vunpack.c.l.b16 %v1810
    %v1859 = vunpack.c.l.b16 %v1811
    %v1860 = vunpack.c.l.b16 %v1812
    %v1861 = vunpack.c.l.b16 %v1813
    %v1862 = vunpack.c.l.b16 %v1814
    %v1863 = vunpack.c.l.b16 %v1815
    %v1864 = vunpack.c.l.b16 %v1816
    %v1865 = vunpack.c.l.b16 %v1817
    %v1866 = vunpack.c.l.b16 %v1818
    %v1867 = vunpack.c.l.b16 %v1819
    %v1868 = vunpack.c.l.b16 %v1820
    %v1869 = vunpack.c.l.b16 %v1821
    %v1870 = vunpack.c.l.b16 %v1822
    %v1871 = vunpack.c.l.b16 %v1823
    %v1872 = vunpack.c.l.b16 %v1824
    %v1873 = vunpack.c.l.b16 %v1825
    %v1874 = vunpack.c.l.b16 %v1826
    %v1875 = vunpack.c.l.b16 %v1827
    %v1876 = vunpack.c.l.b16 %v1828
    %v1877 = vunpack.c.l.b16 %v1829
    %v1878 = vunpack.c.l.b16 %v1830
    %v1879 = vpack.c.b16 %v1856, %v1855
    %v1880 = vpack.c.b16 %v1858, %v1857
    %v1881 = vpack.c.b16 %v1860, %v1859
    %v1882 = vpack.c.b16 %v1862, %v1861
    %v1883 = vpack.c.b16 %v1864, %v1863
    %v1884 = vpack.c.b16 %v1866, %v1865
    %v1885 = vpack.c.b16 %v1868, %v1867
    %v1886 = vpack.c.b16 %v1870, %v1869
    %v1887 = vpack.c.b16 %v1872, %v1871
    %v1888 = vpack.c.b16 %v1874, %v1873
    %v1889 = vpack.c.b16 %v1876, %v1875
    %v1890 = vpack.c.b16 %v1878, %v1877
    %v1904 = vsel %vm1237, %v1792, 0
    %v1907 = vsel %vm1237, %v1794, 0
    %v1910 = vsel %vm1237, %v1796, 0
    %v1913 = vsel %vm1237, %v1798, 0
    %v1916 = vsel %vm1237, %v1800, 0
    %v1919 = vsel %vm1237, %v1802, 0
    %v1922 = vsel %vm1237, %v1804, 0
    %v1925 = vsel %vm1237, %v1806, 0
    %1927 = vmatprep.subr.bf16.mxu0 0
    %1928 = vmatpush1.bf16.msra.mxu0 %v1879
    %1929 = vmatprep.subr.bf16.mxu0 0
    %1930 = vmatpush1.bf16.msra.mxu0 %v1880
    %1931 = vmatprep.subr.bf16.mxu0 0
    %1932 = vmatpush1.bf16.msra.mxu0 %v1881
    %1933 = vmatprep.subr.bf16.mxu0 0
    %1934 = vmatpush1.bf16.msra.mxu0 %v1882
    %1935 = vmatprep.subr.bf16.mxu0 0
    %1936 = vmatpush1.bf16.msra.mxu0 %v1883
    %1937 = vmatprep.subr.bf16.mxu0 0
    %1938 = vmatpush1.bf16.msra.mxu0 %v1884
    %1939 = vmatprep.subr.bf16.mxu0 0
    %1940 = vmatpush1.bf16.msra.mxu0 %v1885
    %1941 = vmatprep.subr.bf16.mxu0 0
    %1942 = vmatpush1.bf16.msra.mxu0 %v1886
    %1943 = vmatprep.subr.bf16.mxu0 0
    %1944 = vmatpush1.bf16.msra.mxu0 %v1887
    %1945 = vmatprep.subr.bf16.mxu0 0
    %1946 = vmatpush1.bf16.msra.mxu0 %v1888
    %1947 = vmatprep.subr.bf16.mxu0 0
    %1948 = vmatpush1.bf16.msra.mxu0 %v1889
    %1949 = vmatprep.subr.bf16.mxu0 0
    %1950 = vmatpush1.bf16.msra.mxu0 %v1890
    %1951 = vmatprep.subr.bf16.mxu0 0
    %1952 = vmatpush1.bf16.msra.mxu0 0
    %1953 = vmatprep.subr.bf16.mxu0 0
    %1954 = vmatpush1.bf16.msra.mxu0 0
    %1955 = vmatprep.subr.bf16.mxu0 0
    %1956 = vmatpush1.bf16.msra.mxu0 0
    %1957 = vmatprep.subr.bf16.mxu0 0
    %1958 = vmatpush1.bf16.msra.mxu0 0
    %1959 = vmatprep.mubr.bf16.mxu0 %v1904
    %1960 = vmatmul.mubr.bf16.gmra.mrb[0].mxu0 %v1791
    %v1961 = vpop.f32.mrb[0].mxu0
    %v1962 = vadd.f32 0.0, %v1961
    %v1963 = vpop.f32.mrb[0].mxu0
    %v1964 = vpop.f32.mrb[0].mxu0
    %v1965 = vadd.f32 0.0, %v1964
    %v1966 = vpop.f32.mrb[0].mxu0
    %1967 = vmatprep.mubr.bf16.mxu0 %v1907
    %1968 = vmatmul.mubr.bf16.gmra.mrb[0].mxu0 %v1793
    %v1969 = vpop.f32.mrb[0].mxu0
    %v1970 = vadd.f32 0.0, %v1969
    %v1971 = vpop.f32.mrb[0].mxu0
    %v1972 = vpop.f32.mrb[0].mxu0
    %v1973 = vadd.f32 0.0, %v1972
    %v1974 = vpop.f32.mrb[0].mxu0
    %1975 = vmatprep.mubr.bf16.mxu0 %v1910
    %1976 = vmatmul.mubr.bf16.gmra.mrb[0].mxu0 %v1795
    %v1977 = vpop.f32.mrb[0].mxu0
    %v1978 = vadd.f32 0.0, %v1977
    %v1979 = vpop.f32.mrb[0].mxu0
    %v1980 = vpop.f32.mrb[0].mxu0
    %v1981 = vadd.f32 0.0, %v1980
    %v1982 = vpop.f32.mrb[0].mxu0
    %1983 = vmatprep.mubr.bf16.mxu0 %v1913
    %1984 = vmatmul.mubr.bf16.gmra.mrb[0].mxu0 %v1797
    %v1985 = vpop.f32.mrb[0].mxu0
    %v1986 = vadd.f32 0.0, %v1985
    %v1987 = vpop.f32.mrb[0].mxu0
    %v1988 = vpop.f32.mrb[0].mxu0
    %v1989 = vadd.f32 0.0, %v1988
    %v1990 = vpop.f32.mrb[0].mxu0
    %1991 = vmatprep.mubr.bf16.mxu0 %v1916
    %1992 = vmatmul.mubr.bf16.gmra.mrb[0].mxu0 %v1799
    %v1993 = vpop.f32.mrb[0].mxu0
    %v1994 = vadd.f32 0.0, %v1993
    %v1995 = vpop.f32.mrb[0].mxu0
    %v1996 = vpop.f32.mrb[0].mxu0
    %v1997 = vadd.f32 0.0, %v1996
    %v1998 = vpop.f32.mrb[0].mxu0
    %1999 = vmatprep.mubr.bf16.mxu0 %v1919
    %2000 = vmatmul.mubr.bf16.gmra.mrb[0].mxu0 %v1801
    %v2001 = vpop.f32.mrb[0].mxu0
    %v2002 = vadd.f32 0.0, %v2001
    %v2003 = vpop.f32.mrb[0].mxu0
    %v2004 = vpop.f32.mrb[0].mxu0
    %v2005 = vadd.f32 0.0, %v2004
    %v2006 = vpop.f32.mrb[0].mxu0
    %2007 = vmatprep.mubr.bf16.mxu0 %v1922
    %2008 = vmatmul.mubr.bf16.gmra.mrb[0].mxu0 %v1803
    %v2009 = vpop.f32.mrb[0].mxu0
    %v2010 = vadd.f32 0.0, %v2009
    %v2011 = vpop.f32.mrb[0].mxu0
    %v2012 = vpop.f32.mrb[0].mxu0
    %v2013 = vadd.f32 0.0, %v2012
    %v2014 = vpop.f32.mrb[0].mxu0
    %2015 = vmatprep.mubr.bf16.mxu0 %v1925
    %2016 = vmatmul.mubr.bf16.gmra.mrb[0].mxu0 %v1805
    %v2017 = vpop.f32.mrb[0].mxu0
    %v2018 = vadd.f32 0.0, %v2017
    %v2019 = vpop.f32.mrb[0].mxu0
    %v2020 = vpop.f32.mrb[0].mxu0
    %v2021 = vadd.f32 0.0, %v2020
    %v2022 = vpop.f32.mrb[0].mxu0
    %2023 = vdwg.mxu0
    %v2025 = vlaneseq
    %v2026 = vshrl.u32 %v2025, 7
    %v2027 = vsub.s32 0, %v2026
    %v2028 = vrot.slane %v1548, %v2027
    %v2030 = vmul.f32 %v1962, %v2028
    %v2031 = vmul.f32 %v1965, %v2028
    %v2032 = vmul.f32 %v1970, %v2028
    %v2033 = vmul.f32 %v1973, %v2028
    %v2034 = vmul.f32 %v1978, %v2028
    %v2035 = vmul.f32 %v1981, %v2028
    %v2036 = vmul.f32 %v1986, %v2028
    %v2037 = vmul.f32 %v1989, %v2028
    %v2038 = vmul.f32 %v1994, %v2028
    %v2039 = vmul.f32 %v1997, %v2028
    %v2040 = vmul.f32 %v2002, %v2028
    %v2041 = vmul.f32 %v2005, %v2028
    %v2042 = vmul.f32 %v2010, %v2028
    %v2043 = vmul.f32 %v2013, %v2028
    %v2044 = vmul.f32 %v2018, %v2028
    %v2045 = vmul.f32 %v2021, %v2028
    %v2047 = vlaneseq
    %v2048 = vshrl.u32 %v2047, 7
    %v2049 = vsub.s32 0, %v2048
    %v2050 = vrot.slane %v1549, %v2049
    %v2052 = vadd.f32 %v2030, %v2050
    %v2053 = vadd.f32 %v2031, %v2050
    %v2054 = vadd.f32 %v2032, %v2050
    %v2055 = vadd.f32 %v2033, %v2050
    %v2056 = vadd.f32 %v2034, %v2050
    %v2057 = vadd.f32 %v2035, %v2050
    %v2058 = vadd.f32 %v2036, %v2050
    %v2059 = vadd.f32 %v2037, %v2050
    %v2060 = vadd.f32 %v2038, %v2050
    %v2061 = vadd.f32 %v2039, %v2050
    %v2062 = vadd.f32 %v2040, %v2050
    %v2063 = vadd.f32 %v2041, %v2050
    %v2064 = vadd.f32 %v2042, %v2050
    %v2065 = vadd.f32 %v2043, %v2050
    %v2066 = vadd.f32 %v2044, %v2050
    %v2067 = vadd.f32 %v2045, %v2050
    %v2068 = vmax.f32 %v2052, 0.0
    %v2069 = vmax.f32 %v2053, 0.0
    %v2070 = vmax.f32 %v2054, 0.0
    %v2071 = vmax.f32 %v2055, 0.0
    %v2072 = vmax.f32 %v2056, 0.0
    %v2073 = vmax.f32 %v2057, 0.0
    %v2074 = vmax.f32 %v2058, 0.0
    %v2075 = vmax.f32 %v2059, 0.0
    %v2076 = vmax.f32 %v2060, 0.0
    %v2077 = vmax.f32 %v2061, 0.0
    %v2078 = vmax.f32 %v2062, 0.0
    %v2079 = vmax.f32 %v2063, 0.0
    %v2080 = vmax.f32 %v2064, 0.0
    %v2081 = vmax.f32 %v2065, 0.0
    %v2082 = vmax.f32 %v2066, 0.0
    %v2083 = vmax.f32 %v2067, 0.0
    %v2084 = vld [vmem:[%s12] sm:$0x3]
    %v2085 = vld [vmem:[%s13] sm:$0x3]
    %vm2086 = vcmp.ge.s32.totalorder %v277, 8
    %vm2087 = vcmp.ge.s32.totalorder %v278, 8
    %vm2088 = vcmp.ge.s32.totalorder %v279, 8
    %vm2089 = vcmp.ge.s32.totalorder %v280, 8
    %vm2090 = vcmp.ge.s32.totalorder %v281, 8
    %vm2091 = vcmp.ge.s32.totalorder %v282, 8
    %vm2092 = vcmp.ge.s32.totalorder %v283, 8
    %vm2093 = vcmp.ge.s32.totalorder %v284, 8
    %vm2094 = vcmp.ge.s32.totalorder %v285, 8
    %vm2095 = vcmp.ge.s32.totalorder %v286, 8
    %vm2096 = vcmp.ge.s32.totalorder %v287, 8
    %vm2097 = vcmp.ge.s32.totalorder %v288, 8
    %vm2098 = vcmp.ge.s32.totalorder %v289, 8
    %vm2099 = vcmp.ge.s32.totalorder %v290, 8
    %vm2100 = vcmp.ge.s32.totalorder %v291, 8
    %vm2101 = vcmp.ge.s32.totalorder %v292, 8
    %v2102 = vsel %vm2086, 1, 0
    %v2103 = vsel %vm2087, 1, 0
    %v2104 = vsel %vm2088, 1, 0
    %v2105 = vsel %vm2089, 1, 0
    %v2106 = vsel %vm2090, 1, 0
    %v2107 = vsel %vm2091, 1, 0
    %v2108 = vsel %vm2092, 1, 0
    %v2109 = vsel %vm2093, 1, 0
    %v2110 = vsel %vm2094, 1, 0
    %v2111 = vsel %vm2095, 1, 0
    %v2112 = vsel %vm2096, 1, 0
    %v2113 = vsel %vm2097, 1, 0
    %v2114 = vsel %vm2098, 1, 0
    %v2115 = vsel %vm2099, 1, 0
    %v2116 = vsel %vm2100, 1, 0
    %v2117 = vsel %vm2101, 1, 0
    %vm2118 = vcmp.eq.s32.totalorder %v2102, 1
    %vm2119 = vcmp.eq.s32.totalorder %v2103, 1
    %vm2120 = vcmp.eq.s32.totalorder %v2104, 1
    %vm2121 = vcmp.eq.s32.totalorder %v2105, 1
    %vm2122 = vcmp.eq.s32.totalorder %v2106, 1
    %vm2123 = vcmp.eq.s32.totalorder %v2107, 1
    %vm2124 = vcmp.eq.s32.totalorder %v2108, 1
    %vm2125 = vcmp.eq.s32.totalorder %v2109, 1
    %vm2126 = vcmp.eq.s32.totalorder %v2110, 1
    %vm2127 = vcmp.eq.s32.totalorder %v2111, 1
    %vm2128 = vcmp.eq.s32.totalorder %v2112, 1
    %vm2129 = vcmp.eq.s32.totalorder %v2113, 1
    %vm2130 = vcmp.eq.s32.totalorder %v2114, 1
    %vm2131 = vcmp.eq.s32.totalorder %v2115, 1
    %vm2132 = vcmp.eq.s32.totalorder %v2116, 1
    %vm2133 = vcmp.eq.s32.totalorder %v2117, 1
    %v2134 = vsel %vm2118, %v2083, 0.0
    %v2135 = vsel %vm2119, %v2068, 0.0
    %v2136 = vsel %vm2120, %v2069, 0.0
    %v2137 = vsel %vm2121, %v2070, 0.0
    %v2138 = vsel %vm2122, %v2071, 0.0
    %v2139 = vsel %vm2123, %v2072, 0.0
    %v2140 = vsel %vm2124, %v2073, 0.0
    %v2141 = vsel %vm2125, %v2074, 0.0
    %v2142 = vsel %vm2126, %v2075, 0.0
    %v2143 = vsel %vm2127, %v2076, 0.0
    %v2144 = vsel %vm2128, %v2077, 0.0
    %v2145 = vsel %vm2129, %v2078, 0.0
    %v2146 = vsel %vm2130, %v2079, 0.0
    %v2147 = vsel %vm2131, %v2080, 0.0
    %v2148 = vsel %vm2132, %v2081, 0.0
    %v2149 = vsel %vm2133, %v2082, 0.0
    %vm2150 = vcmp.lt.s32.totalorder %v277, 56
    %vm2151 = vcmp.lt.s32.totalorder %v278, 56
    %vm2152 = vcmp.lt.s32.totalorder %v279, 56
    %vm2153 = vcmp.lt.s32.totalorder %v280, 56
    %vm2154 = vcmp.lt.s32.totalorder %v281, 56
    %vm2155 = vcmp.lt.s32.totalorder %v282, 56
    %vm2156 = vcmp.lt.s32.totalorder %v283, 56
    %vm2157 = vcmp.lt.s32.totalorder %v284, 56
    %vm2158 = vcmp.lt.s32.totalorder %v285, 56
    %vm2159 = vcmp.lt.s32.totalorder %v286, 56
    %vm2160 = vcmp.lt.s32.totalorder %v287, 56
    %vm2161 = vcmp.lt.s32.totalorder %v288, 56
    %vm2162 = vcmp.lt.s32.totalorder %v289, 56
    %vm2163 = vcmp.lt.s32.totalorder %v290, 56
    %vm2164 = vcmp.lt.s32.totalorder %v291, 56
    %vm2165 = vcmp.lt.s32.totalorder %v292, 56
    %v2166 = vsel %vm2150, 1, 0
    %v2167 = vsel %vm2151, 1, 0
    %v2168 = vsel %vm2152, 1, 0
    %v2169 = vsel %vm2153, 1, 0
    %v2170 = vsel %vm2154, 1, 0
    %v2171 = vsel %vm2155, 1, 0
    %v2172 = vsel %vm2156, 1, 0
    %v2173 = vsel %vm2157, 1, 0
    %v2174 = vsel %vm2158, 1, 0
    %v2175 = vsel %vm2159, 1, 0
    %v2176 = vsel %vm2160, 1, 0
    %v2177 = vsel %vm2161, 1, 0
    %v2178 = vsel %vm2162, 1, 0
    %v2179 = vsel %vm2163, 1, 0
    %v2180 = vsel %vm2164, 1, 0
    %v2181 = vsel %vm2165, 1, 0
    %vm2182 = vcmp.eq.s32.totalorder %v2166, 1
    %vm2183 = vcmp.eq.s32.totalorder %v2167, 1
    %vm2184 = vcmp.eq.s32.totalorder %v2168, 1
    %vm2185 = vcmp.eq.s32.totalorder %v2169, 1
    %vm2186 = vcmp.eq.s32.totalorder %v2170, 1
    %vm2187 = vcmp.eq.s32.totalorder %v2171, 1
    %vm2188 = vcmp.eq.s32.totalorder %v2172, 1
    %vm2189 = vcmp.eq.s32.totalorder %v2173, 1
    %vm2190 = vcmp.eq.s32.totalorder %v2174, 1
    %vm2191 = vcmp.eq.s32.totalorder %v2175, 1
    %vm2192 = vcmp.eq.s32.totalorder %v2176, 1
    %vm2193 = vcmp.eq.s32.totalorder %v2177, 1
    %vm2194 = vcmp.eq.s32.totalorder %v2178, 1
    %vm2195 = vcmp.eq.s32.totalorder %v2179, 1
    %vm2196 = vcmp.eq.s32.totalorder %v2180, 1
    %vm2197 = vcmp.eq.s32.totalorder %v2181, 1
    %v2198 = vsel %vm2182, %v2069, 0.0
    %v2199 = vsel %vm2183, %v2070, 0.0
    %v2200 = vsel %vm2184, %v2071, 0.0
    %v2201 = vsel %vm2185, %v2072, 0.0
    %v2202 = vsel %vm2186, %v2073, 0.0
    %v2203 = vsel %vm2187, %v2074, 0.0
    %v2204 = vsel %vm2188, %v2075, 0.0
    %v2205 = vsel %vm2189, %v2076, 0.0
    %v2206 = vsel %vm2190, %v2077, 0.0
    %v2207 = vsel %vm2191, %v2078, 0.0
    %v2208 = vsel %vm2192, %v2079, 0.0
    %v2209 = vsel %vm2193, %v2080, 0.0
    %v2210 = vsel %vm2194, %v2081, 0.0
    %v2211 = vsel %vm2195, %v2082, 0.0
    %v2212 = vsel %vm2196, %v2083, 0.0
    %v2213 = vsel %vm2197, %v2068, 0.0
    %v2214 = vpack.c.bf16 %v2135, %v2134
    %v2215 = vpack.c.bf16 %v2069, %v2068
    %v2216 = vpack.c.bf16 %v2199, %v2198
    %v2217 = vpack.c.bf16 %v2137, %v2136
    %v2218 = vpack.c.bf16 %v2071, %v2070
    %v2219 = vpack.c.bf16 %v2201, %v2200
    %v2220 = vpack.c.bf16 %v2139, %v2138
    %v2221 = vpack.c.bf16 %v2073, %v2072
    %v2222 = vpack.c.bf16 %v2203, %v2202
    %v2223 = vpack.c.bf16 %v2141, %v2140
    %v2224 = vpack.c.bf16 %v2075, %v2074
    %v2225 = vpack.c.bf16 %v2205, %v2204
    %v2226 = vpack.c.bf16 %v2143, %v2142
    %v2227 = vpack.c.bf16 %v2077, %v2076
    %v2228 = vpack.c.bf16 %v2207, %v2206
    %v2229 = vpack.c.bf16 %v2145, %v2144
    %v2230 = vpack.c.bf16 %v2079, %v2078
    %v2231 = vpack.c.bf16 %v2209, %v2208
    %v2232 = vpack.c.bf16 %v2147, %v2146
    %v2233 = vpack.c.bf16 %v2081, %v2080
    %v2234 = vpack.c.bf16 %v2211, %v2210
    %v2235 = vpack.c.bf16 %v2149, %v2148
    %v2236 = vpack.c.bf16 %v2083, %v2082
    %v2237 = vpack.c.bf16 %v2213, %v2212
    %v2238 = vld [vmem:[%s11] sm:$0xff]
    %v2239 = vld [vmem:[%s11 + $0x8] sm:$0xff]
    %v2240 = vld [vmem:[%s11 + $0x10] sm:$0xff]
    %v2241 = vld [vmem:[%s11 + $0x18] sm:$0xff]
    %v2242 = vld [vmem:[%s11 + $0x20] sm:$0xff]
    %v2243 = vld [vmem:[%s11 + $0x28] sm:$0xff]
    %v2244 = vld [vmem:[%s11 + $0x30] sm:$0xff]
    %v2245 = vld [vmem:[%s11 + $0x38] sm:$0xff]
    %v2246 = vld [vmem:[%s11 + $0x40] sm:$0xff]
    %v2247 = vld [vmem:[%s11 + $0x48] sm:$0xff]
    %v2248 = vld [vmem:[%s11 + $0x50] sm:$0xff]
    %v2249 = vld [vmem:[%s11 + $0x58] sm:$0xff]
    %v2250 = vld [vmem:[%s11 + $0x60] sm:$0xff]
    %v2251 = vld [vmem:[%s11 + $0x68] sm:$0xff]
    %v2252 = vld [vmem:[%s11 + $0x70] sm:$0xff]
    %v2253 = vld [vmem:[%s11 + $0x78] sm:$0xff]
    %v2254 = vld [vmem:[%s11 + $0x80] sm:$0xff]
    %v2255 = vld [vmem:[%s11 + $0x88] sm:$0xff]
    %v2256 = vld [vmem:[%s11 + $0x90] sm:$0xff]
    %v2257 = vld [vmem:[%s11 + $0x98] sm:$0xff]
    %v2258 = vld [vmem:[%s11 + $0xa0] sm:$0xff]
    %v2259 = vld [vmem:[%s11 + $0xa8] sm:$0xff]
    %v2260 = vld [vmem:[%s11 + $0xb0] sm:$0xff]
    %v2261 = vld [vmem:[%s11 + $0xb8] sm:$0xff]
    %v2262 = vld [vmem:[%s11 + $0xc0] sm:$0xff]
    %v2263 = vld [vmem:[%s11 + $0xc8] sm:$0xff]
    %v2264 = vld [vmem:[%s11 + $0xd0] sm:$0xff]
    %v2265 = vld [vmem:[%s11 + $0xd8] sm:$0xff]
    %v2266 = vld [vmem:[%s11 + $0xe0] sm:$0xff]
    %v2267 = vld [vmem:[%s11 + $0xe8] sm:$0xff]
    %v2268 = vld [vmem:[%s11 + $0xf0] sm:$0xff]
    %v2269 = vld [vmem:[%s11 + $0xf8] sm:$0xff]
    %v2270 = vld [vmem:[%s11 + $0x100] sm:$0xff]
    %v2271 = vld [vmem:[%s11 + $0x108] sm:$0xff]
    %v2272 = vld [vmem:[%s11 + $0x110] sm:$0xff]
    %v2273 = vld [vmem:[%s11 + $0x118] sm:$0xff]
    %v2274 = vld [vmem:[%s11 + $0x120] sm:$0xff]
    %v2275 = vld [vmem:[%s11 + $0x128] sm:$0xff]
    %v2276 = vld [vmem:[%s11 + $0x130] sm:$0xff]
    %v2277 = vld [vmem:[%s11 + $0x138] sm:$0xff]
    %v2278 = vld [vmem:[%s11 + $0x140] sm:$0xff]
    %v2279 = vld [vmem:[%s11 + $0x148] sm:$0xff]
    %v2280 = vld [vmem:[%s11 + $0x150] sm:$0xff]
    %v2281 = vld [vmem:[%s11 + $0x158] sm:$0xff]
    %v2282 = vld [vmem:[%s11 + $0x160] sm:$0xff]
    %v2283 = vld [vmem:[%s11 + $0x168] sm:$0xff]
    %v2284 = vld [vmem:[%s11 + $0x170] sm:$0xff]
    %v2285 = vld [vmem:[%s11 + $0x178] sm:$0xff]
    %v2334 = vunpack.c.l.b16 %v2238
    %v2335 = vunpack.c.h.b16 %v2238
    %v2336 = vunpack.c.l.b16 %v2239
    %v2337 = vunpack.c.h.b16 %v2239
    %v2338 = vunpack.c.l.b16 %v2240
    %v2339 = vunpack.c.h.b16 %v2240
    %v2340 = vunpack.c.l.b16 %v2241
    %v2341 = vunpack.c.h.b16 %v2241
    %v2342 = vunpack.c.l.b16 %v2242
    %v2343 = vunpack.c.h.b16 %v2242
    %v2344 = vunpack.c.l.b16 %v2243
    %v2345 = vunpack.c.h.b16 %v2243
    %v2346 = vunpack.c.l.b16 %v2244
    %v2347 = vunpack.c.h.b16 %v2244
    %v2348 = vunpack.c.l.b16 %v2245
    %v2349 = vunpack.c.h.b16 %v2245
    %v2350 = vunpack.c.l.b16 %v2246
    %v2351 = vunpack.c.h.b16 %v2246
    %v2352 = vunpack.c.l.b16 %v2247
    %v2353 = vunpack.c.h.b16 %v2247
    %v2354 = vunpack.c.l.b16 %v2248
    %v2355 = vunpack.c.h.b16 %v2248
    %v2356 = vunpack.c.l.b16 %v2249
    %v2357 = vunpack.c.h.b16 %v2249
    %v2358 = vunpack.c.l.b16 %v2250
    %v2359 = vunpack.c.h.b16 %v2250
    %v2360 = vunpack.c.l.b16 %v2251
    %v2361 = vunpack.c.h.b16 %v2251
    %v2362 = vunpack.c.l.b16 %v2252
    %v2363 = vunpack.c.h.b16 %v2252
    %v2364 = vunpack.c.l.b16 %v2253
    %v2365 = vunpack.c.h.b16 %v2253
    %v2366 = vunpack.c.l.b16 %v2254
    %v2367 = vunpack.c.h.b16 %v2254
    %v2368 = vunpack.c.l.b16 %v2255
    %v2369 = vunpack.c.h.b16 %v2255
    %v2370 = vunpack.c.l.b16 %v2256
    %v2371 = vunpack.c.h.b16 %v2256
    %v2372 = vunpack.c.l.b16 %v2257
    %v2373 = vunpack.c.h.b16 %v2257
    %v2374 = vunpack.c.l.b16 %v2258
    %v2375 = vunpack.c.h.b16 %v2258
    %v2376 = vunpack.c.l.b16 %v2259
    %v2377 = vunpack.c.h.b16 %v2259
    %v2378 = vunpack.c.l.b16 %v2260
    %v2379 = vunpack.c.h.b16 %v2260
    %v2380 = vunpack.c.l.b16 %v2261
    %v2381 = vunpack.c.h.b16 %v2261
    %v2382 = vunpack.c.l.b16 %v2262
    %v2383 = vunpack.c.h.b16 %v2262
    %v2384 = vunpack.c.l.b16 %v2263
    %v2385 = vunpack.c.h.b16 %v2263
    %v2386 = vunpack.c.l.b16 %v2264
    %v2387 = vunpack.c.h.b16 %v2264
    %v2388 = vunpack.c.l.b16 %v2265
    %v2389 = vunpack.c.h.b16 %v2265
    %v2390 = vunpack.c.l.b16 %v2266
    %v2391 = vunpack.c.h.b16 %v2266
    %v2392 = vunpack.c.l.b16 %v2267
    %v2393 = vunpack.c.h.b16 %v2267
    %v2394 = vunpack.c.l.b16 %v2268
    %v2395 = vunpack.c.h.b16 %v2268
    %v2396 = vunpack.c.l.b16 %v2269
    %v2397 = vunpack.c.h.b16 %v2269
    %v2398 = vunpack.c.l.b16 %v2270
    %v2399 = vunpack.c.h.b16 %v2270
    %v2400 = vunpack.c.l.b16 %v2271
    %v2401 = vunpack.c.h.b16 %v2271
    %v2402 = vunpack.c.l.b16 %v2272
    %v2403 = vunpack.c.h.b16 %v2272
    %v2404 = vunpack.c.l.b16 %v2273
    %v2405 = vunpack.c.h.b16 %v2273
    %v2406 = vunpack.c.l.b16 %v2274
    %v2407 = vunpack.c.h.b16 %v2274
    %v2408 = vunpack.c.l.b16 %v2275
    %v2409 = vunpack.c.h.b16 %v2275
    %v2410 = vunpack.c.l.b16 %v2276
    %v2411 = vunpack.c.h.b16 %v2276
    %v2412 = vunpack.c.l.b16 %v2277
    %v2413 = vunpack.c.h.b16 %v2277
    %v2414 = vunpack.c.l.b16 %v2278
    %v2415 = vunpack.c.h.b16 %v2278
    %v2416 = vunpack.c.l.b16 %v2279
    %v2417 = vunpack.c.h.b16 %v2279
    %v2418 = vunpack.c.l.b16 %v2280
    %v2419 = vunpack.c.h.b16 %v2280
    %v2420 = vunpack.c.l.b16 %v2281
    %v2421 = vunpack.c.h.b16 %v2281
    %v2422 = vunpack.c.l.b16 %v2282
    %v2423 = vunpack.c.h.b16 %v2282
    %v2424 = vunpack.c.l.b16 %v2283
    %v2425 = vunpack.c.h.b16 %v2283
    %v2426 = vunpack.c.l.b16 %v2284
    %v2427 = vunpack.c.h.b16 %v2284
    %v2428 = vunpack.c.l.b16 %v2285
    %v2429 = vunpack.c.h.b16 %v2285
    %v2430 = vpack.c.b16 %v2336, %v2334
    %v2431 = vpack.c.b16 %v2337, %v2335
    %v2432 = vpack.c.b16 %v2340, %v2338
    %v2433 = vpack.c.b16 %v2341, %v2339
    %v2434 = vpack.c.b16 %v2344, %v2342
    %v2435 = vpack.c.b16 %v2345, %v2343
    %v2436 = vpack.c.b16 %v2348, %v2346
    %v2437 = vpack.c.b16 %v2349, %v2347
    %v2438 = vpack.c.b16 %v2352, %v2350
    %v2439 = vpack.c.b16 %v2353, %v2351
    %v2440 = vpack.c.b16 %v2356, %v2354
    %v2441 = vpack.c.b16 %v2357, %v2355
    %v2442 = vpack.c.b16 %v2360, %v2358
    %v2443 = vpack.c.b16 %v2361, %v2359
    %v2444 = vpack.c.b16 %v2364, %v2362
    %v2445 = vpack.c.b16 %v2365, %v2363
    %v2446 = vpack.c.b16 %v2368, %v2366
    %v2447 = vpack.c.b16 %v2369, %v2367
    %v2448 = vpack.c.b16 %v2372, %v2370
    %v2449 = vpack.c.b16 %v2373, %v2371
    %v2450 = vpack.c.b16 %v2376, %v2374
    %v2451 = vpack.c.b16 %v2377, %v2375
    %v2452 = vpack.c.b16 %v2380, %v2378
    %v2453 = vpack.c.b16 %v2381, %v2379
    %v2454 = vpack.c.b16 %v2384, %v2382
    %v2455 = vpack.c.b16 %v2385, %v2383
    %v2456 = vpack.c.b16 %v2388, %v2386
    %v2457 = vpack.c.b16 %v2389, %v2387
    %v2458 = vpack.c.b16 %v2392, %v2390
    %v2459 = vpack.c.b16 %v2393, %v2391
    %v2460 = vpack.c.b16 %v2396, %v2394
    %v2461 = vpack.c.b16 %v2397, %v2395
    %v2462 = vpack.c.b16 %v2400, %v2398
    %v2463 = vpack.c.b16 %v2401, %v2399
    %v2464 = vpack.c.b16 %v2404, %v2402
    %v2465 = vpack.c.b16 %v2405, %v2403
    %v2466 = vpack.c.b16 %v2408, %v2406
    %v2467 = vpack.c.b16 %v2409, %v2407
    %v2468 = vpack.c.b16 %v2412, %v2410
    %v2469 = vpack.c.b16 %v2413, %v2411
    %v2470 = vpack.c.b16 %v2416, %v2414
    %v2471 = vpack.c.b16 %v2417, %v2415
    %v2472 = vpack.c.b16 %v2420, %v2418
    %v2473 = vpack.c.b16 %v2421, %v2419
    %v2474 = vpack.c.b16 %v2424, %v2422
    %v2475 = vpack.c.b16 %v2425, %v2423
    %v2476 = vpack.c.b16 %v2428, %v2426
    %v2477 = vpack.c.b16 %v2429, %v2427
    %2526 = vmatprep.subr.bf16.mxu0 %v2431
    %2527 = vmatpush1.bf16.msra.mxu0 %v2430
    %2528 = vmatprep.subr.bf16.mxu0 %v2433
    %2529 = vmatpush1.bf16.msra.mxu0 %v2432
    %2530 = vmatprep.subr.bf16.mxu0 %v2435
    %2531 = vmatpush1.bf16.msra.mxu0 %v2434
    %2532 = vmatprep.subr.bf16.mxu0 %v2437
    %2533 = vmatpush1.bf16.msra.mxu0 %v2436
    %2534 = vmatprep.subr.bf16.mxu0 %v2439
    %2535 = vmatpush1.bf16.msra.mxu0 %v2438
    %2536 = vmatprep.subr.bf16.mxu0 %v2441
    %2537 = vmatpush1.bf16.msra.mxu0 %v2440
    %2538 = vmatprep.subr.bf16.mxu0 %v2443
    %2539 = vmatpush1.bf16.msra.mxu0 %v2442
    %2540 = vmatprep.subr.bf16.mxu0 %v2445
    %2541 = vmatpush1.bf16.msra.mxu0 %v2444
    %2542 = vmatprep.subr.bf16.mxu0 %v2447
    %2543 = vmatpush1.bf16.msra.mxu0 %v2446
    %2544 = vmatprep.subr.bf16.mxu0 %v2449
    %2545 = vmatpush1.bf16.msra.mxu0 %v2448
    %2546 = vmatprep.subr.bf16.mxu0 %v2451
    %2547 = vmatpush1.bf16.msra.mxu0 %v2450
    %2548 = vmatprep.subr.bf16.mxu0 %v2453
    %2549 = vmatpush1.bf16.msra.mxu0 %v2452
    %2550 = vmatprep.subr.bf16.mxu0 %v2455
    %2551 = vmatpush1.bf16.msra.mxu0 %v2454
    %2552 = vmatprep.subr.bf16.mxu0 %v2457
    %2553 = vmatpush1.bf16.msra.mxu0 %v2456
    %2554 = vmatprep.subr.bf16.mxu0 %v2459
    %2555 = vmatpush1.bf16.msra.mxu0 %v2458
    %2556 = vmatprep.subr.bf16.mxu0 %v2461
    %2557 = vmatpush1.bf16.msra.mxu0 %v2460
    %2558 = vmatprep.mubr.bf16.mxu0 %v2215
    %2559 = vmatmul.mubr.bf16.gmra.mrb[0].mxu0 %v2214
    %v2560 = vpop.f32.mrb[0].mxu0
    %v2561 = vadd.f32 0.0, %v2560
    %v2562 = vpop.f32.mrb[0].mxu0
    %v2563 = vadd.f32 0.0, %v2562
    %v2564 = vpop.f32.mrb[0].mxu0
    %v2565 = vadd.f32 0.0, %v2564
    %v2566 = vpop.f32.mrb[0].mxu0
    %v2567 = vadd.f32 0.0, %v2566
    %2568 = vmatprep.mubr.bf16.mxu0 %v2218
    %2569 = vmatmul.mubr.bf16.gmra.mrb[0].mxu0 %v2217
    %v2570 = vpop.f32.mrb[0].mxu0
    %v2571 = vadd.f32 0.0, %v2570
    %v2572 = vpop.f32.mrb[0].mxu0
    %v2573 = vadd.f32 0.0, %v2572
    %v2574 = vpop.f32.mrb[0].mxu0
    %v2575 = vadd.f32 0.0, %v2574
    %v2576 = vpop.f32.mrb[0].mxu0
    %v2577 = vadd.f32 0.0, %v2576
    %2578 = vmatprep.mubr.bf16.mxu0 %v2221
    %2579 = vmatmul.mubr.bf16.gmra.mrb[0].mxu0 %v2220
    %v2580 = vpop.f32.mrb[0].mxu0
    %v2581 = vadd.f32 0.0, %v2580
    %v2582 = vpop.f32.mrb[0].mxu0
    %v2583 = vadd.f32 0.0, %v2582
    %v2584 = vpop.f32.mrb[0].mxu0
    %v2585 = vadd.f32 0.0, %v2584
    %v2586 = vpop.f32.mrb[0].mxu0
    %v2587 = vadd.f32 0.0, %v2586
    %2588 = vmatprep.mubr.bf16.mxu0 %v2224
    %2589 = vmatmul.mubr.bf16.gmra.mrb[0].mxu0 %v2223
    %v2590 = vpop.f32.mrb[0].mxu0
    %v2591 = vadd.f32 0.0, %v2590
    %v2592 = vpop.f32.mrb[0].mxu0
    %v2593 = vadd.f32 0.0, %v2592
    %v2594 = vpop.f32.mrb[0].mxu0
    %v2595 = vadd.f32 0.0, %v2594
    %v2596 = vpop.f32.mrb[0].mxu0
    %v2597 = vadd.f32 0.0, %v2596
    %2598 = vmatprep.mubr.bf16.mxu0 %v2227
    %2599 = vmatmul.mubr.bf16.gmra.mrb[0].mxu0 %v2226
    %v2600 = vpop.f32.mrb[0].mxu0
    %v2601 = vadd.f32 0.0, %v2600
    %v2602 = vpop.f32.mrb[0].mxu0
    %v2603 = vadd.f32 0.0, %v2602
    %v2604 = vpop.f32.mrb[0].mxu0
    %v2605 = vadd.f32 0.0, %v2604
    %v2606 = vpop.f32.mrb[0].mxu0
    %v2607 = vadd.f32 0.0, %v2606
    %2608 = vmatprep.mubr.bf16.mxu0 %v2230
    %2609 = vmatmul.mubr.bf16.gmra.mrb[0].mxu0 %v2229
    %v2610 = vpop.f32.mrb[0].mxu0
    %v2611 = vadd.f32 0.0, %v2610
    %v2612 = vpop.f32.mrb[0].mxu0
    %v2613 = vadd.f32 0.0, %v2612
    %v2614 = vpop.f32.mrb[0].mxu0
    %v2615 = vadd.f32 0.0, %v2614
    %v2616 = vpop.f32.mrb[0].mxu0
    %v2617 = vadd.f32 0.0, %v2616
    %2618 = vmatprep.mubr.bf16.mxu0 %v2233
    %2619 = vmatmul.mubr.bf16.gmra.mrb[0].mxu0 %v2232
    %v2620 = vpop.f32.mrb[0].mxu0
    %v2621 = vadd.f32 0.0, %v2620
    %v2622 = vpop.f32.mrb[0].mxu0
    %v2623 = vadd.f32 0.0, %v2622
    %v2624 = vpop.f32.mrb[0].mxu0
    %v2625 = vadd.f32 0.0, %v2624
    %v2626 = vpop.f32.mrb[0].mxu0
    %v2627 = vadd.f32 0.0, %v2626
    %2628 = vmatprep.mubr.bf16.mxu0 %v2236
    %2629 = vmatmul.mubr.bf16.gmra.mrb[0].mxu0 %v2235
    %v2630 = vpop.f32.mrb[0].mxu0
    %v2631 = vadd.f32 0.0, %v2630
    %v2632 = vpop.f32.mrb[0].mxu0
    %v2633 = vadd.f32 0.0, %v2632
    %v2634 = vpop.f32.mrb[0].mxu0
    %v2635 = vadd.f32 0.0, %v2634
    %v2636 = vpop.f32.mrb[0].mxu0
    %v2637 = vadd.f32 0.0, %v2636
    %2638 = vdwg.mxu0
    %2639 = vmatprep.subr.bf16.mxu0 %v2463
    %2640 = vmatpush1.bf16.msra.mxu0 %v2462
    %2641 = vmatprep.subr.bf16.mxu0 %v2465
    %2642 = vmatpush1.bf16.msra.mxu0 %v2464
    %2643 = vmatprep.subr.bf16.mxu0 %v2467
    %2644 = vmatpush1.bf16.msra.mxu0 %v2466
    %2645 = vmatprep.subr.bf16.mxu0 %v2469
    %2646 = vmatpush1.bf16.msra.mxu0 %v2468
    %2647 = vmatprep.subr.bf16.mxu0 %v2471
    %2648 = vmatpush1.bf16.msra.mxu0 %v2470
    %2649 = vmatprep.subr.bf16.mxu0 %v2473
    %2650 = vmatpush1.bf16.msra.mxu0 %v2472
    %2651 = vmatprep.subr.bf16.mxu0 %v2475
    %2652 = vmatpush1.bf16.msra.mxu0 %v2474
    %2653 = vmatprep.subr.bf16.mxu0 %v2477
    %2654 = vmatpush1.bf16.msra.mxu0 %v2476
    %2655 = vmatprep.subr.bf16.mxu0 0
    %2656 = vmatpush1.bf16.msra.mxu0 0
    %2657 = vmatprep.subr.bf16.mxu0 0
    %2658 = vmatpush1.bf16.msra.mxu0 0
    %2659 = vmatprep.subr.bf16.mxu0 0
    %2660 = vmatpush1.bf16.msra.mxu0 0
    %2661 = vmatprep.subr.bf16.mxu0 0
    %2662 = vmatpush1.bf16.msra.mxu0 0
    %2663 = vmatprep.subr.bf16.mxu0 0
    %2664 = vmatpush1.bf16.msra.mxu0 0
    %2665 = vmatprep.subr.bf16.mxu0 0
    %2666 = vmatpush1.bf16.msra.mxu0 0
    %2667 = vmatprep.subr.bf16.mxu0 0
    %2668 = vmatpush1.bf16.msra.mxu0 0
    %2669 = vmatprep.subr.bf16.mxu0 0
    %2670 = vmatpush1.bf16.msra.mxu0 0
    %2671 = vmatprep.mubr.bf16.mxu0 0
    %2672 = vmatmul.mubr.bf16.gmra.mrb[0].mxu0 %v2216
    %v2673 = vpop.f32.mrb[0].mxu0
    %v2674 = vadd.f32 %v2561, %v2673
    %v2675 = vpop.f32.mrb[0].mxu0
    %v2676 = vadd.f32 %v2563, %v2675
    %v2677 = vpop.f32.mrb[0].mxu0
    %v2678 = vadd.f32 %v2565, %v2677
    %v2679 = vpop.f32.mrb[0].mxu0
    %v2680 = vadd.f32 %v2567, %v2679
    %2681 = vmatprep.mubr.bf16.mxu0 0
    %2682 = vmatmul.mubr.bf16.gmra.mrb[0].mxu0 %v2219
    %v2683 = vpop.f32.mrb[0].mxu0
    %v2684 = vadd.f32 %v2571, %v2683
    %v2685 = vpop.f32.mrb[0].mxu0
    %v2686 = vadd.f32 %v2573, %v2685
    %v2687 = vpop.f32.mrb[0].mxu0
    %v2688 = vadd.f32 %v2575, %v2687
    %v2689 = vpop.f32.mrb[0].mxu0
    %v2690 = vadd.f32 %v2577, %v2689
    %2691 = vmatprep.mubr.bf16.mxu0 0
    %2692 = vmatmul.mubr.bf16.gmra.mrb[0].mxu0 %v2222
    %v2693 = vpop.f32.mrb[0].mxu0
    %v2694 = vadd.f32 %v2581, %v2693
    %v2695 = vpop.f32.mrb[0].mxu0
    %v2696 = vadd.f32 %v2583, %v2695
    %v2697 = vpop.f32.mrb[0].mxu0
    %v2698 = vadd.f32 %v2585, %v2697
    %v2699 = vpop.f32.mrb[0].mxu0
    %v2700 = vadd.f32 %v2587, %v2699
    %2701 = vmatprep.mubr.bf16.mxu0 0
    %2702 = vmatmul.mubr.bf16.gmra.mrb[0].mxu0 %v2225
    %v2703 = vpop.f32.mrb[0].mxu0
    %v2704 = vadd.f32 %v2591, %v2703
    %v2705 = vpop.f32.mrb[0].mxu0
    %v2706 = vadd.f32 %v2593, %v2705
    %v2707 = vpop.f32.mrb[0].mxu0
    %v2708 = vadd.f32 %v2595, %v2707
    %v2709 = vpop.f32.mrb[0].mxu0
    %v2710 = vadd.f32 %v2597, %v2709
    %2711 = vmatprep.mubr.bf16.mxu0 0
    %2712 = vmatmul.mubr.bf16.gmra.mrb[0].mxu0 %v2228
    %v2713 = vpop.f32.mrb[0].mxu0
    %v2714 = vadd.f32 %v2601, %v2713
    %v2715 = vpop.f32.mrb[0].mxu0
    %v2716 = vadd.f32 %v2603, %v2715
    %v2717 = vpop.f32.mrb[0].mxu0
    %v2718 = vadd.f32 %v2605, %v2717
    %v2719 = vpop.f32.mrb[0].mxu0
    %v2720 = vadd.f32 %v2607, %v2719
    %2721 = vmatprep.mubr.bf16.mxu0 0
    %2722 = vmatmul.mubr.bf16.gmra.mrb[0].mxu0 %v2231
    %v2723 = vpop.f32.mrb[0].mxu0
    %v2724 = vadd.f32 %v2611, %v2723
    %v2725 = vpop.f32.mrb[0].mxu0
    %v2726 = vadd.f32 %v2613, %v2725
    %v2727 = vpop.f32.mrb[0].mxu0
    %v2728 = vadd.f32 %v2615, %v2727
    %v2729 = vpop.f32.mrb[0].mxu0
    %v2730 = vadd.f32 %v2617, %v2729
    %2731 = vmatprep.mubr.bf16.mxu0 0
    %2732 = vmatmul.mubr.bf16.gmra.mrb[0].mxu0 %v2234
    %v2733 = vpop.f32.mrb[0].mxu0
    %v2734 = vadd.f32 %v2621, %v2733
    %v2735 = vpop.f32.mrb[0].mxu0
    %v2736 = vadd.f32 %v2623, %v2735
    %v2737 = vpop.f32.mrb[0].mxu0
    %v2738 = vadd.f32 %v2625, %v2737
    %v2739 = vpop.f32.mrb[0].mxu0
    %v2740 = vadd.f32 %v2627, %v2739
    %2741 = vmatprep.mubr.bf16.mxu0 0
    %2742 = vmatmul.mubr.bf16.gmra.mrb[0].mxu0 %v2237
    %v2743 = vpop.f32.mrb[0].mxu0
    %v2744 = vadd.f32 %v2631, %v2743
    %v2745 = vpop.f32.mrb[0].mxu0
    %v2746 = vadd.f32 %v2633, %v2745
    %v2747 = vpop.f32.mrb[0].mxu0
    %v2748 = vadd.f32 %v2635, %v2747
    %v2749 = vpop.f32.mrb[0].mxu0
    %v2750 = vadd.f32 %v2637, %v2749
    %2751 = vdwg.mxu0
    %v2753 = vlaneseq
    %v2754 = vshrl.u32 %v2753, 7
    %v2755 = vsub.s32 0, %v2754
    %v2756 = vrot.slane %v2084, %v2755
    %v2757 = vlaneseq
    %v2758 = vshrl.u32 %v2757, 7
    %v2759 = vsub.s32 1, %v2758
    %v2760 = vrot.slane %v2084, %v2759
    %v2763 = vmul.f32 %v2674, %v2756
    %v2764 = vmul.f32 %v2676, %v2760
    %v2765 = vmul.f32 %v2678, %v2756
    %v2766 = vmul.f32 %v2680, %v2760
    %v2767 = vmul.f32 %v2684, %v2756
    %v2768 = vmul.f32 %v2686, %v2760
    %v2769 = vmul.f32 %v2688, %v2756
    %v2770 = vmul.f32 %v2690, %v2760
    %v2771 = vmul.f32 %v2694, %v2756
    %v2772 = vmul.f32 %v2696, %v2760
    %v2773 = vmul.f32 %v2698, %v2756
    %v2774 = vmul.f32 %v2700, %v2760
    %v2775 = vmul.f32 %v2704, %v2756
    %v2776 = vmul.f32 %v2706, %v2760
    %v2777 = vmul.f32 %v2708, %v2756
    %v2778 = vmul.f32 %v2710, %v2760
    %v2779 = vmul.f32 %v2714, %v2756
    %v2780 = vmul.f32 %v2716, %v2760
    %v2781 = vmul.f32 %v2718, %v2756
    %v2782 = vmul.f32 %v2720, %v2760
    %v2783 = vmul.f32 %v2724, %v2756
    %v2784 = vmul.f32 %v2726, %v2760
    %v2785 = vmul.f32 %v2728, %v2756
    %v2786 = vmul.f32 %v2730, %v2760
    %v2787 = vmul.f32 %v2734, %v2756
    %v2788 = vmul.f32 %v2736, %v2760
    %v2789 = vmul.f32 %v2738, %v2756
    %v2790 = vmul.f32 %v2740, %v2760
    %v2791 = vmul.f32 %v2744, %v2756
    %v2792 = vmul.f32 %v2746, %v2760
    %v2793 = vmul.f32 %v2748, %v2756
    %v2794 = vmul.f32 %v2750, %v2760
    %v2796 = vlaneseq
    %v2797 = vshrl.u32 %v2796, 7
    %v2798 = vsub.s32 0, %v2797
    %v2799 = vrot.slane %v2085, %v2798
    %v2800 = vlaneseq
    %v2801 = vshrl.u32 %v2800, 7
    %v2802 = vsub.s32 1, %v2801
    %v2803 = vrot.slane %v2085, %v2802
    %v2806 = vadd.f32 %v2763, %v2799
    %v2807 = vadd.f32 %v2764, %v2803
    %v2808 = vadd.f32 %v2765, %v2799
    %v2809 = vadd.f32 %v2766, %v2803
    %v2810 = vadd.f32 %v2767, %v2799
    %v2811 = vadd.f32 %v2768, %v2803
    %v2812 = vadd.f32 %v2769, %v2799
    %v2813 = vadd.f32 %v2770, %v2803
    %v2814 = vadd.f32 %v2771, %v2799
    %v2815 = vadd.f32 %v2772, %v2803
    %v2816 = vadd.f32 %v2773, %v2799
    %v2817 = vadd.f32 %v2774, %v2803
    %v2818 = vadd.f32 %v2775, %v2799
    %v2819 = vadd.f32 %v2776, %v2803
    %v2820 = vadd.f32 %v2777, %v2799
    %v2821 = vadd.f32 %v2778, %v2803
    %v2822 = vadd.f32 %v2779, %v2799
    %v2823 = vadd.f32 %v2780, %v2803
    %v2824 = vadd.f32 %v2781, %v2799
    %v2825 = vadd.f32 %v2782, %v2803
    %v2826 = vadd.f32 %v2783, %v2799
    %v2827 = vadd.f32 %v2784, %v2803
    %v2828 = vadd.f32 %v2785, %v2799
    %v2829 = vadd.f32 %v2786, %v2803
    %v2830 = vadd.f32 %v2787, %v2799
    %v2831 = vadd.f32 %v2788, %v2803
    %v2832 = vadd.f32 %v2789, %v2799
    %v2833 = vadd.f32 %v2790, %v2803
    %v2834 = vadd.f32 %v2791, %v2799
    %v2835 = vadd.f32 %v2792, %v2803
    %v2836 = vadd.f32 %v2793, %v2799
    %v2837 = vadd.f32 %v2794, %v2803
    %v2838 = vmax.f32 %v2806, 0.0
    %v2839 = vmax.f32 %v2807, 0.0
    %v2840 = vmax.f32 %v2808, 0.0
    %v2841 = vmax.f32 %v2809, 0.0
    %v2842 = vmax.f32 %v2810, 0.0
    %v2843 = vmax.f32 %v2811, 0.0
    %v2844 = vmax.f32 %v2812, 0.0
    %v2845 = vmax.f32 %v2813, 0.0
    %v2846 = vmax.f32 %v2814, 0.0
    %v2847 = vmax.f32 %v2815, 0.0
    %v2848 = vmax.f32 %v2816, 0.0
    %v2849 = vmax.f32 %v2817, 0.0
    %v2850 = vmax.f32 %v2818, 0.0
    %v2851 = vmax.f32 %v2819, 0.0
    %v2852 = vmax.f32 %v2820, 0.0
    %v2853 = vmax.f32 %v2821, 0.0
    %v2854 = vmax.f32 %v2822, 0.0
    %v2855 = vmax.f32 %v2823, 0.0
    %v2856 = vmax.f32 %v2824, 0.0
    %v2857 = vmax.f32 %v2825, 0.0
    %v2858 = vmax.f32 %v2826, 0.0
    %v2859 = vmax.f32 %v2827, 0.0
    %v2860 = vmax.f32 %v2828, 0.0
    %v2861 = vmax.f32 %v2829, 0.0
    %v2862 = vmax.f32 %v2830, 0.0
    %v2863 = vmax.f32 %v2831, 0.0
    %v2864 = vmax.f32 %v2832, 0.0
    %v2865 = vmax.f32 %v2833, 0.0
    %v2866 = vmax.f32 %v2834, 0.0
    %v2867 = vmax.f32 %v2835, 0.0
    %v2868 = vmax.f32 %v2836, 0.0
    %v2869 = vmax.f32 %v2837, 0.0
    %vm2870 = vcmp.lt.s32.totalorder %v277, 0
    %v2871 = vsub.s32 0, %v277
    %v2872 = vsel %vm2870, %v2871, %v277
    %v2873 = vshrl.u32 %v2872, 4
    %v2874 = vand.u32 %v2872, 15
    %v2875 = vsub.s32 0, %v2874
    %v2876 = vsel %vm2870, %v2875, %v2874
    %vm2877 = vcmp.lt.s32.totalorder %v278, 0
    %v2878 = vsub.s32 0, %v278
    %v2879 = vsel %vm2877, %v2878, %v278
    %v2880 = vshrl.u32 %v2879, 4
    %v2881 = vand.u32 %v2879, 15
    %v2882 = vsub.s32 0, %v2881
    %v2883 = vsel %vm2877, %v2882, %v2881
    %vm2884 = vcmp.lt.s32.totalorder %v279, 0
    %v2885 = vsub.s32 0, %v279
    %v2886 = vsel %vm2884, %v2885, %v279
    %v2887 = vshrl.u32 %v2886, 4
    %v2888 = vand.u32 %v2886, 15
    %v2889 = vsub.s32 0, %v2888
    %v2890 = vsel %vm2884, %v2889, %v2888
    %vm2891 = vcmp.lt.s32.totalorder %v280, 0
    %v2892 = vsub.s32 0, %v280
    %v2893 = vsel %vm2891, %v2892, %v280
    %v2894 = vshrl.u32 %v2893, 4
    %v2895 = vand.u32 %v2893, 15
    %v2896 = vsub.s32 0, %v2895
    %v2897 = vsel %vm2891, %v2896, %v2895
    %vm2898 = vcmp.lt.s32.totalorder %v281, 0
    %v2899 = vsub.s32 0, %v281
    %v2900 = vsel %vm2898, %v2899, %v281
    %v2901 = vshrl.u32 %v2900, 4
    %v2902 = vand.u32 %v2900, 15
    %v2903 = vsub.s32 0, %v2902
    %v2904 = vsel %vm2898, %v2903, %v2902
    %vm2905 = vcmp.lt.s32.totalorder %v282, 0
    %v2906 = vsub.s32 0, %v282
    %v2907 = vsel %vm2905, %v2906, %v282
    %v2908 = vshrl.u32 %v2907, 4
    %v2909 = vand.u32 %v2907, 15
    %v2910 = vsub.s32 0, %v2909
    %v2911 = vsel %vm2905, %v2910, %v2909
    %vm2912 = vcmp.lt.s32.totalorder %v283, 0
    %v2913 = vsub.s32 0, %v283
    %v2914 = vsel %vm2912, %v2913, %v283
    %v2915 = vshrl.u32 %v2914, 4
    %v2916 = vand.u32 %v2914, 15
    %v2917 = vsub.s32 0, %v2916
    %v2918 = vsel %vm2912, %v2917, %v2916
    %vm2919 = vcmp.lt.s32.totalorder %v284, 0
    %v2920 = vsub.s32 0, %v284
    %v2921 = vsel %vm2919, %v2920, %v284
    %v2922 = vshrl.u32 %v2921, 4
    %v2923 = vand.u32 %v2921, 15
    %v2924 = vsub.s32 0, %v2923
    %v2925 = vsel %vm2919, %v2924, %v2923
    %vm2926 = vcmp.lt.s32.totalorder %v285, 0
    %v2927 = vsub.s32 0, %v285
    %v2928 = vsel %vm2926, %v2927, %v285
    %v2929 = vshrl.u32 %v2928, 4
    %v2930 = vand.u32 %v2928, 15
    %v2931 = vsub.s32 0, %v2930
    %v2932 = vsel %vm2926, %v2931, %v2930
    %vm2933 = vcmp.lt.s32.totalorder %v286, 0
    %v2934 = vsub.s32 0, %v286
    %v2935 = vsel %vm2933, %v2934, %v286
    %v2936 = vshrl.u32 %v2935, 4
    %v2937 = vand.u32 %v2935, 15
    %v2938 = vsub.s32 0, %v2937
    %v2939 = vsel %vm2933, %v2938, %v2937
    %vm2940 = vcmp.lt.s32.totalorder %v287, 0
    %v2941 = vsub.s32 0, %v287
    %v2942 = vsel %vm2940, %v2941, %v287
    %v2943 = vshrl.u32 %v2942, 4
    %v2944 = vand.u32 %v2942, 15
    %v2945 = vsub.s32 0, %v2944
    %v2946 = vsel %vm2940, %v2945, %v2944
    %vm2947 = vcmp.lt.s32.totalorder %v288, 0
    %v2948 = vsub.s32 0, %v288
    %v2949 = vsel %vm2947, %v2948, %v288
    %v2950 = vshrl.u32 %v2949, 4
    %v2951 = vand.u32 %v2949, 15
    %v2952 = vsub.s32 0, %v2951
    %v2953 = vsel %vm2947, %v2952, %v2951
    %vm2954 = vcmp.lt.s32.totalorder %v289, 0
    %v2955 = vsub.s32 0, %v289
    %v2956 = vsel %vm2954, %v2955, %v289
    %v2957 = vshrl.u32 %v2956, 4
    %v2958 = vand.u32 %v2956, 15
    %v2959 = vsub.s32 0, %v2958
    %v2960 = vsel %vm2954, %v2959, %v2958
    %vm2961 = vcmp.lt.s32.totalorder %v290, 0
    %v2962 = vsub.s32 0, %v290
    %v2963 = vsel %vm2961, %v2962, %v290
    %v2964 = vshrl.u32 %v2963, 4
    %v2965 = vand.u32 %v2963, 15
    %v2966 = vsub.s32 0, %v2965
    %v2967 = vsel %vm2961, %v2966, %v2965
    %vm2968 = vcmp.lt.s32.totalorder %v291, 0
    %v2969 = vsub.s32 0, %v291
    %v2970 = vsel %vm2968, %v2969, %v291
    %v2971 = vshrl.u32 %v2970, 4
    %v2972 = vand.u32 %v2970, 15
    %v2973 = vsub.s32 0, %v2972
    %v2974 = vsel %vm2968, %v2973, %v2972
    %vm2975 = vcmp.lt.s32.totalorder %v292, 0
    %v2976 = vsub.s32 0, %v292
    %v2977 = vsel %vm2975, %v2976, %v292
    %v2978 = vshrl.u32 %v2977, 4
    %v2979 = vand.u32 %v2977, 15
    %v2980 = vsub.s32 0, %v2979
    %v2981 = vsel %vm2975, %v2980, %v2979
    %vm2982 = vcmp.ne.s32.totalorder %v2876, 0
    %vm2983 = vcmp.ne.s32.totalorder %v2883, 0
    %vm2984 = vcmp.ne.s32.totalorder %v2890, 0
    %vm2985 = vcmp.ne.s32.totalorder %v2897, 0
    %vm2986 = vcmp.ne.s32.totalorder %v2904, 0
    %vm2987 = vcmp.ne.s32.totalorder %v2911, 0
    %vm2988 = vcmp.ne.s32.totalorder %v2918, 0
    %vm2989 = vcmp.ne.s32.totalorder %v2925, 0
    %vm2990 = vcmp.ne.s32.totalorder %v2932, 0
    %vm2991 = vcmp.ne.s32.totalorder %v2939, 0
    %vm2992 = vcmp.ne.s32.totalorder %v2946, 0
    %vm2993 = vcmp.ne.s32.totalorder %v2953, 0
    %vm2994 = vcmp.ne.s32.totalorder %v2960, 0
    %vm2995 = vcmp.ne.s32.totalorder %v2967, 0
    %vm2996 = vcmp.ne.s32.totalorder %v2974, 0
    %vm2997 = vcmp.ne.s32.totalorder %v2981, 0
    %vm2998 = vcmp.lt.s32.totalorder %v2876, 0
    %vm2999 = vcmp.lt.s32.totalorder %v2883, 0
    %vm3000 = vcmp.lt.s32.totalorder %v2890, 0
    %vm3001 = vcmp.lt.s32.totalorder %v2897, 0
    %vm3002 = vcmp.lt.s32.totalorder %v2904, 0
    %vm3003 = vcmp.lt.s32.totalorder %v2911, 0
    %vm3004 = vcmp.lt.s32.totalorder %v2918, 0
    %vm3005 = vcmp.lt.s32.totalorder %v2925, 0
    %vm3006 = vcmp.lt.s32.totalorder %v2932, 0
    %vm3007 = vcmp.lt.s32.totalorder %v2939, 0
    %vm3008 = vcmp.lt.s32.totalorder %v2946, 0
    %vm3009 = vcmp.lt.s32.totalorder %v2953, 0
    %vm3010 = vcmp.lt.s32.totalorder %v2960, 0
    %vm3011 = vcmp.lt.s32.totalorder %v2967, 0
    %vm3012 = vcmp.lt.s32.totalorder %v2974, 0
    %vm3013 = vcmp.lt.s32.totalorder %v2981, 0
    %vm3014 = vmand %vm2998, %vm2982
    %vm3015 = vmand %vm2999, %vm2983
    %vm3016 = vmand %vm3000, %vm2984
    %vm3017 = vmand %vm3001, %vm2985
    %vm3018 = vmand %vm3002, %vm2986
    %vm3019 = vmand %vm3003, %vm2987
    %vm3020 = vmand %vm3004, %vm2988
    %vm3021 = vmand %vm3005, %vm2989
    %vm3022 = vmand %vm3006, %vm2990
    %vm3023 = vmand %vm3007, %vm2991
    %vm3024 = vmand %vm3008, %vm2992
    %vm3025 = vmand %vm3009, %vm2993
    %vm3026 = vmand %vm3010, %vm2994
    %vm3027 = vmand %vm3011, %vm2995
    %vm3028 = vmand %vm3012, %vm2996
    %vm3029 = vmand %vm3013, %vm2997
    %v3030 = vadd.s32 %v2876, 16
    %v3031 = vadd.s32 %v2883, 16
    %v3032 = vadd.s32 %v2890, 16
    %v3033 = vadd.s32 %v2897, 16
    %v3034 = vadd.s32 %v2904, 16
    %v3035 = vadd.s32 %v2911, 16
    %v3036 = vadd.s32 %v2918, 16
    %v3037 = vadd.s32 %v2925, 16
    %v3038 = vadd.s32 %v2932, 16
    %v3039 = vadd.s32 %v2939, 16
    %v3040 = vadd.s32 %v2946, 16
    %v3041 = vadd.s32 %v2953, 16
    %v3042 = vadd.s32 %v2960, 16
    %v3043 = vadd.s32 %v2967, 16
    %v3044 = vadd.s32 %v2974, 16
    %v3045 = vadd.s32 %v2981, 16
    %v3046 = vsel %vm3014, %v3030, %v2876
    %v3047 = vsel %vm3015, %v3031, %v2883
    %v3048 = vsel %vm3016, %v3032, %v2890
    %v3049 = vsel %vm3017, %v3033, %v2897
    %v3050 = vsel %vm3018, %v3034, %v2904
    %v3051 = vsel %vm3019, %v3035, %v2911
    %v3052 = vsel %vm3020, %v3036, %v2918
    %v3053 = vsel %vm3021, %v3037, %v2925
    %v3054 = vsel %vm3022, %v3038, %v2932
    %v3055 = vsel %vm3023, %v3039, %v2939
    %v3056 = vsel %vm3024, %v3040, %v2946
    %v3057 = vsel %vm3025, %v3041, %v2953
    %v3058 = vsel %vm3026, %v3042, %v2960
    %v3059 = vsel %vm3027, %v3043, %v2967
    %v3060 = vsel %vm3028, %v3044, %v2974
    %v3061 = vsel %vm3029, %v3045, %v2981
    %vm3062 = vcmp.eq.s32.totalorder %v3046, 0
    %vm3063 = vcmp.eq.s32.totalorder %v3047, 0
    %vm3064 = vcmp.eq.s32.totalorder %v3048, 0
    %vm3065 = vcmp.eq.s32.totalorder %v3049, 0
    %vm3066 = vcmp.eq.s32.totalorder %v3050, 0
    %vm3067 = vcmp.eq.s32.totalorder %v3051, 0
    %vm3068 = vcmp.eq.s32.totalorder %v3052, 0
    %vm3069 = vcmp.eq.s32.totalorder %v3053, 0
    %vm3070 = vcmp.eq.s32.totalorder %v3054, 0
    %vm3071 = vcmp.eq.s32.totalorder %v3055, 0
    %vm3072 = vcmp.eq.s32.totalorder %v3056, 0
    %vm3073 = vcmp.eq.s32.totalorder %v3057, 0
    %vm3074 = vcmp.eq.s32.totalorder %v3058, 0
    %vm3075 = vcmp.eq.s32.totalorder %v3059, 0
    %vm3076 = vcmp.eq.s32.totalorder %v3060, 0
    %vm3077 = vcmp.eq.s32.totalorder %v3061, 0
    %v3078 = vsel %vm3062, 1, 0
    %v3079 = vsel %vm3063, 1, 0
    %v3080 = vsel %vm3064, 1, 0
    %v3081 = vsel %vm3065, 1, 0
    %v3082 = vsel %vm3066, 1, 0
    %v3083 = vsel %vm3067, 1, 0
    %v3084 = vsel %vm3068, 1, 0
    %v3085 = vsel %vm3069, 1, 0
    %v3086 = vsel %vm3070, 1, 0
    %v3087 = vsel %vm3071, 1, 0
    %v3088 = vsel %vm3072, 1, 0
    %v3089 = vsel %vm3073, 1, 0
    %v3090 = vsel %vm3074, 1, 0
    %v3091 = vsel %vm3075, 1, 0
    %v3092 = vsel %vm3076, 1, 0
    %v3093 = vsel %vm3077, 1, 0
    %vm3094 = vcmp.eq.s32.totalorder %v3078, 1
    %vm3095 = vcmp.eq.s32.totalorder %v3079, 1
    %vm3096 = vcmp.eq.s32.totalorder %v3080, 1
    %vm3097 = vcmp.eq.s32.totalorder %v3081, 1
    %vm3098 = vcmp.eq.s32.totalorder %v3082, 1
    %vm3099 = vcmp.eq.s32.totalorder %v3083, 1
    %vm3100 = vcmp.eq.s32.totalorder %v3084, 1
    %vm3101 = vcmp.eq.s32.totalorder %v3085, 1
    %vm3102 = vcmp.eq.s32.totalorder %v3086, 1
    %vm3103 = vcmp.eq.s32.totalorder %v3087, 1
    %vm3104 = vcmp.eq.s32.totalorder %v3088, 1
    %vm3105 = vcmp.eq.s32.totalorder %v3089, 1
    %vm3106 = vcmp.eq.s32.totalorder %v3090, 1
    %vm3107 = vcmp.eq.s32.totalorder %v3091, 1
    %vm3108 = vcmp.eq.s32.totalorder %v3092, 1
    %vm3109 = vcmp.eq.s32.totalorder %v3093, 1
    %v3110 = vsel %vm3094, %v2838, 0.0
    %v3111 = vsel %vm3094, %v2839, 0.0
    %v3112 = vsel %vm3095, %v2840, 0.0
    %v3113 = vsel %vm3095, %v2841, 0.0
    %v3114 = vsel %vm3096, %v2842, 0.0
    %v3115 = vsel %vm3096, %v2843, 0.0
    %v3116 = vsel %vm3097, %v2844, 0.0
    %v3117 = vsel %vm3097, %v2845, 0.0
    %v3118 = vsel %vm3098, %v2846, 0.0
    %v3119 = vsel %vm3098, %v2847, 0.0
    %v3120 = vsel %vm3099, %v2848, 0.0
    %v3121 = vsel %vm3099, %v2849, 0.0
    %v3122 = vsel %vm3100, %v2850, 0.0
    %v3123 = vsel %vm3100, %v2851, 0.0
    %v3124 = vsel %vm3101, %v2852, 0.0
    %v3125 = vsel %vm3101, %v2853, 0.0
    %v3126 = vsel %vm3102, %v2854, 0.0
    %v3127 = vsel %vm3102, %v2855, 0.0
    %v3128 = vsel %vm3103, %v2856, 0.0
    %v3129 = vsel %vm3103, %v2857, 0.0
    %v3130 = vsel %vm3104, %v2858, 0.0
    %v3131 = vsel %vm3104, %v2859, 0.0
    %v3132 = vsel %vm3105, %v2860, 0.0
    %v3133 = vsel %vm3105, %v2861, 0.0
    %v3134 = vsel %vm3106, %v2862, 0.0
    %v3135 = vsel %vm3106, %v2863, 0.0
    %v3136 = vsel %vm3107, %v2864, 0.0
    %v3137 = vsel %vm3107, %v2865, 0.0
    %v3138 = vsel %vm3108, %v2866, 0.0
    %v3139 = vsel %vm3108, %v2867, 0.0
    %v3140 = vsel %vm3109, %v2868, 0.0
    %v3141 = vsel %vm3109, %v2869, 0.0
    %v3142 = vadd.f32 %v3110, %v3112
    %v3143 = vadd.f32 %v3142, %v3114
    %v3144 = vadd.f32 %v3143, %v3116
    %v3145 = vadd.f32 %v3144, %v3118
    %v3146 = vadd.f32 %v3145, %v3120
    %v3147 = vadd.f32 %v3146, %v3122
    %v3148 = vadd.f32 %v3147, %v3124
    %v3149 = vrot.slane %v3148, 4
    %v3150 = vadd.f32 %v3148, %v3149
    %v3151 = vrot.slane %v3150, 2
    %v3152 = vadd.f32 %v3150, %v3151
    %v3153 = vrot.slane %v3152, 1
    %v3154 = vadd.f32 %v3152, %v3153
    %v3155 = vadd.f32 %v3111, %v3113
    %v3156 = vadd.f32 %v3155, %v3115
    %v3157 = vadd.f32 %v3156, %v3117
    %v3158 = vadd.f32 %v3157, %v3119
    %v3159 = vadd.f32 %v3158, %v3121
    %v3160 = vadd.f32 %v3159, %v3123
    %v3161 = vadd.f32 %v3160, %v3125
    %v3162 = vrot.slane %v3161, 4
    %v3163 = vadd.f32 %v3161, %v3162
    %v3164 = vrot.slane %v3163, 2
    %v3165 = vadd.f32 %v3163, %v3164
    %v3166 = vrot.slane %v3165, 1
    %v3167 = vadd.f32 %v3165, %v3166
    %v3170 = vcombine.low %v3154, %v3167
    %v3172 = vunpack.c.l.s4 1966171168
    %v3173 = vunpack.c.0.s8 %v3172
    %v3174 = vlaneseq
    %v3175 = vshrl.u32 %v3174, 7
    %v3176 = vsub.s32 %v3173, %v3175
    %v3177 = vrot.slane %v3170, %v3176
    %v3179 = vunpack.c.l.s4 1966171168
    %v3180 = vunpack.c.0.s8 %v3179
    %v3181 = vlaneseq
    %v3182 = vshrl.u32 %v3181, 7
    %v3183 = vsub.s32 %v3180, %v3182
    %v3184 = vrot.slane %v3177, %v3183
    %v3186 = vlaneseq
    %vm3187 = vcmp.ge.s32.totalorder %v3186, 0
    %vm3188 = vcmp.lt.s32.totalorder %v3186, 256
    %vm3189 = vmand %vm3187, %vm3188
    %3190 = vst.msk [vmem:[#allocation2] ss:$2 sm:$0x3] %vm3189, %v3184
    %v3191 = vadd.f32 %v3126, %v3128
    %v3192 = vadd.f32 %v3191, %v3130
    %v3193 = vadd.f32 %v3192, %v3132
    %v3194 = vadd.f32 %v3193, %v3134
    %v3195 = vadd.f32 %v3194, %v3136
    %v3196 = vadd.f32 %v3195, %v3138
    %v3197 = vadd.f32 %v3196, %v3140
    %v3198 = vrot.slane %v3197, 4
    %v3199 = vadd.f32 %v3197, %v3198
    %v3200 = vrot.slane %v3199, 2
    %v3201 = vadd.f32 %v3199, %v3200
    %v3202 = vrot.slane %v3201, 1
    %v3203 = vadd.f32 %v3201, %v3202
    %v3204 = vadd.f32 %v3127, %v3129
    %v3205 = vadd.f32 %v3204, %v3131
    %v3206 = vadd.f32 %v3205, %v3133
    %v3207 = vadd.f32 %v3206, %v3135
    %v3208 = vadd.f32 %v3207, %v3137
    %v3209 = vadd.f32 %v3208, %v3139
    %v3210 = vadd.f32 %v3209, %v3141
    %v3211 = vrot.slane %v3210, 4
    %v3212 = vadd.f32 %v3210, %v3211
    %v3213 = vrot.slane %v3212, 2
    %v3214 = vadd.f32 %v3212, %v3213
    %v3215 = vrot.slane %v3214, 1
    %v3216 = vadd.f32 %v3214, %v3215
    %v3219 = vcombine.low %v3203, %v3216
    %v3221 = vunpack.c.l.s4 1966171168
    %v3222 = vunpack.c.0.s8 %v3221
    %v3223 = vlaneseq
    %v3224 = vshrl.u32 %v3223, 7
    %v3225 = vsub.s32 %v3222, %v3224
    %v3226 = vrot.slane %v3219, %v3225
    %v3228 = vunpack.c.l.s4 1966171168
    %v3229 = vunpack.c.0.s8 %v3228
    %v3230 = vlaneseq
    %v3231 = vshrl.u32 %v3230, 7
    %v3232 = vsub.s32 %v3229, %v3231
    %v3233 = vrot.slane %v3226, %v3232
    %s3235 = scalar_lea.vmem [#allocation2], 1
    %3236 = vst.msk [vmem:[%s3235] ss:$2 sm:$0x3] %vm3189, %v3233
    %v3237 = vld [vmem:[#allocation2] sm:$0xf]
    %v3238 = vmul.f32 %v3237, 0.25
    %v3241 = vunpack.c.l.s4 1983009808
    %v3242 = vunpack.c.0.s8 %v3241
    %v3243 = vlaneseq
    %v3244 = vshrl.u32 %v3243, 7
    %v3245 = vsub.s32 %v3242, %v3244
    %v3246 = vrot.slane %v3238, %v3245
    %v3247 = vcombine.high %v3246, %v3246
    %v3250 = vpack.c.bf16 %v3246, %v3246
    %v3251 = vpack.c.bf16 %v3247, %v3247
    %v3252 = vld [vmem:[%s14] sm:$0xf]
    %v3253 = vld [vmem:[%s14 + $0x4] sm:$0xf]
    %v3254 = vld [vmem:[%s14 + $0x8] sm:$0xf]
    %v3255 = vld [vmem:[%s14 + $0xc] sm:$0xf]
    %v3256 = vld [vmem:[%s14 + $0x10] sm:$0xf]
    %v3257 = vld [vmem:[%s14 + $0x14] sm:$0xf]
    %v3258 = vld [vmem:[%s14 + $0x18] sm:$0xf]
    %v3259 = vld [vmem:[%s14 + $0x1c] sm:$0xf]
    %v3260 = vld [vmem:[%s14 + $0x20] sm:$0xf]
    %v3261 = vld [vmem:[%s14 + $0x24] sm:$0xf]
    %v3262 = vld [vmem:[%s14 + $0x28] sm:$0xf]
    %v3263 = vld [vmem:[%s14 + $0x2c] sm:$0xf]
    %v3264 = vld [vmem:[%s14 + $0x30] sm:$0xf]
    %v3265 = vld [vmem:[%s14 + $0x34] sm:$0xf]
    %v3266 = vld [vmem:[%s14 + $0x38] sm:$0xf]
    %v3267 = vld [vmem:[%s14 + $0x3c] sm:$0xf]
    %v3268 = vld [vmem:[%s14 + $0x40] sm:$0xf]
    %v3269 = vld [vmem:[%s14 + $0x44] sm:$0xf]
    %v3270 = vld [vmem:[%s14 + $0x48] sm:$0xf]
    %v3271 = vld [vmem:[%s14 + $0x4c] sm:$0xf]
    %v3272 = vld [vmem:[%s14 + $0x50] sm:$0xf]
    %v3273 = vld [vmem:[%s14 + $0x54] sm:$0xf]
    %v3274 = vld [vmem:[%s14 + $0x58] sm:$0xf]
    %v3275 = vld [vmem:[%s14 + $0x5c] sm:$0xf]
    %v3276 = vld [vmem:[%s14 + $0x60] sm:$0xf]
    %v3277 = vld [vmem:[%s14 + $0x64] sm:$0xf]
    %v3278 = vld [vmem:[%s14 + $0x68] sm:$0xf]
    %v3279 = vld [vmem:[%s14 + $0x6c] sm:$0xf]
    %v3280 = vld [vmem:[%s14 + $0x70] sm:$0xf]
    %v3281 = vld [vmem:[%s14 + $0x74] sm:$0xf]
    %v3282 = vld [vmem:[%s14 + $0x78] sm:$0xf]
    %v3283 = vld [vmem:[%s14 + $0x7c] sm:$0xf]
    %v3284 = vld [vmem:[%s15] sm:$0x1]
    %v3286 = vlaneseq
    %v3287 = vshrl.u32 %v3286, 7
    %v3288 = vsub.s32 0, %v3287
    %v3289 = vrot.slane %v3284, %v3288
    %v3323 = vunpack.c.l.b16 %v3252
    %v3324 = vunpack.c.l.b16 %v3253
    %v3325 = vunpack.c.l.b16 %v3254
    %v3326 = vunpack.c.l.b16 %v3255
    %v3327 = vunpack.c.l.b16 %v3256
    %v3328 = vunpack.c.l.b16 %v3257
    %v3329 = vunpack.c.l.b16 %v3258
    %v3330 = vunpack.c.l.b16 %v3259
    %v3331 = vunpack.c.l.b16 %v3260
    %v3332 = vunpack.c.l.b16 %v3261
    %v3333 = vunpack.c.l.b16 %v3262
    %v3334 = vunpack.c.l.b16 %v3263
    %v3335 = vunpack.c.l.b16 %v3264
    %v3336 = vunpack.c.l.b16 %v3265
    %v3337 = vunpack.c.l.b16 %v3266
    %v3338 = vunpack.c.l.b16 %v3267
    %v3339 = vunpack.c.l.b16 %v3268
    %v3340 = vunpack.c.l.b16 %v3269
    %v3341 = vunpack.c.l.b16 %v3270
    %v3342 = vunpack.c.l.b16 %v3271
    %v3343 = vunpack.c.l.b16 %v3272
    %v3344 = vunpack.c.l.b16 %v3273
    %v3345 = vunpack.c.l.b16 %v3274
    %v3346 = vunpack.c.l.b16 %v3275
    %v3347 = vunpack.c.l.b16 %v3276
    %v3348 = vunpack.c.l.b16 %v3277
    %v3349 = vunpack.c.l.b16 %v3278
    %v3350 = vunpack.c.l.b16 %v3279
    %v3351 = vunpack.c.l.b16 %v3280
    %v3352 = vunpack.c.l.b16 %v3281
    %v3353 = vunpack.c.l.b16 %v3282
    %v3354 = vunpack.c.l.b16 %v3283
    %v3355 = vpack.c.b16 %v3324, %v3323
    %v3356 = vpack.c.b16 %v3326, %v3325
    %v3357 = vpack.c.b16 %v3328, %v3327
    %v3358 = vpack.c.b16 %v3330, %v3329
    %v3359 = vpack.c.b16 %v3332, %v3331
    %v3360 = vpack.c.b16 %v3334, %v3333
    %v3361 = vpack.c.b16 %v3336, %v3335
    %v3362 = vpack.c.b16 %v3338, %v3337
    %v3363 = vpack.c.b16 %v3340, %v3339
    %v3364 = vpack.c.b16 %v3342, %v3341
    %v3365 = vpack.c.b16 %v3344, %v3343
    %v3366 = vpack.c.b16 %v3346, %v3345
    %v3367 = vpack.c.b16 %v3348, %v3347
    %v3368 = vpack.c.b16 %v3350, %v3349
    %v3369 = vpack.c.b16 %v3352, %v3351
    %v3370 = vpack.c.b16 %v3354, %v3353
    %3387 = vmatprep.subr.bf16.mxu0 0
    %3388 = vmatpush1.bf16.msra.mxu0 %v3355
    %3389 = vmatprep.subr.bf16.mxu0 0
    %3390 = vmatpush1.bf16.msra.mxu0 %v3356
    %3391 = vmatprep.subr.bf16.mxu0 0
    %3392 = vmatpush1.bf16.msra.mxu0 %v3357
    %3393 = vmatprep.subr.bf16.mxu0 0
    %3394 = vmatpush1.bf16.msra.mxu0 %v3358
    %3395 = vmatprep.subr.bf16.mxu0 0
    %3396 = vmatpush1.bf16.msra.mxu0 %v3359
    %3397 = vmatprep.subr.bf16.mxu0 0
    %3398 = vmatpush1.bf16.msra.mxu0 %v3360
    %3399 = vmatprep.subr.bf16.mxu0 0
    %3400 = vmatpush1.bf16.msra.mxu0 %v3361
    %3401 = vmatprep.subr.bf16.mxu0 0
    %3402 = vmatpush1.bf16.msra.mxu0 %v3362
    %3403 = vmatprep.subr.bf16.mxu0 0
    %3404 = vmatpush1.bf16.msra.mxu0 %v3363
    %3405 = vmatprep.subr.bf16.mxu0 0
    %3406 = vmatpush1.bf16.msra.mxu0 %v3364
    %3407 = vmatprep.subr.bf16.mxu0 0
    %3408 = vmatpush1.bf16.msra.mxu0 %v3365
    %3409 = vmatprep.subr.bf16.mxu0 0
    %3410 = vmatpush1.bf16.msra.mxu0 %v3366
    %3411 = vmatprep.subr.bf16.mxu0 0
    %3412 = vmatpush1.bf16.msra.mxu0 %v3367
    %3413 = vmatprep.subr.bf16.mxu0 0
    %3414 = vmatpush1.bf16.msra.mxu0 %v3368
    %3415 = vmatprep.subr.bf16.mxu0 0
    %3416 = vmatpush1.bf16.msra.mxu0 %v3369
    %3417 = vmatprep.subr.bf16.mxu0 0
    %3418 = vmatpush1.bf16.msra.mxu0 %v3370
    %3419 = vmatprep.mubr.bf16.mxu0 %v3251
    %3420 = vmatmul.mubr.bf16.gmra.mrb[0].mxu0 %v3250
    %v3421 = vpop.f32.mrb[0].mxu0
    %v3422 = vadd.f32 %v3289, %v3421
    %v3423 = vpop.f32.mrb[0].mxu0
    %v3424 = vpop.f32.mrb[0].mxu0
    %v3425 = vpop.f32.mrb[0].mxu0
    %3426 = vdwg.mxu0
    %v3427 = vlaneseq
    %v3428 = vand.u32 %v3427, 127
    %vm3429 = vcmp.lt.s32.totalorder %v3428, 64
    %v3430 = vmul.f32 %v3422, %v3422
    %v3431 = vsel %vm3429, 1, 0
    %vm3432 = vcmp.eq.s32.totalorder %v3431, 1
    %v3433 = vsel %vm3432, %v3430, 0.0
    %vm3434 = vcmask 1041408
    %v3435 = vsel %vm3434, %v3433, 0.0
    %3436 = vadd.xlane.f32.xlu0 %v3435
    %v3437 = vpop.xlane.xlu0 %3436
    %v3438 = vsel %vm3432, 0.0, %v3430
    %v3439 = vsel %vm3434, %v3438, 0.0
    %3440 = vadd.xlane.f32.xlu0 %v3439
    %v3441 = vpop.xlane.xlu0 %3440
    %v3442 = vmax.f32 %v3437, 1e-24
    %v3443 = vrsqrt.pop %v3442
    %v3444 = vmax.f32 %v3441, 1e-24
    %v3445 = vrsqrt.pop %v3444
    %v3446 = vsel %vm3432, %v3443, %v3445
    %v3447 = vmul.f32 %v3422, %v3446
    %3448 = vst [vmem:[%s25] sm:$0x3] %v3447
    %v3449 = vld [vmem:[%s1] sm:$0x3]
    %v3450 = vpack.c.bf16 %v3449, %v3449
    %v3451 = vld [vmem:[%s16] sm:$0x3]
    %v3452 = vld [vmem:[%s17] sm:$0x1]
    %v3454 = vlaneseq
    %v3455 = vshrl.u32 %v3454, 7
    %v3456 = vsub.s32 0, %v3455
    %v3457 = vrot.slane %v3452, %v3456
    %vm3459 = vcmask 31744
    %v3461 = vsel %vm3459, %v3450, 0
    %v3464 = vsel %vm3434, %v3451, 0
    %3466 = vmatprep.subr.bf16.mxu0 0
    %3467 = vmatpush1.bf16.msra.mxu0 %v3464
    %3468 = vmatprep.subr.bf16.mxu0 0
    %3469 = vmatpush1.bf16.msra.mxu0 0
    %3470 = vmatprep.subr.bf16.mxu0 0
    %3471 = vmatpush1.bf16.msra.mxu0 0
    %3472 = vmatprep.subr.bf16.mxu0 0
    %3473 = vmatpush1.bf16.msra.mxu0 0
    %3474 = vmatprep.subr.bf16.mxu0 0
    %3475 = vmatpush1.bf16.msra.mxu0 0
    %3476 = vmatprep.subr.bf16.mxu0 0
    %3477 = vmatpush1.bf16.msra.mxu0 0
    %3478 = vmatprep.subr.bf16.mxu0 0
    %3479 = vmatpush1.bf16.msra.mxu0 0
    %3480 = vmatprep.subr.bf16.mxu0 0
    %3481 = vmatpush1.bf16.msra.mxu0 0
    %3482 = vmatprep.subr.bf16.mxu0 0
    %3483 = vmatpush1.bf16.msra.mxu0 0
    %3484 = vmatprep.subr.bf16.mxu0 0
    %3485 = vmatpush1.bf16.msra.mxu0 0
    %3486 = vmatprep.subr.bf16.mxu0 0
    %3487 = vmatpush1.bf16.msra.mxu0 0
    %3488 = vmatprep.subr.bf16.mxu0 0
    %3489 = vmatpush1.bf16.msra.mxu0 0
    %3490 = vmatprep.subr.bf16.mxu0 0
    %3491 = vmatpush1.bf16.msra.mxu0 0
    %3492 = vmatprep.subr.bf16.mxu0 0
    %3493 = vmatpush1.bf16.msra.mxu0 0
    %3494 = vmatprep.subr.bf16.mxu0 0
    %3495 = vmatpush1.bf16.msra.mxu0 0
    %3496 = vmatprep.subr.bf16.mxu0 0
    %3497 = vmatpush1.bf16.msra.mxu0 0
    %3498 = vmatprep.mubr.bf16.mxu0 0
    %3499 = vmatmul.mubr.bf16.gmra.mrb[0].mxu0 %v3461
    %v3500 = vpop.f32.mrb[0].mxu0
    %v3501 = vadd.f32 %v3457, %v3500
    %v3502 = vpop.f32.mrb[0].mxu0
    %v3503 = vpop.f32.mrb[0].mxu0
    %v3504 = vpop.f32.mrb[0].mxu0
    %3505 = vdwg.mxu0
    %v3506 = vmax.f32 %v3501, 0.0
    %v3507 = vpack.c.bf16 %v3506, %v3506
    %v3508 = vld [vmem:[%s18] sm:$0xf]
    %v3509 = vld [vmem:[%s18 + $0x4] sm:$0xf]
    %v3510 = vld [vmem:[%s18 + $0x8] sm:$0xf]
    %v3511 = vld [vmem:[%s18 + $0xc] sm:$0xf]
    %v3512 = vld [vmem:[%s19] sm:$0x1]
    %v3514 = vlaneseq
    %v3515 = vshrl.u32 %v3514, 7
    %v3516 = vsub.s32 0, %v3515
    %v3517 = vrot.slane %v3512, %v3516
    %v3523 = vunpack.c.l.b16 %v3508
    %v3524 = vunpack.c.l.b16 %v3509
    %v3525 = vunpack.c.l.b16 %v3510
    %v3526 = vunpack.c.l.b16 %v3511
    %v3527 = vpack.c.b16 %v3524, %v3523
    %v3528 = vpack.c.b16 %v3526, %v3525
    %v3532 = vsel %vm1220, %v3507, 0
    %3534 = vmatprep.subr.bf16.mxu0 0
    %3535 = vmatpush1.bf16.msra.mxu0 %v3527
    %3536 = vmatprep.subr.bf16.mxu0 0
    %3537 = vmatpush1.bf16.msra.mxu0 %v3528
    %3538 = vmatprep.subr.bf16.mxu0 0
    %3539 = vmatpush1.bf16.msra.mxu0 0
    %3540 = vmatprep.subr.bf16.mxu0 0
    %3541 = vmatpush1.bf16.msra.mxu0 0
    %3542 = vmatprep.subr.bf16.mxu0 0
    %3543 = vmatpush1.bf16.msra.mxu0 0
    %3544 = vmatprep.subr.bf16.mxu0 0
    %3545 = vmatpush1.bf16.msra.mxu0 0
    %3546 = vmatprep.subr.bf16.mxu0 0
    %3547 = vmatpush1.bf16.msra.mxu0 0
    %3548 = vmatprep.subr.bf16.mxu0 0
    %3549 = vmatpush1.bf16.msra.mxu0 0
    %3550 = vmatprep.subr.bf16.mxu0 0
    %3551 = vmatpush1.bf16.msra.mxu0 0
    %3552 = vmatprep.subr.bf16.mxu0 0
    %3553 = vmatpush1.bf16.msra.mxu0 0
    %3554 = vmatprep.subr.bf16.mxu0 0
    %3555 = vmatpush1.bf16.msra.mxu0 0
    %3556 = vmatprep.subr.bf16.mxu0 0
    %3557 = vmatpush1.bf16.msra.mxu0 0
    %3558 = vmatprep.subr.bf16.mxu0 0
    %3559 = vmatpush1.bf16.msra.mxu0 0
    %3560 = vmatprep.subr.bf16.mxu0 0
    %3561 = vmatpush1.bf16.msra.mxu0 0
    %3562 = vmatprep.subr.bf16.mxu0 0
    %3563 = vmatpush1.bf16.msra.mxu0 0
    %3564 = vmatprep.subr.bf16.mxu0 0
    %3565 = vmatpush1.bf16.msra.mxu0 0
    %3566 = vmatprep.mubr.bf16.mxu0 0
    %3567 = vmatmul.mubr.bf16.gmra.mrb[0].mxu0 %v3532
    %v3568 = vpop.f32.mrb[0].mxu0
    %v3569 = vadd.f32 %v3517, %v3568
    %v3570 = vpop.f32.mrb[0].mxu0
    %v3571 = vpop.f32.mrb[0].mxu0
    %v3572 = vpop.f32.mrb[0].mxu0
    %3573 = vdwg.mxu0
    %v3574 = vmax.f32 %v3569, 0.0
    %v3575 = vpack.c.bf16 %v3447, %v3447
    %v3576 = vld [vmem:[%s20] sm:$0xf]
    %v3577 = vld [vmem:[%s20 + $0x4] sm:$0xf]
    %v3578 = vld [vmem:[%s20 + $0x8] sm:$0xf]
    %v3579 = vld [vmem:[%s20 + $0xc] sm:$0xf]
    %v3580 = vld [vmem:[%s20 + $0x10] sm:$0xf]
    %v3581 = vld [vmem:[%s20 + $0x14] sm:$0xf]
    %v3582 = vld [vmem:[%s20 + $0x18] sm:$0xf]
    %v3583 = vld [vmem:[%s20 + $0x1c] sm:$0xf]
    %v3584 = vld [vmem:[%s20 + $0x20] sm:$0xf]
    %v3585 = vld [vmem:[%s20 + $0x24] sm:$0xf]
    %v3586 = vld [vmem:[%s20 + $0x28] sm:$0xf]
    %v3587 = vld [vmem:[%s20 + $0x2c] sm:$0xf]
    %v3588 = vld [vmem:[%s20 + $0x30] sm:$0xf]
    %v3589 = vld [vmem:[%s20 + $0x34] sm:$0xf]
    %v3590 = vld [vmem:[%s20 + $0x38] sm:$0xf]
    %v3591 = vld [vmem:[%s20 + $0x3c] sm:$0xf]
    %v3592 = vpack.c.bf16 %v3574, %v3574
    %v3593 = vld [vmem:[%s21] sm:$0xf]
    %v3594 = vld [vmem:[%s21 + $0x4] sm:$0xf]
    %v3595 = vld [vmem:[%s21 + $0x8] sm:$0xf]
    %v3596 = vld [vmem:[%s21 + $0xc] sm:$0xf]
    %v3601 = vunpack.c.l.b16 %v3593
    %v3602 = vunpack.c.l.b16 %v3594
    %v3603 = vunpack.c.l.b16 %v3595
    %v3604 = vunpack.c.l.b16 %v3596
    %v3605 = vpack.c.b16 %v3602, %v3601
    %v3606 = vpack.c.b16 %v3604, %v3603
    %v3610 = vsel %vm1220, %v3592, 0
    %3612 = vmatprep.subr.bf16.mxu0 0
    %3613 = vmatpush1.bf16.msra.mxu0 %v3605
    %3614 = vmatprep.subr.bf16.mxu0 0
    %3615 = vmatpush1.bf16.msra.mxu0 %v3606
    %3616 = vmatprep.subr.bf16.mxu0 0
    %3617 = vmatpush1.bf16.msra.mxu0 0
    %3618 = vmatprep.subr.bf16.mxu0 0
    %3619 = vmatpush1.bf16.msra.mxu0 0
    %3620 = vmatprep.subr.bf16.mxu0 0
    %3621 = vmatpush1.bf16.msra.mxu0 0
    %3622 = vmatprep.subr.bf16.mxu0 0
    %3623 = vmatpush1.bf16.msra.mxu0 0
    %3624 = vmatprep.subr.bf16.mxu0 0
    %3625 = vmatpush1.bf16.msra.mxu0 0
    %3626 = vmatprep.subr.bf16.mxu0 0
    %3627 = vmatpush1.bf16.msra.mxu0 0
    %3628 = vmatprep.subr.bf16.mxu0 0
    %3629 = vmatpush1.bf16.msra.mxu0 0
    %3630 = vmatprep.subr.bf16.mxu0 0
    %3631 = vmatpush1.bf16.msra.mxu0 0
    %3632 = vmatprep.subr.bf16.mxu0 0
    %3633 = vmatpush1.bf16.msra.mxu0 0
    %3634 = vmatprep.subr.bf16.mxu0 0
    %3635 = vmatpush1.bf16.msra.mxu0 0
    %3636 = vmatprep.subr.bf16.mxu0 0
    %3637 = vmatpush1.bf16.msra.mxu0 0
    %3638 = vmatprep.subr.bf16.mxu0 0
    %3639 = vmatpush1.bf16.msra.mxu0 0
    %3640 = vmatprep.subr.bf16.mxu0 0
    %3641 = vmatpush1.bf16.msra.mxu0 0
    %3642 = vmatprep.subr.bf16.mxu0 0
    %3643 = vmatpush1.bf16.msra.mxu0 0
    %3644 = vmatprep.mubr.bf16.mxu0 0
    %3645 = vmatmul.mubr.bf16.gmra.mrb[0].mxu0 %v3610
    %v3646 = vpop.f32.mrb[0].mxu0
    %v3647 = vadd.f32 0.0, %v3646
    %v3648 = vpop.f32.mrb[0].mxu0
    %v3649 = vpop.f32.mrb[0].mxu0
    %v3650 = vpop.f32.mrb[0].mxu0
    %3651 = vdwg.mxu0
    %v3668 = vunpack.c.l.b16 %v3576
    %v3669 = vunpack.c.l.b16 %v3577
    %v3670 = vunpack.c.l.b16 %v3578
    %v3671 = vunpack.c.l.b16 %v3579
    %v3672 = vunpack.c.l.b16 %v3580
    %v3673 = vunpack.c.l.b16 %v3581
    %v3674 = vunpack.c.l.b16 %v3582
    %v3675 = vunpack.c.l.b16 %v3583
    %v3676 = vunpack.c.l.b16 %v3584
    %v3677 = vunpack.c.l.b16 %v3585
    %v3678 = vunpack.c.l.b16 %v3586
    %v3679 = vunpack.c.l.b16 %v3587
    %v3680 = vunpack.c.l.b16 %v3588
    %v3681 = vunpack.c.l.b16 %v3589
    %v3682 = vunpack.c.l.b16 %v3590
    %v3683 = vunpack.c.l.b16 %v3591
    %v3684 = vpack.c.b16 %v3669, %v3668
    %v3685 = vpack.c.b16 %v3671, %v3670
    %v3686 = vpack.c.b16 %v3673, %v3672
    %v3687 = vpack.c.b16 %v3675, %v3674
    %v3688 = vpack.c.b16 %v3677, %v3676
    %v3689 = vpack.c.b16 %v3679, %v3678
    %v3690 = vpack.c.b16 %v3681, %v3680
    %v3691 = vpack.c.b16 %v3683, %v3682
    %3700 = vmatprep.subr.bf16.mxu0 0
    %3701 = vmatpush1.bf16.msra.mxu0 %v3684
    %3702 = vmatprep.subr.bf16.mxu0 0
    %3703 = vmatpush1.bf16.msra.mxu0 %v3685
    %3704 = vmatprep.subr.bf16.mxu0 0
    %3705 = vmatpush1.bf16.msra.mxu0 %v3686
    %3706 = vmatprep.subr.bf16.mxu0 0
    %3707 = vmatpush1.bf16.msra.mxu0 %v3687
    %3708 = vmatprep.subr.bf16.mxu0 0
    %3709 = vmatpush1.bf16.msra.mxu0 %v3688
    %3710 = vmatprep.subr.bf16.mxu0 0
    %3711 = vmatpush1.bf16.msra.mxu0 %v3689
    %3712 = vmatprep.subr.bf16.mxu0 0
    %3713 = vmatpush1.bf16.msra.mxu0 %v3690
    %3714 = vmatprep.subr.bf16.mxu0 0
    %3715 = vmatpush1.bf16.msra.mxu0 %v3691
    %3716 = vmatprep.subr.bf16.mxu0 0
    %3717 = vmatpush1.bf16.msra.mxu0 0
    %3718 = vmatprep.subr.bf16.mxu0 0
    %3719 = vmatpush1.bf16.msra.mxu0 0
    %3720 = vmatprep.subr.bf16.mxu0 0
    %3721 = vmatpush1.bf16.msra.mxu0 0
    %3722 = vmatprep.subr.bf16.mxu0 0
    %3723 = vmatpush1.bf16.msra.mxu0 0
    %3724 = vmatprep.subr.bf16.mxu0 0
    %3725 = vmatpush1.bf16.msra.mxu0 0
    %3726 = vmatprep.subr.bf16.mxu0 0
    %3727 = vmatpush1.bf16.msra.mxu0 0
    %3728 = vmatprep.subr.bf16.mxu0 0
    %3729 = vmatpush1.bf16.msra.mxu0 0
    %3730 = vmatprep.subr.bf16.mxu0 0
    %3731 = vmatpush1.bf16.msra.mxu0 0
    %3732 = vmatprep.mubr.bf16.mxu0 0
    %3733 = vmatmul.mubr.bf16.gmra.mrb[0].mxu0 %v3575
    %v3734 = vpop.f32.mrb[0].mxu0
    %v3735 = vadd.f32 %v3647, %v3734
    %v3736 = vpop.f32.mrb[0].mxu0
    %v3737 = vpop.f32.mrb[0].mxu0
    %v3738 = vpop.f32.mrb[0].mxu0
    %3739 = vdwg.mxu0
    %v3740 = vld [vmem:[%s22] sm:$0x1]
    %v3742 = vlaneseq
    %v3743 = vshrl.u32 %v3742, 7
    %v3744 = vsub.s32 0, %v3743
    %v3745 = vrot.slane %v3740, %v3744
    %v3747 = vadd.f32 %v3735, %v3745
    %v3748 = vmax.f32 %v3747, 0.0
    %v3749 = vpack.c.bf16 %v3748, %v3748
    %v3750 = vld [vmem:[%s23] sm:$0xf]
    %v3751 = vld [vmem:[%s23 + $0x4] sm:$0xf]
    %v3752 = vld [vmem:[%s23 + $0x8] sm:$0xf]
    %v3753 = vld [vmem:[%s23 + $0xc] sm:$0xf]
    %v3754 = vld [vmem:[%s23 + $0x10] sm:$0xf]
    %v3755 = vld [vmem:[%s23 + $0x14] sm:$0xf]
    %v3756 = vld [vmem:[%s23 + $0x18] sm:$0xf]
    %v3757 = vld [vmem:[%s23 + $0x1c] sm:$0xf]
    %v3758 = vld [vmem:[%s23 + $0x20] sm:$0xf]
    %v3759 = vld [vmem:[%s23 + $0x24] sm:$0xf]
    %v3760 = vld [vmem:[%s23 + $0x28] sm:$0xf]
    %v3761 = vld [vmem:[%s23 + $0x2c] sm:$0xf]
    %v3762 = vld [vmem:[%s23 + $0x30] sm:$0xf]
    %v3763 = vld [vmem:[%s23 + $0x34] sm:$0xf]
    %v3764 = vld [vmem:[%s23 + $0x38] sm:$0xf]
    %v3765 = vld [vmem:[%s23 + $0x3c] sm:$0xf]
    %v3766 = vld [vmem:[%s24] sm:$0x1]
    %v3768 = vlaneseq
    %v3769 = vshrl.u32 %v3768, 7
    %v3770 = vsub.s32 0, %v3769
    %v3771 = vrot.slane %v3766, %v3770
    %v3789 = vunpack.c.l.b16 %v3750
    %v3790 = vunpack.c.l.b16 %v3751
    %v3791 = vunpack.c.l.b16 %v3752
    %v3792 = vunpack.c.l.b16 %v3753
    %v3793 = vunpack.c.l.b16 %v3754
    %v3794 = vunpack.c.l.b16 %v3755
    %v3795 = vunpack.c.l.b16 %v3756
    %v3796 = vunpack.c.l.b16 %v3757
    %v3797 = vunpack.c.l.b16 %v3758
    %v3798 = vunpack.c.l.b16 %v3759
    %v3799 = vunpack.c.l.b16 %v3760
    %v3800 = vunpack.c.l.b16 %v3761
    %v3801 = vunpack.c.l.b16 %v3762
    %v3802 = vunpack.c.l.b16 %v3763
    %v3803 = vunpack.c.l.b16 %v3764
    %v3804 = vunpack.c.l.b16 %v3765
    %v3805 = vpack.c.b16 %v3790, %v3789
    %v3806 = vpack.c.b16 %v3792, %v3791
    %v3807 = vpack.c.b16 %v3794, %v3793
    %v3808 = vpack.c.b16 %v3796, %v3795
    %v3809 = vpack.c.b16 %v3798, %v3797
    %v3810 = vpack.c.b16 %v3800, %v3799
    %v3811 = vpack.c.b16 %v3802, %v3801
    %v3812 = vpack.c.b16 %v3804, %v3803
    %3821 = vmatprep.subr.bf16.mxu0 0
    %3822 = vmatpush1.bf16.msra.mxu0 %v3805
    %3823 = vmatprep.subr.bf16.mxu0 0
    %3824 = vmatpush1.bf16.msra.mxu0 %v3806
    %3825 = vmatprep.subr.bf16.mxu0 0
    %3826 = vmatpush1.bf16.msra.mxu0 %v3807
    %3827 = vmatprep.subr.bf16.mxu0 0
    %3828 = vmatpush1.bf16.msra.mxu0 %v3808
    %3829 = vmatprep.subr.bf16.mxu0 0
    %3830 = vmatpush1.bf16.msra.mxu0 %v3809
    %3831 = vmatprep.subr.bf16.mxu0 0
    %3832 = vmatpush1.bf16.msra.mxu0 %v3810
    %3833 = vmatprep.subr.bf16.mxu0 0
    %3834 = vmatpush1.bf16.msra.mxu0 %v3811
    %3835 = vmatprep.subr.bf16.mxu0 0
    %3836 = vmatpush1.bf16.msra.mxu0 %v3812
    %3837 = vmatprep.subr.bf16.mxu0 0
    %3838 = vmatpush1.bf16.msra.mxu0 0
    %3839 = vmatprep.subr.bf16.mxu0 0
    %3840 = vmatpush1.bf16.msra.mxu0 0
    %3841 = vmatprep.subr.bf16.mxu0 0
    %3842 = vmatpush1.bf16.msra.mxu0 0
    %3843 = vmatprep.subr.bf16.mxu0 0
    %3844 = vmatpush1.bf16.msra.mxu0 0
    %3845 = vmatprep.subr.bf16.mxu0 0
    %3846 = vmatpush1.bf16.msra.mxu0 0
    %3847 = vmatprep.subr.bf16.mxu0 0
    %3848 = vmatpush1.bf16.msra.mxu0 0
    %3849 = vmatprep.subr.bf16.mxu0 0
    %3850 = vmatpush1.bf16.msra.mxu0 0
    %3851 = vmatprep.subr.bf16.mxu0 0
    %3852 = vmatpush1.bf16.msra.mxu0 0
    %3853 = vmatprep.mubr.bf16.mxu0 0
    %3854 = vmatmul.mubr.bf16.gmra.mrb[0].mxu0 %v3749
    %v3855 = vpop.f32.mrb[0].mxu0
    %v3856 = vadd.f32 %v3771, %v3855
    %v3857 = vpop.f32.mrb[0].mxu0
    %v3858 = vpop.f32.mrb[0].mxu0
    %v3859 = vpop.f32.mrb[0].mxu0
    %3860 = vdwg.mxu0
    %3861 = vst [vmem:[#allocation3] sm:$0x3] %v3856
    // Predicated region
    $region102: #{branch_contrastive_bp_forward.1} parent=1 // pred_check
      _
    $region103: #{branch_contrastive_bp_forward.1} parent=1 // pred_check_branch
      %3863 = sbr.rel (0) target = $region105
    $region104: #{branch_contrastive_bp_forward.1} parent=1 // pred_region
      _
    $region105: #{branch_contrastive_bp_forward.1} parent=1 // pred_fallthru
      _
    // Predicated region
    $region106: #{branch_contrastive_bp_forward.1} parent=1 // pred_check
      _
    $region107: #{branch_contrastive_bp_forward.1} parent=1 // pred_check_branch
      %3865 = sbr.rel (0) target = $region109
    $region108: #{branch_contrastive_bp_forward.1} parent=1 // pred_region
      %s3867 = ssub.s32 32, 32
      %3868 = vsyncadd [#allocation4], %s3867
      %s3870 = sshll.u32 [#allocation3], 4
      %s3871 = int_to_ptr.vmem [resolvable:$true] %s3870
      %3873 = dma.vmem_to_hbm [thread:$0]  %s3871, 32, %s26, [#allocation4]
    $region109: #{branch_contrastive_bp_forward.1} parent=1 // pred_fallthru
      _
    // Predicated region
    $region110: #{branch_contrastive_bp_forward.1} parent=1 // pred_check
      _
    $region111: #{branch_contrastive_bp_forward.1} parent=1 // pred_check_branch
      %3875 = sbr.rel (0) target = $region113
    $region112: #{branch_contrastive_bp_forward.1} parent=1 // pred_region
      _
    $region113: #{branch_contrastive_bp_forward.1} parent=1 // pred_fallthru
      _
    // Predicated region
    $region114: #{branch_contrastive_bp_forward.1} parent=1 // pred_check
      _
    $region115: #{branch_contrastive_bp_forward.1} parent=1 // pred_check_branch
      %3877 = sbr.rel (0) target = $region117
    $region116: #{branch_contrastive_bp_forward.1} parent=1 // pred_region
      %3878 = dma.done [#allocation4], 32
    $region117: #{branch_contrastive_bp_forward.1} parent=1 // pred_fallthru
      _
    %3879 = vsyncpa [#allocation4], 1

</llo_original>
